<compile_context>
chip_gen: v6e
topology: v6e:2x2x1
jax: 0.10.0
libtpu: 0.0.40
codegen_flags: <defaults>
</compile_context>

<pallas_src>
import functools
import math

import jax
import jax.numpy as jnp
from jax.experimental import pallas as pl
from jax.experimental.pallas import tpu as pltpu

EPS = 1e-6  # RMSNorm eps


# ----------------------------- shared numerics -----------------------------
def _rmsnorm(x_bf16, g_f32):
    """RMSNorm computed in f32, output bf16 (matches the torch module)."""
    xf = x_bf16.astype(jnp.float32)
    ms = jnp.mean(xf * xf, axis=-1, keepdims=True)
    return (xf * jax.lax.rsqrt(ms + EPS) * g_f32).astype(jnp.bfloat16)


# ----------------------------- fused Pallas kernel -----------------------------
def encoder_kernel(x_ref, bias_ref, w_in_ref, g_in_ref,
                   w_qkv_ref, w_attp_ref, w_cfc_ref, w_mlpp_ref,
                   g_att_ref, g_mlp_ref, o_ref, *, n_head, scale):
    # x_ref    : (1, T, Din_pad) bf16   -- one batch element of the (padded) input
    # bias_ref : (1, 1, T)      f32     -- additive key-padding bias (0 / -1e30)
    # w_in_ref : (Din_pad, C)   bf16    -- input_proj weight, (in, out)
    # g_*      : RMSNorm gains, f32
    # w_qkv    : (L, C, 3C) ; w_attp: (L, C, C) ; w_cfc: (L, C, 8C) ; w_mlpp: (L, 4C, C)
    # o_ref    : (1, T, C)     bf16
    T = x_ref.shape[1]
    C = w_in_ref.shape[1]
    hd = C // n_head
    n_layer = w_qkv_ref.shape[0]
    dff = w_mlpp_ref.shape[1]          # 4*C

    x = x_ref[0]                       # (T, Din_pad) bf16
    bias = bias_ref[0]                 # (1, T) f32

    # ---- input projection + input RMSNorm ----
    h = jnp.dot(x, w_in_ref[...], preferred_element_type=jnp.float32).astype(jnp.bfloat16)
    h = _rmsnorm(h, g_in_ref[...])     # (T, C) bf16

    for l in range(n_layer):
        # ----------------- attention sub-block -----------------
        hin = _rmsnorm(h, g_att_ref[l])
        qkv = jnp.dot(hin, w_qkv_ref[l],
                      preferred_element_type=jnp.float32).astype(jnp.bfloat16)   # (T, 3C)
        w_attp = w_attp_ref[l]                                                    # (C, C)

        h_att = jnp.zeros((T, C), jnp.float32)
        for hh in range(n_head):
            lo = hh * hd
            qh = qkv[:, lo:lo + hd]                    # (T, hd) bf16
            kh = qkv[:, C + lo:C + lo + hd]            # (T, hd) bf16
            vh = qkv[:, 2 * C + lo:2 * C + lo + hd]    # (T, hd) bf16

            # scores = (q @ k^T) * scale + key_padding_bias
            s = jax.lax.dot_general(qh, kh, (((1,), (1,)), ((), ())),
                                    preferred_element_type=jnp.float32) * scale
            s = s + bias                               # (T, T) f32
            s = s - jnp.max(s, axis=-1, keepdims=True)
            e = jnp.exp(s)
            p = (e / jnp.sum(e, axis=-1, keepdims=True)).astype(jnp.bfloat16)

            oh = jnp.dot(p, vh, preferred_element_type=jnp.float32).astype(jnp.bfloat16)
            # y @ W_proj == sum_h y_h @ W_proj[h-rows]  (avoids an in-kernel concat)
            h_att = h_att + jnp.dot(oh, w_attp[lo:lo + hd, :],
                                    preferred_element_type=jnp.float32)

        h = (h.astype(jnp.float32) + h_att).astype(jnp.bfloat16)

        # ----------------- MLP (SwiGLU) sub-block -----------------
        hin = _rmsnorm(h, g_mlp_ref[l])
        uv = jnp.dot(hin, w_cfc_ref[l],
                     preferred_element_type=jnp.float32).astype(jnp.bfloat16)     # (T, 8C)
        u = uv[:, :dff].astype(jnp.float32)
        v = uv[:, dff:].astype(jnp.float32)
        x_mlp = (u * (v * jax.nn.sigmoid(v))).astype(jnp.bfloat16)                # (T, 4C)
        h_mlp = jnp.dot(x_mlp, w_mlpp_ref[l], preferred_element_type=jnp.float32) # (T, C)
        h = (h.astype(jnp.float32) + h_mlp).astype(jnp.bfloat16)

    o_ref[0] = h


# ----------------------------- wrapper (one pallas_call) -----------------------------
def encoder_forward(x, params, n_head):
    B, T, Din = x.shape
    Din_pad, C = params["w_in"].shape
    L = params["w_qkv"].shape[0]
    dff = params["w_mlpp"].shape[1]
    hd = C // n_head

    # key-padding mask -> additive bias (computed once, outside the kernel)
    key_valid = x[:, :, 0] != 0
    key_bias = jnp.where(key_valid, 0.0, -1e30).astype(jnp.float32).reshape(B, 1, T)

    xb = x.astype(jnp.bfloat16)
    if Din_pad != Din:
        xb = jnp.pad(xb, ((0, 0), (0, 0), (0, Din_pad - Din)))

    kernel = functools.partial(encoder_kernel, n_head=n_head, scale=1.0 / math.sqrt(hd))

    flops_layer = (2 * T * C * 3 * C            # qkv
                   + 4 * n_head * T * T * hd    # scores + p@v
                   + 2 * T * C * C              # att proj
                   + 2 * T * C * 2 * dff        # c_fc
                   + 2 * T * dff * C)           # mlp proj
    flops = B * (2 * T * Din_pad * C + L * flops_layer)
    transcendentals = B * L * (n_head * T * T + T * dff)
    bytes_accessed = (xb.size * 2 + key_bias.size * 4 + B * T * C * 2
                      + params["w_in"].size * 2 + params["g_in"].size * 4
                      + params["w_qkv"].size * 2 + params["w_attp"].size * 2
                      + params["w_cfc"].size * 2 + params["w_mlpp"].size * 2
                      + params["g_att"].size * 4 + params["g_mlp"].size * 4)

    grid_spec = pltpu.PrefetchScalarGridSpec(
        num_scalar_prefetch=0,
        grid=(B,),
        in_specs=[
            pl.BlockSpec((1, T, Din_pad), lambda b: (b, 0, 0)),   # x
            pl.BlockSpec((1, 1, T), lambda b: (b, 0, 0)),          # key bias
            pl.BlockSpec((Din_pad, C), lambda b: (0, 0)),          # w_in (resident)
            pl.BlockSpec((1, C), lambda b: (0, 0)),                # g_in
            pl.BlockSpec((L, C, 3 * C), lambda b: (0, 0, 0)),      # w_qkv
            pl.BlockSpec((L, C, C), lambda b: (0, 0, 0)),          # w_attp
            pl.BlockSpec((L, C, 2 * dff), lambda b: (0, 0, 0)),    # w_cfc
            pl.BlockSpec((L, dff, C), lambda b: (0, 0, 0)),        # w_mlpp
            pl.BlockSpec((L, 1, C), lambda b: (0, 0, 0)),          # g_att
            pl.BlockSpec((L, 1, C), lambda b: (0, 0, 0)),          # g_mlp
        ],
        out_specs=pl.BlockSpec((1, T, C), lambda b: (b, 0, 0)),
    )

    return pl.pallas_call(
        kernel,
        out_shape=jax.ShapeDtypeStruct((B, T, C), jnp.bfloat16),
        grid_spec=grid_spec,
        compiler_params=pltpu.CompilerParams(
            dimension_semantics=("parallel",),        # v7x: shard batch over both TCs
            vmem_limit_bytes=32 * 1024 * 1024,        # explicit, v7x-safe
        ),
        cost_estimate=pl.CostEstimate(flops=flops, transcendentals=transcendentals,
                                      bytes_accessed=bytes_accessed),
    )(xb, key_bias, params["w_in"], params["g_in"],
      params["w_qkv"], params["w_attp"], params["w_cfc"], params["w_mlpp"],
      params["g_att"], params["g_mlp"])


# ----------------------------- parameter init (mirrors torch init) -----------------------------
def init_params(key, input_dim, n_embd, n_head, n_layer, base_scale):
    C = n_embd
    din_pad = ((input_dim + 7) // 8) * 8
    proj_std = base_scale / math.sqrt(2 * n_layer)   # *_c_proj re-init rule
    keys = jax.random.split(key, 1 + 4 * n_layer)

    # input_proj: torch layout (out,in) = (C, input_dim); store transposed + zero-padded rows.
    w_in = jax.random.normal(keys[0], (C, input_dim), jnp.float32) * base_scale
    w_in_t = jnp.zeros((din_pad, C), jnp.float32).at[:input_dim, :].set(w_in.T)

    w_qkv, w_attp, w_cfc, w_mlpp = [], [], [], []
    for l in range(n_layer):
        k1, k2, k3, k4 = keys[1 + 4 * l: 5 + 4 * l]
        w_qkv.append((jax.random.normal(k1, (3 * C, C), jnp.float32) * base_scale).T)
        w_attp.append((jax.random.normal(k2, (C, C), jnp.float32) * proj_std).T)
        w_cfc.append((jax.random.normal(k3, (8 * C, C), jnp.float32) * base_scale).T)
        w_mlpp.append((jax.random.normal(k4, (C, 4 * C), jnp.float32) * proj_std).T)

    return {
        "w_in": w_in_t.astype(jnp.bfloat16),                     # (Din_pad, C)
        "g_in": jnp.ones((1, C), jnp.float32),
        "w_qkv": jnp.stack(w_qkv).astype(jnp.bfloat16),          # (L, C, 3C)
        "w_attp": jnp.stack(w_attp).astype(jnp.bfloat16),        # (L, C, C)
        "w_cfc": jnp.stack(w_cfc).astype(jnp.bfloat16),          # (L, C, 8C)
        "w_mlpp": jnp.stack(w_mlpp).astype(jnp.bfloat16),        # (L, 4C, C)
        "g_att": jnp.ones((n_layer, 1, C), jnp.float32),
        "g_mlp": jnp.ones((n_layer, 1, C), jnp.float32),
    }


# ----------------------------- pure-JAX reference (torch semantics) -----------------------------
def encoder_reference(x_raw, params, n_head):
    B, T, Din = x_raw.shape
    Din_pad, C = params["w_in"].shape
    hd = C // n_head
    scale = 1.0 / math.sqrt(hd)
    L = params["w_qkv"].shape[0]
    dff = params["w_mlpp"].shape[1]

    key_valid = x_raw[:, :, 0] != 0
    bias = jnp.where(key_valid, 0.0, -1e30).astype(jnp.float32)[:, None, None, :]  # (B,1,1,T)

    x = x_raw.astype(jnp.bfloat16)
    if Din_pad != Din:
        x = jnp.pad(x, ((0, 0), (0, 0), (0, Din_pad - Din)))

    h = jnp.einsum("btd,dc->btc", x, params["w_in"],
                   preferred_element_type=jnp.float32).astype(jnp.bfloat16)
    h = _rmsnorm(h, params["g_in"])

    for l in range(L):
        hin = _rmsnorm(h, params["g_att"][l])
        qkv = jnp.einsum("btc,cd->btd", hin, params["w_qkv"][l],
                         preferred_element_type=jnp.float32).astype(jnp.bfloat16)
        q, k, v = qkv[..., :C], qkv[..., C:2 * C], qkv[..., 2 * C:]

        def heads(t):
            return t.reshape(B, T, n_head, hd).transpose(0, 2, 1, 3).astype(jnp.float32)

        qh, kh, vh = heads(q), heads(k), heads(v)
        s = jnp.einsum("bhqd,bhkd->bhqk", qh, kh) * scale + bias
        s = s - jnp.max(s, axis=-1, keepdims=True)
        e = jnp.exp(s)
        p = (e / jnp.sum(e, axis=-1, keepdims=True)).astype(jnp.bfloat16).astype(jnp.float32)
        y = jnp.einsum("bhqk,bhkd->bhqd", p, vh)
        y = y.transpose(0, 2, 1, 3).reshape(B, T, C).astype(jnp.bfloat16)
        h_att = jnp.einsum("btc,cd->btd", y, params["w_attp"][l],
                           preferred_element_type=jnp.float32).astype(jnp.bfloat16)
        h = (h + h_att).astype(jnp.bfloat16)

        hin = _rmsnorm(h, params["g_mlp"][l])
        uv = jnp.einsum("btc,cd->btd", hin, params["w_cfc"][l],
                        preferred_element_type=jnp.float32).astype(jnp.bfloat16)
        u, v2 = uv[..., :dff], uv[..., dff:]
        x_mlp = (u * (v2 * jax.nn.sigmoid(v2))).astype(jnp.bfloat16)
        h_mlp = jnp.einsum("btf,fc->btc", x_mlp, params["w_mlpp"][l],
                           preferred_element_type=jnp.float32).astype(jnp.bfloat16)
        h = (h + h_mlp).astype(jnp.bfloat16)
    return h


if __name__ == "__main__":
    B, P, INPUT_DIM = 2, 8, 4          # batch, particles (seq), features
    N_EMBD, N_HEAD, N_LAYER = 32, 4, 2
    BASE_SCALE = 0.02

    key = jax.random.PRNGKey(0)
    kp, kx = jax.random.split(key)
    params = init_params(kp, INPUT_DIM, N_EMBD, N_HEAD, N_LAYER, BASE_SCALE)

    x = jax.random.normal(kx, (B, P, INPUT_DIM), jnp.float32)
    # make the last particle "padded" (feature 0 == 0) to exercise the attention mask
    x = x.at[:, -1, :].set(0.0)

    out = jax.block_until_ready(encoder_forward(x, params, N_HEAD))
    ref = encoder_reference(x, params, N_HEAD)

    assert out.shape == (B, P, N_EMBD) and out.dtype == jnp.bfloat16
    assert bool(jnp.all(jnp.isfinite(out.astype(jnp.float32))))
    assert bool(jnp.allclose(out.astype(jnp.float32), ref.astype(jnp.float32),
                             atol=2e-2, rtol=2e-2))

    print("KERNEL_OK")
</pallas_src>

<mosaic_0001>
module attributes {stable_mosaic.version = 11 : i64} {
  func.func @encoder_kernel(%arg0: i32, %arg1: memref<1x8x8xbf16, #tpu.memory_space<vmem>>, %arg2: memref<1x1x8xf32, #tpu.memory_space<vmem>>, %arg3: memref<8x32xbf16, #tpu.memory_space<vmem>>, %arg4: memref<1x32xf32, #tpu.memory_space<vmem>>, %arg5: memref<2x32x96xbf16, #tpu.memory_space<vmem>>, %arg6: memref<2x32x32xbf16, #tpu.memory_space<vmem>>, %arg7: memref<2x32x256xbf16, #tpu.memory_space<vmem>>, %arg8: memref<2x128x32xbf16, #tpu.memory_space<vmem>>, %arg9: memref<2x1x32xf32, #tpu.memory_space<vmem>>, %arg10: memref<2x1x32xf32, #tpu.memory_space<vmem>>, %arg11: memref<1x8x32xbf16, #tpu.memory_space<vmem>>) attributes {dimension_semantics = [#tpu.dimension_semantics<parallel>], iteration_bounds = array<i64: 2>, scalar_prefetch = 0 : i64, scratch_operands = 0 : i64, tpu.core_type = #tpu.core_type<tc>, window_params = [{transform_indices = @transform_0, window_bounds = array<i64: 1, 8, 8>}, {transform_indices = @transform_1, window_bounds = array<i64: 1, 1, 8>}, {pipeline_mode = #tpu.pipeline_mode<synchronous>, transform_indices = @transform_2, window_bounds = array<i64: 8, 32>}, {pipeline_mode = #tpu.pipeline_mode<synchronous>, transform_indices = @transform_3, window_bounds = array<i64: 1, 32>}, {pipeline_mode = #tpu.pipeline_mode<synchronous>, transform_indices = @transform_4, window_bounds = array<i64: 2, 32, 96>}, {pipeline_mode = #tpu.pipeline_mode<synchronous>, transform_indices = @transform_5, window_bounds = array<i64: 2, 32, 32>}, {pipeline_mode = #tpu.pipeline_mode<synchronous>, transform_indices = @transform_6, window_bounds = array<i64: 2, 32, 256>}, {pipeline_mode = #tpu.pipeline_mode<synchronous>, transform_indices = @transform_7, window_bounds = array<i64: 2, 128, 32>}, {pipeline_mode = #tpu.pipeline_mode<synchronous>, transform_indices = @transform_8, window_bounds = array<i64: 2, 1, 32>}, {pipeline_mode = #tpu.pipeline_mode<synchronous>, transform_indices = @transform_9, window_bounds = array<i64: 2, 1, 32>}, {transform_indices = @transform_10, window_bounds = array<i64: 1, 8, 32>}]} {
    %c0 = arith.constant 0 : index
    %c0_0 = arith.constant 0 : index
    %c0_1 = arith.constant 0 : index
    %0 = vector.load %arg1[%c0, %c0_0, %c0_1] : memref<1x8x8xbf16, #tpu.memory_space<vmem>>, vector<1x8x8xbf16>
    %1 = vector.shape_cast %0 : vector<1x8x8xbf16> to vector<8x8xbf16>
    %c0_2 = arith.constant 0 : index
    %c0_3 = arith.constant 0 : index
    %c0_4 = arith.constant 0 : index
    %2 = vector.load %arg2[%c0_2, %c0_3, %c0_4] : memref<1x1x8xf32, #tpu.memory_space<vmem>>, vector<1x1x8xf32>
    %3 = vector.shape_cast %2 : vector<1x1x8xf32> to vector<1x8xf32>
    %c0_5 = arith.constant 0 : index
    %c0_6 = arith.constant 0 : index
    %4 = vector.load %arg3[%c0_5, %c0_6] : memref<8x32xbf16, #tpu.memory_space<vmem>>, vector<8x32xbf16>
    %cst = arith.constant dense<0.000000e+00> : vector<8x32xf32>
    %5 = tpu.matmul %1, %4, %cst {dimension_numbers = #tpu.dot_dimension_numbers<[1], [0], [0], [1], [0, 0, 1, 1], [], []>} : vector<8x8xbf16>, vector<8x32xbf16>, vector<8x32xf32> -> vector<8x32xf32>
    %6 = arith.truncf %5 : vector<8x32xf32> to vector<8x32xbf16>
    %c0_7 = arith.constant 0 : index
    %c0_8 = arith.constant 0 : index
    %7 = vector.load %arg4[%c0_7, %c0_8] : memref<1x32xf32, #tpu.memory_space<vmem>>, vector<1x32xf32>
    %8 = arith.extf %6 : vector<8x32xbf16> to vector<8x32xf32>
    %9 = arith.mulf %8, %8 : vector<8x32xf32>
    %cst_9 = arith.constant dense<0.000000e+00> : vector<8xf32>
    %10 = vector.multi_reduction <add>, %9, %cst_9 [1] : vector<8x32xf32> to vector<8xf32>
    %11 = vector.shape_cast %10 : vector<8xf32> to vector<8x1xf32>
    %cst_10 = arith.constant 3.200000e+01 : f32
    %12 = vector.broadcast %cst_10 : f32 to vector<8x1xf32>
    %13 = arith.divf %11, %12 : vector<8x1xf32>
    %cst_11 = arith.constant 9.99999997E-7 : f32
    %14 = vector.broadcast %cst_11 : f32 to vector<8x1xf32>
    %15 = arith.addf %13, %14 : vector<8x1xf32>
    %16 = math.rsqrt %15 : vector<8x1xf32>
    %17 = vector.broadcast %16 : vector<8x1xf32> to vector<8x32xf32>
    %18 = arith.mulf %8, %17 : vector<8x32xf32>
    %19 = vector.broadcast %7 : vector<1x32xf32> to vector<8x32xf32>
    %20 = arith.mulf %18, %19 : vector<8x32xf32>
    %21 = arith.truncf %20 : vector<8x32xf32> to vector<8x32xbf16>
    %c0_12 = arith.constant 0 : index
    %c0_13 = arith.constant 0 : index
    %c0_14 = arith.constant 0 : index
    %22 = vector.load %arg9[%c0_12, %c0_13, %c0_14] : memref<2x1x32xf32, #tpu.memory_space<vmem>>, vector<1x1x32xf32>
    %23 = vector.shape_cast %22 : vector<1x1x32xf32> to vector<1x32xf32>
    %24 = arith.extf %21 : vector<8x32xbf16> to vector<8x32xf32>
    %25 = arith.mulf %24, %24 : vector<8x32xf32>
    %cst_15 = arith.constant dense<0.000000e+00> : vector<8xf32>
    %26 = vector.multi_reduction <add>, %25, %cst_15 [1] : vector<8x32xf32> to vector<8xf32>
    %27 = vector.shape_cast %26 : vector<8xf32> to vector<8x1xf32>
    %cst_16 = arith.constant 3.200000e+01 : f32
    %28 = vector.broadcast %cst_16 : f32 to vector<8x1xf32>
    %29 = arith.divf %27, %28 : vector<8x1xf32>
    %cst_17 = arith.constant 9.99999997E-7 : f32
    %30 = vector.broadcast %cst_17 : f32 to vector<8x1xf32>
    %31 = arith.addf %29, %30 : vector<8x1xf32>
    %32 = math.rsqrt %31 : vector<8x1xf32>
    %33 = vector.broadcast %32 : vector<8x1xf32> to vector<8x32xf32>
    %34 = arith.mulf %24, %33 : vector<8x32xf32>
    %35 = vector.broadcast %23 : vector<1x32xf32> to vector<8x32xf32>
    %36 = arith.mulf %34, %35 : vector<8x32xf32>
    %37 = arith.truncf %36 : vector<8x32xf32> to vector<8x32xbf16>
    %c0_18 = arith.constant 0 : index
    %c0_19 = arith.constant 0 : index
    %c0_20 = arith.constant 0 : index
    %38 = vector.load %arg5[%c0_18, %c0_19, %c0_20] : memref<2x32x96xbf16, #tpu.memory_space<vmem>>, vector<1x32x96xbf16>
    %39 = vector.shape_cast %38 : vector<1x32x96xbf16> to vector<32x96xbf16>
    %cst_21 = arith.constant dense<0.000000e+00> : vector<8x96xf32>
    %40 = tpu.matmul %37, %39, %cst_21 {dimension_numbers = #tpu.dot_dimension_numbers<[1], [0], [0], [1], [0, 0, 1, 1], [], []>} : vector<8x32xbf16>, vector<32x96xbf16>, vector<8x96xf32> -> vector<8x96xf32>
    %41 = arith.truncf %40 : vector<8x96xf32> to vector<8x96xbf16>
    %c0_22 = arith.constant 0 : index
    %c0_23 = arith.constant 0 : index
    %c0_24 = arith.constant 0 : index
    %42 = vector.load %arg6[%c0_22, %c0_23, %c0_24] : memref<2x32x32xbf16, #tpu.memory_space<vmem>>, vector<1x32x32xbf16>
    %43 = vector.shape_cast %42 : vector<1x32x32xbf16> to vector<32x32xbf16>
    %cst_25 = arith.constant 0.000000e+00 : f32
    %44 = vector.broadcast %cst_25 : f32 to vector<8x32xf32>
    %45 = vector.extract_strided_slice %41 {offsets = [0, 0], sizes = [8, 8], strides = [1, 1]} : vector<8x96xbf16> to vector<8x8xbf16>
    %46 = vector.extract_strided_slice %41 {offsets = [0, 32], sizes = [8, 8], strides = [1, 1]} : vector<8x96xbf16> to vector<8x8xbf16>
    %47 = vector.extract_strided_slice %41 {offsets = [0, 64], sizes = [8, 8], strides = [1, 1]} : vector<8x96xbf16> to vector<8x8xbf16>
    %cst_26 = arith.constant dense<0.000000e+00> : vector<8x8xf32>
    %48 = tpu.matmul %45, %46, %cst_26 {dimension_numbers = #tpu.dot_dimension_numbers<[1], [1], [0], [0], [0, 0, 1, 0], [], []>} : vector<8x8xbf16>, vector<8x8xbf16>, vector<8x8xf32> -> vector<8x8xf32>
    %cst_27 = arith.constant 0.353553385 : f32
    %49 = vector.broadcast %cst_27 : f32 to vector<8x8xf32>
    %50 = arith.mulf %48, %49 : vector<8x8xf32>
    %51 = vector.broadcast %3 : vector<1x8xf32> to vector<8x8xf32>
    %52 = arith.addf %50, %51 : vector<8x8xf32>
    %cst_28 = arith.constant dense<0xFF800000> : vector<8xf32>
    %53 = vector.multi_reduction <maximumf>, %52, %cst_28 [1] : vector<8x8xf32> to vector<8xf32>
    %54 = vector.shape_cast %53 : vector<8xf32> to vector<8x1xf32>
    %55 = vector.broadcast %54 : vector<8x1xf32> to vector<8x8xf32>
    %56 = arith.subf %52, %55 : vector<8x8xf32>
    %57 = math.exp %56 : vector<8x8xf32>
    %cst_29 = arith.constant dense<0.000000e+00> : vector<8xf32>
    %58 = vector.multi_reduction <add>, %57, %cst_29 [1] : vector<8x8xf32> to vector<8xf32>
    %59 = vector.shape_cast %58 : vector<8xf32> to vector<8x1xf32>
    %60 = vector.broadcast %59 : vector<8x1xf32> to vector<8x8xf32>
    %61 = arith.divf %57, %60 : vector<8x8xf32>
    %62 = arith.truncf %61 : vector<8x8xf32> to vector<8x8xbf16>
    %cst_30 = arith.constant dense<0.000000e+00> : vector<8x8xf32>
    %63 = tpu.matmul %62, %47, %cst_30 {dimension_numbers = #tpu.dot_dimension_numbers<[1], [0], [0], [1], [0, 0, 1, 1], [], []>} : vector<8x8xbf16>, vector<8x8xbf16>, vector<8x8xf32> -> vector<8x8xf32>
    %64 = arith.truncf %63 : vector<8x8xf32> to vector<8x8xbf16>
    %65 = vector.extract_strided_slice %43 {offsets = [0, 0], sizes = [8, 32], strides = [1, 1]} : vector<32x32xbf16> to vector<8x32xbf16>
    %cst_31 = arith.constant dense<0.000000e+00> : vector<8x32xf32>
    %66 = tpu.matmul %64, %65, %cst_31 {dimension_numbers = #tpu.dot_dimension_numbers<[1], [0], [0], [1], [0, 0, 1, 1], [], []>} : vector<8x8xbf16>, vector<8x32xbf16>, vector<8x32xf32> -> vector<8x32xf32>
    %67 = arith.addf %44, %66 : vector<8x32xf32>
    %68 = vector.extract_strided_slice %41 {offsets = [0, 8], sizes = [8, 8], strides = [1, 1]} : vector<8x96xbf16> to vector<8x8xbf16>
    %69 = vector.extract_strided_slice %41 {offsets = [0, 40], sizes = [8, 8], strides = [1, 1]} : vector<8x96xbf16> to vector<8x8xbf16>
    %70 = vector.extract_strided_slice %41 {offsets = [0, 72], sizes = [8, 8], strides = [1, 1]} : vector<8x96xbf16> to vector<8x8xbf16>
    %cst_32 = arith.constant dense<0.000000e+00> : vector<8x8xf32>
    %71 = tpu.matmul %68, %69, %cst_32 {dimension_numbers = #tpu.dot_dimension_numbers<[1], [1], [0], [0], [0, 0, 1, 0], [], []>} : vector<8x8xbf16>, vector<8x8xbf16>, vector<8x8xf32> -> vector<8x8xf32>
    %cst_33 = arith.constant 0.353553385 : f32
    %72 = vector.broadcast %cst_33 : f32 to vector<8x8xf32>
    %73 = arith.mulf %71, %72 : vector<8x8xf32>
    %74 = vector.broadcast %3 : vector<1x8xf32> to vector<8x8xf32>
    %75 = arith.addf %73, %74 : vector<8x8xf32>
    %cst_34 = arith.constant dense<0xFF800000> : vector<8xf32>
    %76 = vector.multi_reduction <maximumf>, %75, %cst_34 [1] : vector<8x8xf32> to vector<8xf32>
    %77 = vector.shape_cast %76 : vector<8xf32> to vector<8x1xf32>
    %78 = vector.broadcast %77 : vector<8x1xf32> to vector<8x8xf32>
    %79 = arith.subf %75, %78 : vector<8x8xf32>
    %80 = math.exp %79 : vector<8x8xf32>
    %cst_35 = arith.constant dense<0.000000e+00> : vector<8xf32>
    %81 = vector.multi_reduction <add>, %80, %cst_35 [1] : vector<8x8xf32> to vector<8xf32>
    %82 = vector.shape_cast %81 : vector<8xf32> to vector<8x1xf32>
    %83 = vector.broadcast %82 : vector<8x1xf32> to vector<8x8xf32>
    %84 = arith.divf %80, %83 : vector<8x8xf32>
    %85 = arith.truncf %84 : vector<8x8xf32> to vector<8x8xbf16>
    %cst_36 = arith.constant dense<0.000000e+00> : vector<8x8xf32>
    %86 = tpu.matmul %85, %70, %cst_36 {dimension_numbers = #tpu.dot_dimension_numbers<[1], [0], [0], [1], [0, 0, 1, 1], [], []>} : vector<8x8xbf16>, vector<8x8xbf16>, vector<8x8xf32> -> vector<8x8xf32>
    %87 = arith.truncf %86 : vector<8x8xf32> to vector<8x8xbf16>
    %88 = vector.extract_strided_slice %43 {offsets = [8, 0], sizes = [8, 32], strides = [1, 1]} : vector<32x32xbf16> to vector<8x32xbf16>
    %cst_37 = arith.constant dense<0.000000e+00> : vector<8x32xf32>
    %89 = tpu.matmul %87, %88, %cst_37 {dimension_numbers = #tpu.dot_dimension_numbers<[1], [0], [0], [1], [0, 0, 1, 1], [], []>} : vector<8x8xbf16>, vector<8x32xbf16>, vector<8x32xf32> -> vector<8x32xf32>
    %90 = arith.addf %67, %89 : vector<8x32xf32>
    %91 = vector.extract_strided_slice %41 {offsets = [0, 16], sizes = [8, 8], strides = [1, 1]} : vector<8x96xbf16> to vector<8x8xbf16>
    %92 = vector.extract_strided_slice %41 {offsets = [0, 48], sizes = [8, 8], strides = [1, 1]} : vector<8x96xbf16> to vector<8x8xbf16>
    %93 = vector.extract_strided_slice %41 {offsets = [0, 80], sizes = [8, 8], strides = [1, 1]} : vector<8x96xbf16> to vector<8x8xbf16>
    %cst_38 = arith.constant dense<0.000000e+00> : vector<8x8xf32>
    %94 = tpu.matmul %91, %92, %cst_38 {dimension_numbers = #tpu.dot_dimension_numbers<[1], [1], [0], [0], [0, 0, 1, 0], [], []>} : vector<8x8xbf16>, vector<8x8xbf16>, vector<8x8xf32> -> vector<8x8xf32>
    %cst_39 = arith.constant 0.353553385 : f32
    %95 = vector.broadcast %cst_39 : f32 to vector<8x8xf32>
    %96 = arith.mulf %94, %95 : vector<8x8xf32>
    %97 = vector.broadcast %3 : vector<1x8xf32> to vector<8x8xf32>
    %98 = arith.addf %96, %97 : vector<8x8xf32>
    %cst_40 = arith.constant dense<0xFF800000> : vector<8xf32>
    %99 = vector.multi_reduction <maximumf>, %98, %cst_40 [1] : vector<8x8xf32> to vector<8xf32>
    %100 = vector.shape_cast %99 : vector<8xf32> to vector<8x1xf32>
    %101 = vector.broadcast %100 : vector<8x1xf32> to vector<8x8xf32>
    %102 = arith.subf %98, %101 : vector<8x8xf32>
    %103 = math.exp %102 : vector<8x8xf32>
    %cst_41 = arith.constant dense<0.000000e+00> : vector<8xf32>
    %104 = vector.multi_reduction <add>, %103, %cst_41 [1] : vector<8x8xf32> to vector<8xf32>
    %105 = vector.shape_cast %104 : vector<8xf32> to vector<8x1xf32>
    %106 = vector.broadcast %105 : vector<8x1xf32> to vector<8x8xf32>
    %107 = arith.divf %103, %106 : vector<8x8xf32>
    %108 = arith.truncf %107 : vector<8x8xf32> to vector<8x8xbf16>
    %cst_42 = arith.constant dense<0.000000e+00> : vector<8x8xf32>
    %109 = tpu.matmul %108, %93, %cst_42 {dimension_numbers = #tpu.dot_dimension_numbers<[1], [0], [0], [1], [0, 0, 1, 1], [], []>} : vector<8x8xbf16>, vector<8x8xbf16>, vector<8x8xf32> -> vector<8x8xf32>
    %110 = arith.truncf %109 : vector<8x8xf32> to vector<8x8xbf16>
    %111 = vector.extract_strided_slice %43 {offsets = [16, 0], sizes = [8, 32], strides = [1, 1]} : vector<32x32xbf16> to vector<8x32xbf16>
    %cst_43 = arith.constant dense<0.000000e+00> : vector<8x32xf32>
    %112 = tpu.matmul %110, %111, %cst_43 {dimension_numbers = #tpu.dot_dimension_numbers<[1], [0], [0], [1], [0, 0, 1, 1], [], []>} : vector<8x8xbf16>, vector<8x32xbf16>, vector<8x32xf32> -> vector<8x32xf32>
    %113 = arith.addf %90, %112 : vector<8x32xf32>
    %114 = vector.extract_strided_slice %41 {offsets = [0, 24], sizes = [8, 8], strides = [1, 1]} : vector<8x96xbf16> to vector<8x8xbf16>
    %115 = vector.extract_strided_slice %41 {offsets = [0, 56], sizes = [8, 8], strides = [1, 1]} : vector<8x96xbf16> to vector<8x8xbf16>
    %116 = vector.extract_strided_slice %41 {offsets = [0, 88], sizes = [8, 8], strides = [1, 1]} : vector<8x96xbf16> to vector<8x8xbf16>
    %cst_44 = arith.constant dense<0.000000e+00> : vector<8x8xf32>
    %117 = tpu.matmul %114, %115, %cst_44 {dimension_numbers = #tpu.dot_dimension_numbers<[1], [1], [0], [0], [0, 0, 1, 0], [], []>} : vector<8x8xbf16>, vector<8x8xbf16>, vector<8x8xf32> -> vector<8x8xf32>
    %cst_45 = arith.constant 0.353553385 : f32
    %118 = vector.broadcast %cst_45 : f32 to vector<8x8xf32>
    %119 = arith.mulf %117, %118 : vector<8x8xf32>
    %120 = vector.broadcast %3 : vector<1x8xf32> to vector<8x8xf32>
    %121 = arith.addf %119, %120 : vector<8x8xf32>
    %cst_46 = arith.constant dense<0xFF800000> : vector<8xf32>
    %122 = vector.multi_reduction <maximumf>, %121, %cst_46 [1] : vector<8x8xf32> to vector<8xf32>
    %123 = vector.shape_cast %122 : vector<8xf32> to vector<8x1xf32>
    %124 = vector.broadcast %123 : vector<8x1xf32> to vector<8x8xf32>
    %125 = arith.subf %121, %124 : vector<8x8xf32>
    %126 = math.exp %125 : vector<8x8xf32>
    %cst_47 = arith.constant dense<0.000000e+00> : vector<8xf32>
    %127 = vector.multi_reduction <add>, %126, %cst_47 [1] : vector<8x8xf32> to vector<8xf32>
    %128 = vector.shape_cast %127 : vector<8xf32> to vector<8x1xf32>
    %129 = vector.broadcast %128 : vector<8x1xf32> to vector<8x8xf32>
    %130 = arith.divf %126, %129 : vector<8x8xf32>
    %131 = arith.truncf %130 : vector<8x8xf32> to vector<8x8xbf16>
    %cst_48 = arith.constant dense<0.000000e+00> : vector<8x8xf32>
    %132 = tpu.matmul %131, %116, %cst_48 {dimension_numbers = #tpu.dot_dimension_numbers<[1], [0], [0], [1], [0, 0, 1, 1], [], []>} : vector<8x8xbf16>, vector<8x8xbf16>, vector<8x8xf32> -> vector<8x8xf32>
    %133 = arith.truncf %132 : vector<8x8xf32> to vector<8x8xbf16>
    %134 = vector.extract_strided_slice %43 {offsets = [24, 0], sizes = [8, 32], strides = [1, 1]} : vector<32x32xbf16> to vector<8x32xbf16>
    %cst_49 = arith.constant dense<0.000000e+00> : vector<8x32xf32>
    %135 = tpu.matmul %133, %134, %cst_49 {dimension_numbers = #tpu.dot_dimension_numbers<[1], [0], [0], [1], [0, 0, 1, 1], [], []>} : vector<8x8xbf16>, vector<8x32xbf16>, vector<8x32xf32> -> vector<8x32xf32>
    %136 = arith.addf %113, %135 : vector<8x32xf32>
    %137 = arith.extf %21 : vector<8x32xbf16> to vector<8x32xf32>
    %138 = arith.addf %137, %136 : vector<8x32xf32>
    %139 = arith.truncf %138 : vector<8x32xf32> to vector<8x32xbf16>
    %c0_50 = arith.constant 0 : index
    %c0_51 = arith.constant 0 : index
    %c0_52 = arith.constant 0 : index
    %140 = vector.load %arg10[%c0_50, %c0_51, %c0_52] : memref<2x1x32xf32, #tpu.memory_space<vmem>>, vector<1x1x32xf32>
    %141 = vector.shape_cast %140 : vector<1x1x32xf32> to vector<1x32xf32>
    %142 = arith.extf %139 : vector<8x32xbf16> to vector<8x32xf32>
    %143 = arith.mulf %142, %142 : vector<8x32xf32>
    %cst_53 = arith.constant dense<0.000000e+00> : vector<8xf32>
    %144 = vector.multi_reduction <add>, %143, %cst_53 [1] : vector<8x32xf32> to vector<8xf32>
    %145 = vector.shape_cast %144 : vector<8xf32> to vector<8x1xf32>
    %cst_54 = arith.constant 3.200000e+01 : f32
    %146 = vector.broadcast %cst_54 : f32 to vector<8x1xf32>
    %147 = arith.divf %145, %146 : vector<8x1xf32>
    %cst_55 = arith.constant 9.99999997E-7 : f32
    %148 = vector.broadcast %cst_55 : f32 to vector<8x1xf32>
    %149 = arith.addf %147, %148 : vector<8x1xf32>
    %150 = math.rsqrt %149 : vector<8x1xf32>
    %151 = vector.broadcast %150 : vector<8x1xf32> to vector<8x32xf32>
    %152 = arith.mulf %142, %151 : vector<8x32xf32>
    %153 = vector.broadcast %141 : vector<1x32xf32> to vector<8x32xf32>
    %154 = arith.mulf %152, %153 : vector<8x32xf32>
    %155 = arith.truncf %154 : vector<8x32xf32> to vector<8x32xbf16>
    %c0_56 = arith.constant 0 : index
    %c0_57 = arith.constant 0 : index
    %c0_58 = arith.constant 0 : index
    %156 = vector.load %arg7[%c0_56, %c0_57, %c0_58] : memref<2x32x256xbf16, #tpu.memory_space<vmem>>, vector<1x32x256xbf16>
    %157 = vector.shape_cast %156 : vector<1x32x256xbf16> to vector<32x256xbf16>
    %cst_59 = arith.constant dense<0.000000e+00> : vector<8x256xf32>
    %158 = tpu.matmul %155, %157, %cst_59 {dimension_numbers = #tpu.dot_dimension_numbers<[1], [0], [0], [1], [0, 0, 1, 1], [], []>} : vector<8x32xbf16>, vector<32x256xbf16>, vector<8x256xf32> -> vector<8x256xf32>
    %159 = arith.truncf %158 : vector<8x256xf32> to vector<8x256xbf16>
    %160 = vector.extract_strided_slice %159 {offsets = [0, 0], sizes = [8, 128], strides = [1, 1]} : vector<8x256xbf16> to vector<8x128xbf16>
    %161 = arith.extf %160 : vector<8x128xbf16> to vector<8x128xf32>
    %162 = vector.extract_strided_slice %159 {offsets = [0, 128], sizes = [8, 128], strides = [1, 1]} : vector<8x256xbf16> to vector<8x128xbf16>
    %163 = arith.extf %162 : vector<8x128xbf16> to vector<8x128xf32>
    %164 = arith.negf %163 : vector<8x128xf32>
    %165 = math.exp %164 : vector<8x128xf32>
    %cst_60 = arith.constant 1.000000e+00 : f32
    %166 = vector.broadcast %cst_60 : f32 to vector<8x128xf32>
    %167 = arith.addf %166, %165 : vector<8x128xf32>
    %168 = arith.divf %166, %167 : vector<8x128xf32>
    %169 = arith.mulf %163, %168 : vector<8x128xf32>
    %170 = arith.mulf %161, %169 : vector<8x128xf32>
    %171 = arith.truncf %170 : vector<8x128xf32> to vector<8x128xbf16>
    %c0_61 = arith.constant 0 : index
    %c0_62 = arith.constant 0 : index
    %c0_63 = arith.constant 0 : index
    %172 = vector.load %arg8[%c0_61, %c0_62, %c0_63] : memref<2x128x32xbf16, #tpu.memory_space<vmem>>, vector<1x128x32xbf16>
    %173 = vector.shape_cast %172 : vector<1x128x32xbf16> to vector<128x32xbf16>
    %cst_64 = arith.constant dense<0.000000e+00> : vector<8x32xf32>
    %174 = tpu.matmul %171, %173, %cst_64 {dimension_numbers = #tpu.dot_dimension_numbers<[1], [0], [0], [1], [0, 0, 1, 1], [], []>} : vector<8x128xbf16>, vector<128x32xbf16>, vector<8x32xf32> -> vector<8x32xf32>
    %175 = arith.extf %139 : vector<8x32xbf16> to vector<8x32xf32>
    %176 = arith.addf %175, %174 : vector<8x32xf32>
    %177 = arith.truncf %176 : vector<8x32xf32> to vector<8x32xbf16>
    %c1 = arith.constant 1 : index
    %c0_65 = arith.constant 0 : index
    %c0_66 = arith.constant 0 : index
    %178 = vector.load %arg9[%c1, %c0_65, %c0_66] : memref<2x1x32xf32, #tpu.memory_space<vmem>>, vector<1x1x32xf32>
    %179 = vector.shape_cast %178 : vector<1x1x32xf32> to vector<1x32xf32>
    %180 = arith.extf %177 : vector<8x32xbf16> to vector<8x32xf32>
    %181 = arith.mulf %180, %180 : vector<8x32xf32>
    %cst_67 = arith.constant dense<0.000000e+00> : vector<8xf32>
    %182 = vector.multi_reduction <add>, %181, %cst_67 [1] : vector<8x32xf32> to vector<8xf32>
    %183 = vector.shape_cast %182 : vector<8xf32> to vector<8x1xf32>
    %cst_68 = arith.constant 3.200000e+01 : f32
    %184 = vector.broadcast %cst_68 : f32 to vector<8x1xf32>
    %185 = arith.divf %183, %184 : vector<8x1xf32>
    %cst_69 = arith.constant 9.99999997E-7 : f32
    %186 = vector.broadcast %cst_69 : f32 to vector<8x1xf32>
    %187 = arith.addf %185, %186 : vector<8x1xf32>
    %188 = math.rsqrt %187 : vector<8x1xf32>
    %189 = vector.broadcast %188 : vector<8x1xf32> to vector<8x32xf32>
    %190 = arith.mulf %180, %189 : vector<8x32xf32>
    %191 = vector.broadcast %179 : vector<1x32xf32> to vector<8x32xf32>
    %192 = arith.mulf %190, %191 : vector<8x32xf32>
    %193 = arith.truncf %192 : vector<8x32xf32> to vector<8x32xbf16>
    %c1_70 = arith.constant 1 : index
    %c0_71 = arith.constant 0 : index
    %c0_72 = arith.constant 0 : index
    %194 = vector.load %arg5[%c1_70, %c0_71, %c0_72] : memref<2x32x96xbf16, #tpu.memory_space<vmem>>, vector<1x32x96xbf16>
    %195 = vector.shape_cast %194 : vector<1x32x96xbf16> to vector<32x96xbf16>
    %cst_73 = arith.constant dense<0.000000e+00> : vector<8x96xf32>
    %196 = tpu.matmul %193, %195, %cst_73 {dimension_numbers = #tpu.dot_dimension_numbers<[1], [0], [0], [1], [0, 0, 1, 1], [], []>} : vector<8x32xbf16>, vector<32x96xbf16>, vector<8x96xf32> -> vector<8x96xf32>
    %197 = arith.truncf %196 : vector<8x96xf32> to vector<8x96xbf16>
    %c1_74 = arith.constant 1 : index
    %c0_75 = arith.constant 0 : index
    %c0_76 = arith.constant 0 : index
    %198 = vector.load %arg6[%c1_74, %c0_75, %c0_76] : memref<2x32x32xbf16, #tpu.memory_space<vmem>>, vector<1x32x32xbf16>
    %199 = vector.shape_cast %198 : vector<1x32x32xbf16> to vector<32x32xbf16>
    %cst_77 = arith.constant 0.000000e+00 : f32
    %200 = vector.broadcast %cst_77 : f32 to vector<8x32xf32>
    %201 = vector.extract_strided_slice %197 {offsets = [0, 0], sizes = [8, 8], strides = [1, 1]} : vector<8x96xbf16> to vector<8x8xbf16>
    %202 = vector.extract_strided_slice %197 {offsets = [0, 32], sizes = [8, 8], strides = [1, 1]} : vector<8x96xbf16> to vector<8x8xbf16>
    %203 = vector.extract_strided_slice %197 {offsets = [0, 64], sizes = [8, 8], strides = [1, 1]} : vector<8x96xbf16> to vector<8x8xbf16>
    %cst_78 = arith.constant dense<0.000000e+00> : vector<8x8xf32>
    %204 = tpu.matmul %201, %202, %cst_78 {dimension_numbers = #tpu.dot_dimension_numbers<[1], [1], [0], [0], [0, 0, 1, 0], [], []>} : vector<8x8xbf16>, vector<8x8xbf16>, vector<8x8xf32> -> vector<8x8xf32>
    %cst_79 = arith.constant 0.353553385 : f32
    %205 = vector.broadcast %cst_79 : f32 to vector<8x8xf32>
    %206 = arith.mulf %204, %205 : vector<8x8xf32>
    %207 = vector.broadcast %3 : vector<1x8xf32> to vector<8x8xf32>
    %208 = arith.addf %206, %207 : vector<8x8xf32>
    %cst_80 = arith.constant dense<0xFF800000> : vector<8xf32>
    %209 = vector.multi_reduction <maximumf>, %208, %cst_80 [1] : vector<8x8xf32> to vector<8xf32>
    %210 = vector.shape_cast %209 : vector<8xf32> to vector<8x1xf32>
    %211 = vector.broadcast %210 : vector<8x1xf32> to vector<8x8xf32>
    %212 = arith.subf %208, %211 : vector<8x8xf32>
    %213 = math.exp %212 : vector<8x8xf32>
    %cst_81 = arith.constant dense<0.000000e+00> : vector<8xf32>
    %214 = vector.multi_reduction <add>, %213, %cst_81 [1] : vector<8x8xf32> to vector<8xf32>
    %215 = vector.shape_cast %214 : vector<8xf32> to vector<8x1xf32>
    %216 = vector.broadcast %215 : vector<8x1xf32> to vector<8x8xf32>
    %217 = arith.divf %213, %216 : vector<8x8xf32>
    %218 = arith.truncf %217 : vector<8x8xf32> to vector<8x8xbf16>
    %cst_82 = arith.constant dense<0.000000e+00> : vector<8x8xf32>
    %219 = tpu.matmul %218, %203, %cst_82 {dimension_numbers = #tpu.dot_dimension_numbers<[1], [0], [0], [1], [0, 0, 1, 1], [], []>} : vector<8x8xbf16>, vector<8x8xbf16>, vector<8x8xf32> -> vector<8x8xf32>
    %220 = arith.truncf %219 : vector<8x8xf32> to vector<8x8xbf16>
    %221 = vector.extract_strided_slice %199 {offsets = [0, 0], sizes = [8, 32], strides = [1, 1]} : vector<32x32xbf16> to vector<8x32xbf16>
    %cst_83 = arith.constant dense<0.000000e+00> : vector<8x32xf32>
    %222 = tpu.matmul %220, %221, %cst_83 {dimension_numbers = #tpu.dot_dimension_numbers<[1], [0], [0], [1], [0, 0, 1, 1], [], []>} : vector<8x8xbf16>, vector<8x32xbf16>, vector<8x32xf32> -> vector<8x32xf32>
    %223 = arith.addf %200, %222 : vector<8x32xf32>
    %224 = vector.extract_strided_slice %197 {offsets = [0, 8], sizes = [8, 8], strides = [1, 1]} : vector<8x96xbf16> to vector<8x8xbf16>
    %225 = vector.extract_strided_slice %197 {offsets = [0, 40], sizes = [8, 8], strides = [1, 1]} : vector<8x96xbf16> to vector<8x8xbf16>
    %226 = vector.extract_strided_slice %197 {offsets = [0, 72], sizes = [8, 8], strides = [1, 1]} : vector<8x96xbf16> to vector<8x8xbf16>
    %cst_84 = arith.constant dense<0.000000e+00> : vector<8x8xf32>
    %227 = tpu.matmul %224, %225, %cst_84 {dimension_numbers = #tpu.dot_dimension_numbers<[1], [1], [0], [0], [0, 0, 1, 0], [], []>} : vector<8x8xbf16>, vector<8x8xbf16>, vector<8x8xf32> -> vector<8x8xf32>
    %cst_85 = arith.constant 0.353553385 : f32
    %228 = vector.broadcast %cst_85 : f32 to vector<8x8xf32>
    %229 = arith.mulf %227, %228 : vector<8x8xf32>
    %230 = vector.broadcast %3 : vector<1x8xf32> to vector<8x8xf32>
    %231 = arith.addf %229, %230 : vector<8x8xf32>
    %cst_86 = arith.constant dense<0xFF800000> : vector<8xf32>
    %232 = vector.multi_reduction <maximumf>, %231, %cst_86 [1] : vector<8x8xf32> to vector<8xf32>
    %233 = vector.shape_cast %232 : vector<8xf32> to vector<8x1xf32>
    %234 = vector.broadcast %233 : vector<8x1xf32> to vector<8x8xf32>
    %235 = arith.subf %231, %234 : vector<8x8xf32>
    %236 = math.exp %235 : vector<8x8xf32>
    %cst_87 = arith.constant dense<0.000000e+00> : vector<8xf32>
    %237 = vector.multi_reduction <add>, %236, %cst_87 [1] : vector<8x8xf32> to vector<8xf32>
    %238 = vector.shape_cast %237 : vector<8xf32> to vector<8x1xf32>
    %239 = vector.broadcast %238 : vector<8x1xf32> to vector<8x8xf32>
    %240 = arith.divf %236, %239 : vector<8x8xf32>
    %241 = arith.truncf %240 : vector<8x8xf32> to vector<8x8xbf16>
    %cst_88 = arith.constant dense<0.000000e+00> : vector<8x8xf32>
    %242 = tpu.matmul %241, %226, %cst_88 {dimension_numbers = #tpu.dot_dimension_numbers<[1], [0], [0], [1], [0, 0, 1, 1], [], []>} : vector<8x8xbf16>, vector<8x8xbf16>, vector<8x8xf32> -> vector<8x8xf32>
    %243 = arith.truncf %242 : vector<8x8xf32> to vector<8x8xbf16>
    %244 = vector.extract_strided_slice %199 {offsets = [8, 0], sizes = [8, 32], strides = [1, 1]} : vector<32x32xbf16> to vector<8x32xbf16>
    %cst_89 = arith.constant dense<0.000000e+00> : vector<8x32xf32>
    %245 = tpu.matmul %243, %244, %cst_89 {dimension_numbers = #tpu.dot_dimension_numbers<[1], [0], [0], [1], [0, 0, 1, 1], [], []>} : vector<8x8xbf16>, vector<8x32xbf16>, vector<8x32xf32> -> vector<8x32xf32>
    %246 = arith.addf %223, %245 : vector<8x32xf32>
    %247 = vector.extract_strided_slice %197 {offsets = [0, 16], sizes = [8, 8], strides = [1, 1]} : vector<8x96xbf16> to vector<8x8xbf16>
    %248 = vector.extract_strided_slice %197 {offsets = [0, 48], sizes = [8, 8], strides = [1, 1]} : vector<8x96xbf16> to vector<8x8xbf16>
    %249 = vector.extract_strided_slice %197 {offsets = [0, 80], sizes = [8, 8], strides = [1, 1]} : vector<8x96xbf16> to vector<8x8xbf16>
    %cst_90 = arith.constant dense<0.000000e+00> : vector<8x8xf32>
    %250 = tpu.matmul %247, %248, %cst_90 {dimension_numbers = #tpu.dot_dimension_numbers<[1], [1], [0], [0], [0, 0, 1, 0], [], []>} : vector<8x8xbf16>, vector<8x8xbf16>, vector<8x8xf32> -> vector<8x8xf32>
    %cst_91 = arith.constant 0.353553385 : f32
    %251 = vector.broadcast %cst_91 : f32 to vector<8x8xf32>
    %252 = arith.mulf %250, %251 : vector<8x8xf32>
    %253 = vector.broadcast %3 : vector<1x8xf32> to vector<8x8xf32>
    %254 = arith.addf %252, %253 : vector<8x8xf32>
    %cst_92 = arith.constant dense<0xFF800000> : vector<8xf32>
    %255 = vector.multi_reduction <maximumf>, %254, %cst_92 [1] : vector<8x8xf32> to vector<8xf32>
    %256 = vector.shape_cast %255 : vector<8xf32> to vector<8x1xf32>
    %257 = vector.broadcast %256 : vector<8x1xf32> to vector<8x8xf32>
    %258 = arith.subf %254, %257 : vector<8x8xf32>
    %259 = math.exp %258 : vector<8x8xf32>
    %cst_93 = arith.constant dense<0.000000e+00> : vector<8xf32>
    %260 = vector.multi_reduction <add>, %259, %cst_93 [1] : vector<8x8xf32> to vector<8xf32>
    %261 = vector.shape_cast %260 : vector<8xf32> to vector<8x1xf32>
    %262 = vector.broadcast %261 : vector<8x1xf32> to vector<8x8xf32>
    %263 = arith.divf %259, %262 : vector<8x8xf32>
    %264 = arith.truncf %263 : vector<8x8xf32> to vector<8x8xbf16>
    %cst_94 = arith.constant dense<0.000000e+00> : vector<8x8xf32>
    %265 = tpu.matmul %264, %249, %cst_94 {dimension_numbers = #tpu.dot_dimension_numbers<[1], [0], [0], [1], [0, 0, 1, 1], [], []>} : vector<8x8xbf16>, vector<8x8xbf16>, vector<8x8xf32> -> vector<8x8xf32>
    %266 = arith.truncf %265 : vector<8x8xf32> to vector<8x8xbf16>
    %267 = vector.extract_strided_slice %199 {offsets = [16, 0], sizes = [8, 32], strides = [1, 1]} : vector<32x32xbf16> to vector<8x32xbf16>
    %cst_95 = arith.constant dense<0.000000e+00> : vector<8x32xf32>
    %268 = tpu.matmul %266, %267, %cst_95 {dimension_numbers = #tpu.dot_dimension_numbers<[1], [0], [0], [1], [0, 0, 1, 1], [], []>} : vector<8x8xbf16>, vector<8x32xbf16>, vector<8x32xf32> -> vector<8x32xf32>
    %269 = arith.addf %246, %268 : vector<8x32xf32>
    %270 = vector.extract_strided_slice %197 {offsets = [0, 24], sizes = [8, 8], strides = [1, 1]} : vector<8x96xbf16> to vector<8x8xbf16>
    %271 = vector.extract_strided_slice %197 {offsets = [0, 56], sizes = [8, 8], strides = [1, 1]} : vector<8x96xbf16> to vector<8x8xbf16>
    %272 = vector.extract_strided_slice %197 {offsets = [0, 88], sizes = [8, 8], strides = [1, 1]} : vector<8x96xbf16> to vector<8x8xbf16>
    %cst_96 = arith.constant dense<0.000000e+00> : vector<8x8xf32>
    %273 = tpu.matmul %270, %271, %cst_96 {dimension_numbers = #tpu.dot_dimension_numbers<[1], [1], [0], [0], [0, 0, 1, 0], [], []>} : vector<8x8xbf16>, vector<8x8xbf16>, vector<8x8xf32> -> vector<8x8xf32>
    %cst_97 = arith.constant 0.353553385 : f32
    %274 = vector.broadcast %cst_97 : f32 to vector<8x8xf32>
    %275 = arith.mulf %273, %274 : vector<8x8xf32>
    %276 = vector.broadcast %3 : vector<1x8xf32> to vector<8x8xf32>
    %277 = arith.addf %275, %276 : vector<8x8xf32>
    %cst_98 = arith.constant dense<0xFF800000> : vector<8xf32>
    %278 = vector.multi_reduction <maximumf>, %277, %cst_98 [1] : vector<8x8xf32> to vector<8xf32>
    %279 = vector.shape_cast %278 : vector<8xf32> to vector<8x1xf32>
    %280 = vector.broadcast %279 : vector<8x1xf32> to vector<8x8xf32>
    %281 = arith.subf %277, %280 : vector<8x8xf32>
    %282 = math.exp %281 : vector<8x8xf32>
    %cst_99 = arith.constant dense<0.000000e+00> : vector<8xf32>
    %283 = vector.multi_reduction <add>, %282, %cst_99 [1] : vector<8x8xf32> to vector<8xf32>
    %284 = vector.shape_cast %283 : vector<8xf32> to vector<8x1xf32>
    %285 = vector.broadcast %284 : vector<8x1xf32> to vector<8x8xf32>
    %286 = arith.divf %282, %285 : vector<8x8xf32>
    %287 = arith.truncf %286 : vector<8x8xf32> to vector<8x8xbf16>
    %cst_100 = arith.constant dense<0.000000e+00> : vector<8x8xf32>
    %288 = tpu.matmul %287, %272, %cst_100 {dimension_numbers = #tpu.dot_dimension_numbers<[1], [0], [0], [1], [0, 0, 1, 1], [], []>} : vector<8x8xbf16>, vector<8x8xbf16>, vector<8x8xf32> -> vector<8x8xf32>
    %289 = arith.truncf %288 : vector<8x8xf32> to vector<8x8xbf16>
    %290 = vector.extract_strided_slice %199 {offsets = [24, 0], sizes = [8, 32], strides = [1, 1]} : vector<32x32xbf16> to vector<8x32xbf16>
    %cst_101 = arith.constant dense<0.000000e+00> : vector<8x32xf32>
    %291 = tpu.matmul %289, %290, %cst_101 {dimension_numbers = #tpu.dot_dimension_numbers<[1], [0], [0], [1], [0, 0, 1, 1], [], []>} : vector<8x8xbf16>, vector<8x32xbf16>, vector<8x32xf32> -> vector<8x32xf32>
    %292 = arith.addf %269, %291 : vector<8x32xf32>
    %293 = arith.extf %177 : vector<8x32xbf16> to vector<8x32xf32>
    %294 = arith.addf %293, %292 : vector<8x32xf32>
    %295 = arith.truncf %294 : vector<8x32xf32> to vector<8x32xbf16>
    %c1_102 = arith.constant 1 : index
    %c0_103 = arith.constant 0 : index
    %c0_104 = arith.constant 0 : index
    %296 = vector.load %arg10[%c1_102, %c0_103, %c0_104] : memref<2x1x32xf32, #tpu.memory_space<vmem>>, vector<1x1x32xf32>
    %297 = vector.shape_cast %296 : vector<1x1x32xf32> to vector<1x32xf32>
    %298 = arith.extf %295 : vector<8x32xbf16> to vector<8x32xf32>
    %299 = arith.mulf %298, %298 : vector<8x32xf32>
    %cst_105 = arith.constant dense<0.000000e+00> : vector<8xf32>
    %300 = vector.multi_reduction <add>, %299, %cst_105 [1] : vector<8x32xf32> to vector<8xf32>
    %301 = vector.shape_cast %300 : vector<8xf32> to vector<8x1xf32>
    %cst_106 = arith.constant 3.200000e+01 : f32
    %302 = vector.broadcast %cst_106 : f32 to vector<8x1xf32>
    %303 = arith.divf %301, %302 : vector<8x1xf32>
    %cst_107 = arith.constant 9.99999997E-7 : f32
    %304 = vector.broadcast %cst_107 : f32 to vector<8x1xf32>
    %305 = arith.addf %303, %304 : vector<8x1xf32>
    %306 = math.rsqrt %305 : vector<8x1xf32>
    %307 = vector.broadcast %306 : vector<8x1xf32> to vector<8x32xf32>
    %308 = arith.mulf %298, %307 : vector<8x32xf32>
    %309 = vector.broadcast %297 : vector<1x32xf32> to vector<8x32xf32>
    %310 = arith.mulf %308, %309 : vector<8x32xf32>
    %311 = arith.truncf %310 : vector<8x32xf32> to vector<8x32xbf16>
    %c1_108 = arith.constant 1 : index
    %c0_109 = arith.constant 0 : index
    %c0_110 = arith.constant 0 : index
    %312 = vector.load %arg7[%c1_108, %c0_109, %c0_110] : memref<2x32x256xbf16, #tpu.memory_space<vmem>>, vector<1x32x256xbf16>
    %313 = vector.shape_cast %312 : vector<1x32x256xbf16> to vector<32x256xbf16>
    %cst_111 = arith.constant dense<0.000000e+00> : vector<8x256xf32>
    %314 = tpu.matmul %311, %313, %cst_111 {dimension_numbers = #tpu.dot_dimension_numbers<[1], [0], [0], [1], [0, 0, 1, 1], [], []>} : vector<8x32xbf16>, vector<32x256xbf16>, vector<8x256xf32> -> vector<8x256xf32>
    %315 = arith.truncf %314 : vector<8x256xf32> to vector<8x256xbf16>
    %316 = vector.extract_strided_slice %315 {offsets = [0, 0], sizes = [8, 128], strides = [1, 1]} : vector<8x256xbf16> to vector<8x128xbf16>
    %317 = arith.extf %316 : vector<8x128xbf16> to vector<8x128xf32>
    %318 = vector.extract_strided_slice %315 {offsets = [0, 128], sizes = [8, 128], strides = [1, 1]} : vector<8x256xbf16> to vector<8x128xbf16>
    %319 = arith.extf %318 : vector<8x128xbf16> to vector<8x128xf32>
    %320 = arith.negf %319 : vector<8x128xf32>
    %321 = math.exp %320 : vector<8x128xf32>
    %cst_112 = arith.constant 1.000000e+00 : f32
    %322 = vector.broadcast %cst_112 : f32 to vector<8x128xf32>
    %323 = arith.addf %322, %321 : vector<8x128xf32>
    %324 = arith.divf %322, %323 : vector<8x128xf32>
    %325 = arith.mulf %319, %324 : vector<8x128xf32>
    %326 = arith.mulf %317, %325 : vector<8x128xf32>
    %327 = arith.truncf %326 : vector<8x128xf32> to vector<8x128xbf16>
    %c1_113 = arith.constant 1 : index
    %c0_114 = arith.constant 0 : index
    %c0_115 = arith.constant 0 : index
    %328 = vector.load %arg8[%c1_113, %c0_114, %c0_115] : memref<2x128x32xbf16, #tpu.memory_space<vmem>>, vector<1x128x32xbf16>
    %329 = vector.shape_cast %328 : vector<1x128x32xbf16> to vector<128x32xbf16>
    %cst_116 = arith.constant dense<0.000000e+00> : vector<8x32xf32>
    %330 = tpu.matmul %327, %329, %cst_116 {dimension_numbers = #tpu.dot_dimension_numbers<[1], [0], [0], [1], [0, 0, 1, 1], [], []>} : vector<8x128xbf16>, vector<128x32xbf16>, vector<8x32xf32> -> vector<8x32xf32>
    %331 = arith.extf %295 : vector<8x32xbf16> to vector<8x32xf32>
    %332 = arith.addf %331, %330 : vector<8x32xf32>
    %333 = arith.truncf %332 : vector<8x32xf32> to vector<8x32xbf16>
    %c0_117 = arith.constant 0 : index
    %c0_118 = arith.constant 0 : index
    %c0_119 = arith.constant 0 : index
    %334 = vector.load %arg11[%c0_117, %c0_118, %c0_119] : memref<1x8x32xbf16, #tpu.memory_space<vmem>>, vector<1x8x32xbf16>
    %335 = vector.shape_cast %334 : vector<1x8x32xbf16> to vector<8x32xbf16>
    %336 = vector.shape_cast %333 : vector<8x32xbf16> to vector<1x8x32xbf16>
    tpu.vector_store %arg11[%c0_117, %c0_118, %c0_119], %336 {strides = array<i32>} : memref<1x8x32xbf16, #tpu.memory_space<vmem>>, vector<1x8x32xbf16>,
    return
  }
  func.func @transform_0(%arg0: i32) -> (i32, i32, i32) {
    %c0_i32 = arith.constant 0 : i32
    %c0_i32_0 = arith.constant 0 : i32
    %c0_i32_1 = arith.constant 0 : i32
    return %arg0, %c0_i32, %c0_i32_0 : i32, i32, i32
  }
  func.func @transform_1(%arg0: i32) -> (i32, i32, i32) {
    %c0_i32 = arith.constant 0 : i32
    %c0_i32_0 = arith.constant 0 : i32
    %c0_i32_1 = arith.constant 0 : i32
    return %arg0, %c0_i32, %c0_i32_0 : i32, i32, i32
  }
  func.func @transform_2(%arg0: i32) -> (i32, i32) {
    %c0_i32 = arith.constant 0 : i32
    %c0_i32_0 = arith.constant 0 : i32
    %c0_i32_1 = arith.constant 0 : i32
    return %c0_i32, %c0_i32_0 : i32, i32
  }
  func.func @transform_3(%arg0: i32) -> (i32, i32) {
    %c0_i32 = arith.constant 0 : i32
    %c0_i32_0 = arith.constant 0 : i32
    %c0_i32_1 = arith.constant 0 : i32
    return %c0_i32, %c0_i32_0 : i32, i32
  }
  func.func @transform_4(%arg0: i32) -> (i32, i32, i32) {
    %c0_i32 = arith.constant 0 : i32
    %c0_i32_0 = arith.constant 0 : i32
    %c0_i32_1 = arith.constant 0 : i32
    %c0_i32_2 = arith.constant 0 : i32
    return %c0_i32, %c0_i32_0, %c0_i32_1 : i32, i32, i32
  }
  func.func @transform_5(%arg0: i32) -> (i32, i32, i32) {
    %c0_i32 = arith.constant 0 : i32
    %c0_i32_0 = arith.constant 0 : i32
    %c0_i32_1 = arith.constant 0 : i32
    %c0_i32_2 = arith.constant 0 : i32
    return %c0_i32, %c0_i32_0, %c0_i32_1 : i32, i32, i32
  }
  func.func @transform_6(%arg0: i32) -> (i32, i32, i32) {
    %c0_i32 = arith.constant 0 : i32
    %c0_i32_0 = arith.constant 0 : i32
    %c0_i32_1 = arith.constant 0 : i32
    %c0_i32_2 = arith.constant 0 : i32
    return %c0_i32, %c0_i32_0, %c0_i32_1 : i32, i32, i32
  }
  func.func @transform_7(%arg0: i32) -> (i32, i32, i32) {
    %c0_i32 = arith.constant 0 : i32
    %c0_i32_0 = arith.constant 0 : i32
    %c0_i32_1 = arith.constant 0 : i32
    %c0_i32_2 = arith.constant 0 : i32
    return %c0_i32, %c0_i32_0, %c0_i32_1 : i32, i32, i32
  }
  func.func @transform_8(%arg0: i32) -> (i32, i32, i32) {
    %c0_i32 = arith.constant 0 : i32
    %c0_i32_0 = arith.constant 0 : i32
    %c0_i32_1 = arith.constant 0 : i32
    %c0_i32_2 = arith.constant 0 : i32
    return %c0_i32, %c0_i32_0, %c0_i32_1 : i32, i32, i32
  }
  func.func @transform_9(%arg0: i32) -> (i32, i32, i32) {
    %c0_i32 = arith.constant 0 : i32
    %c0_i32_0 = arith.constant 0 : i32
    %c0_i32_1 = arith.constant 0 : i32
    %c0_i32_2 = arith.constant 0 : i32
    return %c0_i32, %c0_i32_0, %c0_i32_1 : i32, i32, i32
  }
  func.func @transform_10(%arg0: i32) -> (i32, i32, i32) {
    %c0_i32 = arith.constant 0 : i32
    %c0_i32_0 = arith.constant 0 : i32
    %c0_i32_1 = arith.constant 0 : i32
    return %arg0, %c0_i32, %c0_i32_0 : i32, i32, i32
  }
}

</mosaic_0001>

<llo_original>
// kernel: tpu_custom_call.1
$region0: #{tpu_custom_call.1}
  #allocation0 [shape = 'u32[]', space=smem, size = 0x4, offset = 0x4, fixed_abs, tag = 'smem constant byte address 0x4 - core index']
  #allocation1 [shape = 'u32[144,128]{1,0:T(1,128)}', space=vmem, size = 0x12000, scoped, tag = 'internal scratch']
  %s0 = inlined_call_operand.vmem [shape: bf16[2,8,8], index: 0, kind: input, shape index: {}]
  %s1 = inlined_call_operand.vmem [shape: f32[2,1,8], index: 1, kind: input, shape index: {}]
  %s2 = inlined_call_operand.vmem [shape: bf16[8,32], index: 2, kind: input, shape index: {}]
  %s3 = inlined_call_operand.vmem [shape: f32[1,32], index: 3, kind: input, shape index: {}]
  %s4 = inlined_call_operand.vmem [shape: bf16[2,32,96], index: 4, kind: input, shape index: {}]
  %s5 = inlined_call_operand.vmem [shape: bf16[2,32,32], index: 5, kind: input, shape index: {}]
  %s6 = inlined_call_operand.vmem [shape: bf16[2,32,256], index: 6, kind: input, shape index: {}]
  %s7 = inlined_call_operand.vmem [shape: bf16[2,128,32], index: 7, kind: input, shape index: {}]
  %s8 = inlined_call_operand.vmem [shape: f32[2,1,32], index: 8, kind: input, shape index: {}]
  %s9 = inlined_call_operand.vmem [shape: f32[2,1,32], index: 9, kind: input, shape index: {}]
  %s10 = inlined_call_operand.hbm [shape: bf16[2,8,32], index: 10, kind: output, shape index: {}]
  %s11 = sld [smem:[#allocation0]]
  $region73: #{tpu_custom_call.1} parent=0
    _
  %s13 = ssub.s32 1, %s11
  %s14 = scalar_select 0, %s13, %s11
  $region1: #{tpu_custom_call.1} parent=0
    #allocation2 [shape = 'u8[4096]{0}', space=vmem, size = 0x1000, scoped, tag = 'output window, operand 0']
    #allocation3 [shape = 's32[2]{0}', space=sflag, size = 0x8, scoped, tag = 'scoped memory for tpu_custom_call.1']
    %15 = vsyncpa [#allocation3], 0
    %s16 = scalar_lea.sflag [#allocation3], 1
    %17 = vsyncpa %s16, 0
    loop: start=0, step=1, limit=4
    $region2: #{tpu_custom_call.1} parent=1 // loop_pre_header
      _
    $region3: #{tpu_custom_call.1} parent=1 // loop_header
      %s19 = sphi 0, %s23
      %p20 = scmp.ge.s32.totalorder %s19, 4
      %s29 = sphi 0, %s31
      %s32 = sphi 0, %s29
      %s33 = sphi 0, %s32
      %s49 = sphi 0, %s33
      %s55 = sphi 0, %s57
      %s58 = sphi 0, %s55
      %s59 = sphi 0, %s58
      %s75 = sphi 0, %s59
      %s79 = sphi 0, %s79
      %s81 = sphi 0, %s79
      %s82 = sphi 0, %s81
      %s96 = sphi 0, %s82
      %s100 = sphi 0, %s100
      %s102 = sphi 0, %s100
      %s103 = sphi 0, %s102
      %s117 = sphi 0, %s103
      %s121 = sphi 0, %s121
      %s123 = sphi 0, %s121
      %s124 = sphi 0, %s123
      %s138 = sphi 0, %s124
      %s142 = sphi 0, %s142
      %s144 = sphi 0, %s142
      %s145 = sphi 0, %s144
      %s159 = sphi 0, %s145
      %s163 = sphi 0, %s163
      %s165 = sphi 0, %s163
      %s166 = sphi 0, %s165
      %s180 = sphi 0, %s166
      %s184 = sphi 0, %s184
      %s186 = sphi 0, %s184
      %s187 = sphi 0, %s186
      %s201 = sphi 0, %s187
      %s205 = sphi 0, %s205
      %s207 = sphi 0, %s205
      %s208 = sphi 0, %s207
      %s222 = sphi 0, %s208
      %s226 = sphi 0, %s226
      %s228 = sphi 0, %s226
      %s229 = sphi 0, %s228
      %s243 = sphi 0, %s229
      %s249 = sphi 0, %s251
      %s252 = sphi 0, %s249
      %s253 = sphi 0, %s252
      %s269 = sphi 0, %s253
    $region4: #{tpu_custom_call.1} parent=1 // loop_header_branch
      %22 = sbr.rel (%p20) target = $region8
    $region5: #{tpu_custom_call.1} parent=1 // loop_body
      %s24 = ssub.s32 %s19, 1
      %s25 = ssub.s32 %s19, 2
      %s26 = sadd.s32 %s19, 1
      %s27 = ssub.s32 %s19, %s26
      %p28 = scmp.eq.s32.totalorder %s27, 0
      %s30 = sadd.s32 %s29, 1
      %s31 = scalar_select %p28, %s29, %s30
      %p34 = pneg %p28
      %p35 = scmp.eq.s32.totalorder %s19, 1
      %p36 = por %p34, %p35
      %p37 = scmp.ne.s32.totalorder %s29, %s32
      %p38 = scmp.eq.s32.totalorder %s19, 0
      %p39 = por %p37, %p38
      %p40 = scmp.ne.s32.totalorder %s29, %s32
      %p41 = scmp.eq.s32.totalorder %s24, 1
      %p42 = por %p40, %p41
      %p43 = scmp.ne.s32.totalorder %s32, %s33
      %p44 = scmp.eq.s32.totalorder %s24, 0
      %p45 = por %p43, %p44
      %p46 = scmp.ne.s32.totalorder %s32, %s33
      %p47 = scmp.eq.s32.totalorder %s25, 1
      %p48 = por %p46, %p47
      %p50 = scmp.ne.s32.totalorder %s33, %s49
      %p51 = scmp.eq.s32.totalorder %s25, 0
      %p52 = por %p50, %p51
      %s53 = ssub.s32 %s19, %s26
      %p54 = scmp.eq.s32.totalorder %s53, 0
      %s56 = sadd.s32 %s55, 1
      %s57 = scalar_select %p54, %s55, %s56
      %p60 = pneg %p54
      %p61 = scmp.eq.s32.totalorder %s19, 1
      %p62 = por %p60, %p61
      %p63 = scmp.ne.s32.totalorder %s55, %s58
      %p64 = scmp.eq.s32.totalorder %s19, 0
      %p65 = por %p63, %p64
      %p66 = scmp.ne.s32.totalorder %s55, %s58
      %p67 = scmp.eq.s32.totalorder %s24, 1
      %p68 = por %p66, %p67
      %p69 = scmp.ne.s32.totalorder %s58, %s59
      %p70 = scmp.eq.s32.totalorder %s24, 0
      %p71 = por %p69, %p70
      %p72 = scmp.ne.s32.totalorder %s58, %s59
      %p73 = scmp.eq.s32.totalorder %s25, 1
      %p74 = por %p72, %p73
      %p76 = scmp.ne.s32.totalorder %s59, %s75
      %p77 = scmp.eq.s32.totalorder %s25, 0
      %p78 = por %p76, %p77
      %s80 = sadd.s32 %s79, 1
      %p83 = scmp.eq.s32.totalorder %s19, 1
      %p84 = scmp.ne.s32.totalorder %s79, %s81
      %p85 = scmp.eq.s32.totalorder %s19, 0
      %p86 = por %p84, %p85
      %p87 = scmp.ne.s32.totalorder %s79, %s81
      %p88 = scmp.eq.s32.totalorder %s24, 1
      %p89 = por %p87, %p88
      %p90 = scmp.ne.s32.totalorder %s81, %s82
      %p91 = scmp.eq.s32.totalorder %s24, 0
      %p92 = por %p90, %p91
      %p93 = scmp.ne.s32.totalorder %s81, %s82
      %p94 = scmp.eq.s32.totalorder %s25, 1
      %p95 = por %p93, %p94
      %p97 = scmp.ne.s32.totalorder %s82, %s96
      %p98 = scmp.eq.s32.totalorder %s25, 0
      %p99 = por %p97, %p98
      %s101 = sadd.s32 %s100, 1
      %p104 = scmp.eq.s32.totalorder %s19, 1
      %p105 = scmp.ne.s32.totalorder %s100, %s102
      %p106 = scmp.eq.s32.totalorder %s19, 0
      %p107 = por %p105, %p106
      %p108 = scmp.ne.s32.totalorder %s100, %s102
      %p109 = scmp.eq.s32.totalorder %s24, 1
      %p110 = por %p108, %p109
      %p111 = scmp.ne.s32.totalorder %s102, %s103
      %p112 = scmp.eq.s32.totalorder %s24, 0
      %p113 = por %p111, %p112
      %p114 = scmp.ne.s32.totalorder %s102, %s103
      %p115 = scmp.eq.s32.totalorder %s25, 1
      %p116 = por %p114, %p115
      %p118 = scmp.ne.s32.totalorder %s103, %s117
      %p119 = scmp.eq.s32.totalorder %s25, 0
      %p120 = por %p118, %p119
      %s122 = sadd.s32 %s121, 1
      %p125 = scmp.eq.s32.totalorder %s19, 1
      %p126 = scmp.ne.s32.totalorder %s121, %s123
      %p127 = scmp.eq.s32.totalorder %s19, 0
      %p128 = por %p126, %p127
      %p129 = scmp.ne.s32.totalorder %s121, %s123
      %p130 = scmp.eq.s32.totalorder %s24, 1
      %p131 = por %p129, %p130
      %p132 = scmp.ne.s32.totalorder %s123, %s124
      %p133 = scmp.eq.s32.totalorder %s24, 0
      %p134 = por %p132, %p133
      %p135 = scmp.ne.s32.totalorder %s123, %s124
      %p136 = scmp.eq.s32.totalorder %s25, 1
      %p137 = por %p135, %p136
      %p139 = scmp.ne.s32.totalorder %s124, %s138
      %p140 = scmp.eq.s32.totalorder %s25, 0
      %p141 = por %p139, %p140
      %s143 = sadd.s32 %s142, 1
      %p146 = scmp.eq.s32.totalorder %s19, 1
      %p147 = scmp.ne.s32.totalorder %s142, %s144
      %p148 = scmp.eq.s32.totalorder %s19, 0
      %p149 = por %p147, %p148
      %p150 = scmp.ne.s32.totalorder %s142, %s144
      %p151 = scmp.eq.s32.totalorder %s24, 1
      %p152 = por %p150, %p151
      %p153 = scmp.ne.s32.totalorder %s144, %s145
      %p154 = scmp.eq.s32.totalorder %s24, 0
      %p155 = por %p153, %p154
      %p156 = scmp.ne.s32.totalorder %s144, %s145
      %p157 = scmp.eq.s32.totalorder %s25, 1
      %p158 = por %p156, %p157
      %p160 = scmp.ne.s32.totalorder %s145, %s159
      %p161 = scmp.eq.s32.totalorder %s25, 0
      %p162 = por %p160, %p161
      %s164 = sadd.s32 %s163, 1
      %p167 = scmp.eq.s32.totalorder %s19, 1
      %p168 = scmp.ne.s32.totalorder %s163, %s165
      %p169 = scmp.eq.s32.totalorder %s19, 0
      %p170 = por %p168, %p169
      %p171 = scmp.ne.s32.totalorder %s163, %s165
      %p172 = scmp.eq.s32.totalorder %s24, 1
      %p173 = por %p171, %p172
      %p174 = scmp.ne.s32.totalorder %s165, %s166
      %p175 = scmp.eq.s32.totalorder %s24, 0
      %p176 = por %p174, %p175
      %p177 = scmp.ne.s32.totalorder %s165, %s166
      %p178 = scmp.eq.s32.totalorder %s25, 1
      %p179 = por %p177, %p178
      %p181 = scmp.ne.s32.totalorder %s166, %s180
      %p182 = scmp.eq.s32.totalorder %s25, 0
      %p183 = por %p181, %p182
      %s185 = sadd.s32 %s184, 1
      %p188 = scmp.eq.s32.totalorder %s19, 1
      %p189 = scmp.ne.s32.totalorder %s184, %s186
      %p190 = scmp.eq.s32.totalorder %s19, 0
      %p191 = por %p189, %p190
      %p192 = scmp.ne.s32.totalorder %s184, %s186
      %p193 = scmp.eq.s32.totalorder %s24, 1
      %p194 = por %p192, %p193
      %p195 = scmp.ne.s32.totalorder %s186, %s187
      %p196 = scmp.eq.s32.totalorder %s24, 0
      %p197 = por %p195, %p196
      %p198 = scmp.ne.s32.totalorder %s186, %s187
      %p199 = scmp.eq.s32.totalorder %s25, 1
      %p200 = por %p198, %p199
      %p202 = scmp.ne.s32.totalorder %s187, %s201
      %p203 = scmp.eq.s32.totalorder %s25, 0
      %p204 = por %p202, %p203
      %s206 = sadd.s32 %s205, 1
      %p209 = scmp.eq.s32.totalorder %s19, 1
      %p210 = scmp.ne.s32.totalorder %s205, %s207
      %p211 = scmp.eq.s32.totalorder %s19, 0
      %p212 = por %p210, %p211
      %p213 = scmp.ne.s32.totalorder %s205, %s207
      %p214 = scmp.eq.s32.totalorder %s24, 1
      %p215 = por %p213, %p214
      %p216 = scmp.ne.s32.totalorder %s207, %s208
      %p217 = scmp.eq.s32.totalorder %s24, 0
      %p218 = por %p216, %p217
      %p219 = scmp.ne.s32.totalorder %s207, %s208
      %p220 = scmp.eq.s32.totalorder %s25, 1
      %p221 = por %p219, %p220
      %p223 = scmp.ne.s32.totalorder %s208, %s222
      %p224 = scmp.eq.s32.totalorder %s25, 0
      %p225 = por %p223, %p224
      %s227 = sadd.s32 %s226, 1
      %p230 = scmp.eq.s32.totalorder %s19, 1
      %p231 = scmp.ne.s32.totalorder %s226, %s228
      %p232 = scmp.eq.s32.totalorder %s19, 0
      %p233 = por %p231, %p232
      %p234 = scmp.ne.s32.totalorder %s226, %s228
      %p235 = scmp.eq.s32.totalorder %s24, 1
      %p236 = por %p234, %p235
      %p237 = scmp.ne.s32.totalorder %s228, %s229
      %p238 = scmp.eq.s32.totalorder %s24, 0
      %p239 = por %p237, %p238
      %p240 = scmp.ne.s32.totalorder %s228, %s229
      %p241 = scmp.eq.s32.totalorder %s25, 1
      %p242 = por %p240, %p241
      %p244 = scmp.ne.s32.totalorder %s229, %s243
      %p245 = scmp.eq.s32.totalorder %s25, 0
      %p246 = por %p244, %p245
      %s247 = ssub.s32 %s19, %s26
      %p248 = scmp.eq.s32.totalorder %s247, 0
      %s250 = sadd.s32 %s249, 1
      %s251 = scalar_select %p248, %s249, %s250
      %p254 = pneg %p248
      %p255 = scmp.eq.s32.totalorder %s19, 1
      %p256 = por %p254, %p255
      %p257 = scmp.ne.s32.totalorder %s249, %s252
      %p258 = scmp.eq.s32.totalorder %s19, 0
      %p259 = por %p257, %p258
      %p260 = scmp.ne.s32.totalorder %s249, %s252
      %p261 = scmp.eq.s32.totalorder %s24, 1
      %p262 = por %p260, %p261
      %p263 = scmp.ne.s32.totalorder %s252, %s253
      %p264 = scmp.eq.s32.totalorder %s24, 0
      %p265 = por %p263, %p264
      %p266 = scmp.ne.s32.totalorder %s252, %s253
      %p267 = scmp.eq.s32.totalorder %s25, 1
      %p268 = por %p266, %p267
      %p270 = scmp.ne.s32.totalorder %s253, %s269
      %p271 = scmp.eq.s32.totalorder %s25, 0
      %p272 = por %p270, %p271
      %p273 = scmp.le.s32.totalorder 1, %s19
      %p274 = scmp.lt.s32.totalorder %s19, 3
      %p275 = pnand %p273, %p274
      %p276 = pneg %p275
      // Predicated region
      $region9: #{tpu_custom_call.1} parent=5 // pred_check
        _
      $region10: #{tpu_custom_call.1} parent=5 // pred_check_branch
        %278 = sbr.rel (%p275) target = $region12
      $region11: #{tpu_custom_call.1} parent=5 // pred_region
        %s279 = ssub.s32 %s19, 1
        // Predicated region
        $region13: #{tpu_custom_call.1} parent=11 // pred_check
          %p280 = pneg %p92
        $region14: #{tpu_custom_call.1} parent=11 // pred_check_branch
          %282 = sbr.rel (%p280) target = $region16
        $region15: #{tpu_custom_call.1} parent=11 // pred_region
          _
        $region16: #{tpu_custom_call.1} parent=11 // pred_fallthru
          _
        // Predicated region
        $region17: #{tpu_custom_call.1} parent=11 // pred_check
          %p283 = pneg %p113
        $region18: #{tpu_custom_call.1} parent=11 // pred_check_branch
          %285 = sbr.rel (%p283) target = $region20
        $region19: #{tpu_custom_call.1} parent=11 // pred_region
          _
        $region20: #{tpu_custom_call.1} parent=11 // pred_fallthru
          _
        // Predicated region
        $region21: #{tpu_custom_call.1} parent=11 // pred_check
          %p286 = pneg %p134
        $region22: #{tpu_custom_call.1} parent=11 // pred_check_branch
          %288 = sbr.rel (%p286) target = $region24
        $region23: #{tpu_custom_call.1} parent=11 // pred_region
          _
        $region24: #{tpu_custom_call.1} parent=11 // pred_fallthru
          _
        // Predicated region
        $region25: #{tpu_custom_call.1} parent=11 // pred_check
          %p289 = pneg %p155
        $region26: #{tpu_custom_call.1} parent=11 // pred_check_branch
          %291 = sbr.rel (%p289) target = $region28
        $region27: #{tpu_custom_call.1} parent=11 // pred_region
          _
        $region28: #{tpu_custom_call.1} parent=11 // pred_fallthru
          _
        // Predicated region
        $region29: #{tpu_custom_call.1} parent=11 // pred_check
          %p292 = pneg %p176
        $region30: #{tpu_custom_call.1} parent=11 // pred_check_branch
          %294 = sbr.rel (%p292) target = $region32
        $region31: #{tpu_custom_call.1} parent=11 // pred_region
          _
        $region32: #{tpu_custom_call.1} parent=11 // pred_fallthru
          _
        // Predicated region
        $region33: #{tpu_custom_call.1} parent=11 // pred_check
          %p295 = pneg %p197
        $region34: #{tpu_custom_call.1} parent=11 // pred_check_branch
          %297 = sbr.rel (%p295) target = $region36
        $region35: #{tpu_custom_call.1} parent=11 // pred_region
          _
        $region36: #{tpu_custom_call.1} parent=11 // pred_fallthru
          _
        // Predicated region
        $region37: #{tpu_custom_call.1} parent=11 // pred_check
          %p298 = pneg %p218
        $region38: #{tpu_custom_call.1} parent=11 // pred_check_branch
          %300 = sbr.rel (%p298) target = $region40
        $region39: #{tpu_custom_call.1} parent=11 // pred_region
          _
        $region40: #{tpu_custom_call.1} parent=11 // pred_fallthru
          _
        // Predicated region
        $region41: #{tpu_custom_call.1} parent=11 // pred_check
          %p301 = pneg %p239
        $region42: #{tpu_custom_call.1} parent=11 // pred_check_branch
          %303 = sbr.rel (%p301) target = $region44
        $region43: #{tpu_custom_call.1} parent=11 // pred_region
          _
        $region44: #{tpu_custom_call.1} parent=11 // pred_fallthru
          _
      $region12: #{tpu_custom_call.1} parent=5 // pred_fallthru
        _
      %p304 = scmp.lt.s32.totalorder %s19, 2
      // Predicated region
      $region45: #{tpu_custom_call.1} parent=5 // pred_check
        %p305 = pneg %p304
      $region46: #{tpu_custom_call.1} parent=5 // pred_check_branch
        %307 = sbr.rel (%p305) target = $region48
      $region47: #{tpu_custom_call.1} parent=5 // pred_region
        // Predicated region
        $region49: #{tpu_custom_call.1} parent=47 // pred_check
          %p308 = pneg %p39
        $region50: #{tpu_custom_call.1} parent=47 // pred_check_branch
          %310 = sbr.rel (%p308) target = $region52
        $region51: #{tpu_custom_call.1} parent=47 // pred_region
          %p311 = scmp.lt.s32.totalorder %s19, 1
          %s312 = scalar_select %p311, %s19, 1
          %s313 = smul.addr %s312, 4
          %s314 = scalar_lea.vmem %s0, %s313
        $region52: #{tpu_custom_call.1} parent=47 // pred_fallthru
          _
        // Predicated region
        $region53: #{tpu_custom_call.1} parent=47 // pred_check
          %p315 = pneg %p65
        $region54: #{tpu_custom_call.1} parent=47 // pred_check_branch
          %317 = sbr.rel (%p315) target = $region56
        $region55: #{tpu_custom_call.1} parent=47 // pred_region
          %p318 = scmp.lt.s32.totalorder %s19, 1
          %s319 = scalar_select %p318, %s19, 1
          %s320 = scalar_lea.vmem %s1, %s319
        $region56: #{tpu_custom_call.1} parent=47 // pred_fallthru
          _
      $region48: #{tpu_custom_call.1} parent=5 // pred_fallthru
        _
      %p321 = scmp.le.s32.totalorder 1, %s19
      %p322 = scmp.lt.s32.totalorder %s19, 3
      %p323 = pnand %p321, %p322
      %p324 = pneg %p323
      // Predicated region
      $region57: #{tpu_custom_call.1} parent=5 // pred_check
        _
      $region58: #{tpu_custom_call.1} parent=5 // pred_check_branch
        %326 = sbr.rel (%p323) target = $region60
      $region59: #{tpu_custom_call.1} parent=5 // pred_region
        %s327 = ssub.s32 %s19, 1
        %p328 = scmp.lt.s32.totalorder %s24, 1
        %s329 = scalar_select %p328, %s24, 1
        %s330 = smul.addr %s329, 4
        %s331 = scalar_lea.vmem %s0, %s330
        %p332 = pneg %p45
        %p333 = pneg %p42
        %p334 = scmp.lt.s32.totalorder %s24, 1
        %s335 = scalar_select %p334, %s24, 1
        %s336 = scalar_lea.vmem %s1, %s335
        %p337 = pneg %p71
        %p338 = pneg %p68
        %p339 = pneg %p92
        %p340 = pneg %p89
        %p341 = pneg %p113
        %p342 = pneg %p110
        %p343 = pneg %p134
        %p344 = pneg %p131
        %p345 = pneg %p155
        %p346 = pneg %p152
        %p347 = pneg %p176
        %p348 = pneg %p173
        %p349 = pneg %p197
        %p350 = pneg %p194
        %p351 = pneg %p218
        %p352 = pneg %p215
        %p353 = pneg %p239
        %p354 = pneg %p236
        %p355 = pneg %p265
        %p356 = pneg %p262
        %s357 = sand.u32 %s252, 1
        %s358 = scalar_lea.sflag [#allocation3], %s357
        %s359 = sand.u32 %s252, 1
        %s360 = smul.addr %s359, 4
        %s361 = scalar_lea.vmem [#allocation2], %s360
        %p362 = scmp.lt.s32.totalorder %s24, 1
        %s363 = scalar_select %p362, %s24, 1
        %s364 = smul.addr %s363, 4
        %s365 = scalar_lea.vmem %s0, %s364
        %p366 = scmp.lt.s32.totalorder %s24, 1
        %s367 = scalar_select %p366, %s24, 1
        %s368 = scalar_lea.vmem %s1, %s367
        %v370 = vld [vmem:[%s365] sm:$0xf]
        %v371 = vld [vmem:[%s368] sm:$0x1]
        %v372 = vld [vmem:[%s2] sm:$0xf]
        %vm373 = vcmask 64512
        %v375 = vsel %vm373, %v370, 0
        %vm377 = vcmask 1043456
        %v379 = vsel %vm377, %v372, 0
        %381 = vmatprep.subr.bf16.mxu0 0
        %382 = vmatpush1.bf16.msra.mxu0 0
        %383 = vmatprep.subr.bf16.mxu0 0
        %384 = vmatpush1.bf16.msra.mxu0 0
        %385 = vmatprep.subr.bf16.mxu0 0
        %386 = vmatpush1.bf16.msra.mxu0 0
        %387 = vmatprep.subr.bf16.mxu0 0
        %388 = vmatpush1.bf16.msra.mxu0 0
        %389 = vmatprep.subr.bf16.mxu0 0
        %390 = vmatpush1.bf16.msra.mxu0 0
        %391 = vmatprep.subr.bf16.mxu0 0
        %392 = vmatpush1.bf16.msra.mxu0 0
        %393 = vmatprep.subr.bf16.mxu0 0
        %394 = vmatpush1.bf16.msra.mxu0 0
        %395 = vmatprep.subr.bf16.mxu0 0
        %396 = vmatpush1.bf16.msra.mxu0 %v379
        %397 = vmatprep.subr.bf16.mxu0 0
        %398 = vmatpush2.bf16.msra.mxu0 0
        %399 = vmatprep.subr.bf16.mxu0 0
        %400 = vmatpush2.bf16.msra.mxu0 0
        %401 = vmatprep.subr.bf16.mxu0 0
        %402 = vmatpush2.bf16.msra.mxu0 0
        %403 = vmatprep.subr.bf16.mxu0 0
        %404 = vmatpush2.bf16.msra.mxu0 0
        %405 = vmatprep.subr.bf16.mxu0 0
        %406 = vmatpush2.bf16.msra.mxu0 0
        %407 = vmatprep.subr.bf16.mxu0 0
        %408 = vmatpush2.bf16.msra.mxu0 0
        %409 = vmatprep.subr.bf16.mxu0 0
        %410 = vmatpush2.bf16.msra.mxu0 0
        %411 = vmatprep.subr.bf16.mxu0 0
        %412 = vmatpush2.bf16.msra.mxu0 0
        %413 = vmatprep.mubr.bf16.mxu0 0
        %414 = vmatmul.mubr.bf16.gmra.mxu0 %v375
        %v415 = vpop.f32.mrf.mxu0
        %v416 = vadd.f32 0.0, %v415
        %v417 = vpop.f32.mrf.mxu0
        %v418 = vpop.f32.mrf.mxu0
        %v419 = vpop.f32.mrf.mxu0
        %420 = vdwg.mxu0
        %v421 = vpack.c.bf16 %v416, %v416
        %v422 = vld [vmem:[%s3] sm:$0x1]
        %v423 = vunpack.c.l.bf16 %v421
        %v424 = vmul.f32 %v423, %v423
        %vm425 = vcmask 261120
        %v426 = vsel %vm425, %v424, 0.0
        %427 = vadd.xlane.f32.xlu0 %v426
        %v428 = vpop.xlane.xlu0 %427
        %v429 = vrcp.pop 32.0
        %v430 = vmul.f32 %v428, %v429
        %v431 = vadd.f32 %v430, 1e-06
        %v432 = vrsqrt.pop %v431
        %v433 = vmul.f32 %v423, %v432
        %v435 = vlaneseq
        %v436 = vshrl.u32 %v435, 7
        %v437 = vsub.s32 0, %v436
        %v438 = vrot.slane %v422, %v437
        %v440 = vmul.f32 %v433, %v438
        %v441 = vpack.c.bf16 %v440, %v440
        %v442 = vld [vmem:[%s8] sm:$0x1]
        %v443 = vunpack.c.l.bf16 %v441
        %v444 = vmul.f32 %v443, %v443
        %v445 = vsel %vm425, %v444, 0.0
        %446 = vadd.xlane.f32.xlu0 %v445
        %v447 = vpop.xlane.xlu0 %446
        %v448 = vmul.f32 %v447, %v429
        %v449 = vadd.f32 %v448, 1e-06
        %v450 = vrsqrt.pop %v449
        %v451 = vmul.f32 %v443, %v450
        %v453 = vlaneseq
        %v454 = vshrl.u32 %v453, 7
        %v455 = vsub.s32 0, %v454
        %v456 = vrot.slane %v442, %v455
        %v458 = vmul.f32 %v451, %v456
        %v459 = vpack.c.bf16 %v458, %v458
        %v460 = vld [vmem:[%s4] sm:$0xf]
        %v461 = vld [vmem:[%s4 + $0x4] sm:$0xf]
        %v462 = vld [vmem:[%s4 + $0x8] sm:$0xf]
        %v463 = vld [vmem:[%s4 + $0xc] sm:$0xf]
        %v468 = vunpack.c.l.b16 %v460
        %v469 = vunpack.c.l.b16 %v461
        %v470 = vunpack.c.l.b16 %v462
        %v471 = vunpack.c.l.b16 %v463
        %v472 = vpack.c.b16 %v469, %v468
        %v473 = vpack.c.b16 %v471, %v470
        %v477 = vsel %vm425, %v459, 0
        %479 = vmatprep.subr.bf16.mxu0 0
        %480 = vmatpush1.bf16.msra.mxu0 0
        %481 = vmatprep.subr.bf16.mxu0 0
        %482 = vmatpush1.bf16.msra.mxu0 0
        %483 = vmatprep.subr.bf16.mxu0 0
        %484 = vmatpush1.bf16.msra.mxu0 0
        %485 = vmatprep.subr.bf16.mxu0 0
        %486 = vmatpush1.bf16.msra.mxu0 0
        %487 = vmatprep.subr.bf16.mxu0 0
        %488 = vmatpush1.bf16.msra.mxu0 0
        %489 = vmatprep.subr.bf16.mxu0 0
        %490 = vmatpush1.bf16.msra.mxu0 0
        %491 = vmatprep.subr.bf16.mxu0 0
        %492 = vmatpush1.bf16.msra.mxu0 %v473
        %493 = vmatprep.subr.bf16.mxu0 0
        %494 = vmatpush1.bf16.msra.mxu0 %v472
        %495 = vmatprep.subr.bf16.mxu0 0
        %496 = vmatpush2.bf16.msra.mxu0 0
        %497 = vmatprep.subr.bf16.mxu0 0
        %498 = vmatpush2.bf16.msra.mxu0 0
        %499 = vmatprep.subr.bf16.mxu0 0
        %500 = vmatpush2.bf16.msra.mxu0 0
        %501 = vmatprep.subr.bf16.mxu0 0
        %502 = vmatpush2.bf16.msra.mxu0 0
        %503 = vmatprep.subr.bf16.mxu0 0
        %504 = vmatpush2.bf16.msra.mxu0 0
        %505 = vmatprep.subr.bf16.mxu0 0
        %506 = vmatpush2.bf16.msra.mxu0 0
        %507 = vmatprep.subr.bf16.mxu0 0
        %508 = vmatpush2.bf16.msra.mxu0 0
        %509 = vmatprep.subr.bf16.mxu0 0
        %510 = vmatpush2.bf16.msra.mxu0 0
        %511 = vmatprep.mubr.bf16.mxu0 0
        %512 = vmatmul.mubr.bf16.gmra.mxu0 %v477
        %v513 = vpop.f32.mrf.mxu0
        %v514 = vadd.f32 0.0, %v513
        %v515 = vpop.f32.mrf.mxu0
        %v516 = vpop.f32.mrf.mxu0
        %v517 = vpop.f32.mrf.mxu0
        %518 = vdwg.mxu0
        %v519 = vpack.c.bf16 %v514, %v514
        %v520 = vld [vmem:[%s5] sm:$0xf]
        %v521 = vld [vmem:[%s5 + $0x4] sm:$0xf]
        %v522 = vld [vmem:[%s5 + $0x8] sm:$0xf]
        %v523 = vld [vmem:[%s5 + $0xc] sm:$0xf]
        %525 = vrot.lane.b32.xlu0 %v519, 96
        %v526 = vpop.permute.xlu0 %525
        %v528 = vsel %vm373, %v519, 0
        %v531 = vsel %vm373, %v526, 0
        %533 = vmatprep.subr.bf16.mxu0 0
        %534 = vmatpush1.bf16.xpose.msra.mxu0 0
        %535 = vmatprep.subr.bf16.mxu0 0
        %536 = vmatpush1.bf16.xpose.msra.mxu0 0
        %537 = vmatprep.subr.bf16.mxu0 0
        %538 = vmatpush1.bf16.xpose.msra.mxu0 0
        %539 = vmatprep.subr.bf16.mxu0 0
        %540 = vmatpush1.bf16.xpose.msra.mxu0 0
        %541 = vmatprep.subr.bf16.mxu0 0
        %542 = vmatpush1.bf16.xpose.msra.mxu0 0
        %543 = vmatprep.subr.bf16.mxu0 0
        %544 = vmatpush1.bf16.xpose.msra.mxu0 0
        %545 = vmatprep.subr.bf16.mxu0 0
        %546 = vmatpush1.bf16.xpose.msra.mxu0 0
        %547 = vmatprep.subr.bf16.mxu0 0
        %548 = vmatpush1.bf16.xpose.msra.mxu0 %v531
        %549 = vmatprep.subr.bf16.mxu0 0
        %550 = vmatpush2.bf16.xpose.msra.mxu0 0
        %551 = vmatprep.subr.bf16.mxu0 0
        %552 = vmatpush2.bf16.xpose.msra.mxu0 0
        %553 = vmatprep.subr.bf16.mxu0 0
        %554 = vmatpush2.bf16.xpose.msra.mxu0 0
        %555 = vmatprep.subr.bf16.mxu0 0
        %556 = vmatpush2.bf16.xpose.msra.mxu0 0
        %557 = vmatprep.subr.bf16.mxu0 0
        %558 = vmatpush2.bf16.xpose.msra.mxu0 0
        %559 = vmatprep.subr.bf16.mxu0 0
        %560 = vmatpush2.bf16.xpose.msra.mxu0 0
        %561 = vmatprep.subr.bf16.mxu0 0
        %562 = vmatpush2.bf16.xpose.msra.mxu0 0
        %563 = vmatprep.subr.bf16.mxu0 0
        %564 = vmatpush2.bf16.xpose.msra.mxu0 0
        %565 = vmatprep.mubr.bf16.mxu0 0
        %566 = vmatmul.mubr.bf16.gmra.mxu0 %v528
        %v567 = vpop.f32.mrf.mxu0
        %v568 = vadd.f32 0.0, %v567
        %v569 = vpop.f32.mrf.mxu0
        %v570 = vpop.f32.mrf.mxu0
        %v571 = vpop.f32.mrf.mxu0
        %572 = vdwg.mxu0
        %v573 = vmul.f32 %v568, 0.35355338
        %v575 = vlaneseq
        %v576 = vshrl.u32 %v575, 7
        %v577 = vsub.s32 0, %v576
        %v578 = vrot.slane %v371, %v577
        %v580 = vadd.f32 %v573, %v578
        %v581 = vsel %vm373, %v580, -inf
        %582 = vmax.xlane.f32.xlu0 %v581
        %v583 = vpop.xlane.xlu0 %582
        %v584 = vsub.f32 %v580, %v583
        %v585 = vmul.f32 %v584, 1.442695
        %v586 = vpow.pop %v585
        %v587 = vsel %vm373, %v586, 0.0
        %588 = vadd.xlane.f32.xlu0 %v587
        %v589 = vpop.xlane.xlu0 %588
        %v590 = vrcp.pop %v589
        %v591 = vmul.f32 %v586, %v590
        %v592 = vpack.c.bf16 %v591, %v591
        %593 = vrot.lane.b32.xlu0 %v519, 64
        %v594 = vpop.permute.xlu0 %593
        %v596 = vsel %vm373, %v592, 0
        %v599 = vsel %vm377, %v594, 0
        %601 = vmatprep.subr.bf16.mxu0 0
        %602 = vmatpush1.bf16.msra.mxu0 0
        %603 = vmatprep.subr.bf16.mxu0 0
        %604 = vmatpush1.bf16.msra.mxu0 0
        %605 = vmatprep.subr.bf16.mxu0 0
        %606 = vmatpush1.bf16.msra.mxu0 0
        %607 = vmatprep.subr.bf16.mxu0 0
        %608 = vmatpush1.bf16.msra.mxu0 0
        %609 = vmatprep.subr.bf16.mxu0 0
        %610 = vmatpush1.bf16.msra.mxu0 0
        %611 = vmatprep.subr.bf16.mxu0 0
        %612 = vmatpush1.bf16.msra.mxu0 0
        %613 = vmatprep.subr.bf16.mxu0 0
        %614 = vmatpush1.bf16.msra.mxu0 0
        %615 = vmatprep.subr.bf16.mxu0 0
        %616 = vmatpush1.bf16.msra.mxu0 %v599
        %617 = vmatprep.subr.bf16.mxu0 0
        %618 = vmatpush2.bf16.msra.mxu0 0
        %619 = vmatprep.subr.bf16.mxu0 0
        %620 = vmatpush2.bf16.msra.mxu0 0
        %621 = vmatprep.subr.bf16.mxu0 0
        %622 = vmatpush2.bf16.msra.mxu0 0
        %623 = vmatprep.subr.bf16.mxu0 0
        %624 = vmatpush2.bf16.msra.mxu0 0
        %625 = vmatprep.subr.bf16.mxu0 0
        %626 = vmatpush2.bf16.msra.mxu0 0
        %627 = vmatprep.subr.bf16.mxu0 0
        %628 = vmatpush2.bf16.msra.mxu0 0
        %629 = vmatprep.subr.bf16.mxu0 0
        %630 = vmatpush2.bf16.msra.mxu0 0
        %631 = vmatprep.subr.bf16.mxu0 0
        %632 = vmatpush2.bf16.msra.mxu0 0
        %633 = vmatprep.mubr.bf16.mxu0 0
        %634 = vmatmul.mubr.bf16.gmra.mxu0 %v596
        %v635 = vpop.f32.mrf.mxu0
        %v636 = vadd.f32 0.0, %v635
        %v637 = vpop.f32.mrf.mxu0
        %v638 = vpop.f32.mrf.mxu0
        %v639 = vpop.f32.mrf.mxu0
        %640 = vdwg.mxu0
        %v641 = vpack.c.bf16 %v636, %v636
        %642 = vrot.lane.b32.xlu0 %v519, 120
        %v643 = vpop.permute.xlu0 %642
        %644 = vrot.lane.b32.xlu0 %v519, 88
        %v645 = vpop.permute.xlu0 %644
        %v647 = vsel %vm373, %v643, 0
        %v650 = vsel %vm373, %v645, 0
        %652 = vmatprep.subr.bf16.mxu0 0
        %653 = vmatpush1.bf16.xpose.msra.mxu0 0
        %654 = vmatprep.subr.bf16.mxu0 0
        %655 = vmatpush1.bf16.xpose.msra.mxu0 0
        %656 = vmatprep.subr.bf16.mxu0 0
        %657 = vmatpush1.bf16.xpose.msra.mxu0 0
        %658 = vmatprep.subr.bf16.mxu0 0
        %659 = vmatpush1.bf16.xpose.msra.mxu0 0
        %660 = vmatprep.subr.bf16.mxu0 0
        %661 = vmatpush1.bf16.xpose.msra.mxu0 0
        %662 = vmatprep.subr.bf16.mxu0 0
        %663 = vmatpush1.bf16.xpose.msra.mxu0 0
        %664 = vmatprep.subr.bf16.mxu0 0
        %665 = vmatpush1.bf16.xpose.msra.mxu0 0
        %666 = vmatprep.subr.bf16.mxu0 0
        %667 = vmatpush1.bf16.xpose.msra.mxu0 %v650
        %668 = vmatprep.subr.bf16.mxu0 0
        %669 = vmatpush2.bf16.xpose.msra.mxu0 0
        %670 = vmatprep.subr.bf16.mxu0 0
        %671 = vmatpush2.bf16.xpose.msra.mxu0 0
        %672 = vmatprep.subr.bf16.mxu0 0
        %673 = vmatpush2.bf16.xpose.msra.mxu0 0
        %674 = vmatprep.subr.bf16.mxu0 0
        %675 = vmatpush2.bf16.xpose.msra.mxu0 0
        %676 = vmatprep.subr.bf16.mxu0 0
        %677 = vmatpush2.bf16.xpose.msra.mxu0 0
        %678 = vmatprep.subr.bf16.mxu0 0
        %679 = vmatpush2.bf16.xpose.msra.mxu0 0
        %680 = vmatprep.subr.bf16.mxu0 0
        %681 = vmatpush2.bf16.xpose.msra.mxu0 0
        %682 = vmatprep.subr.bf16.mxu0 0
        %683 = vmatpush2.bf16.xpose.msra.mxu0 0
        %684 = vmatprep.mubr.bf16.mxu0 0
        %685 = vmatmul.mubr.bf16.gmra.mxu0 %v647
        %v686 = vpop.f32.mrf.mxu0
        %v687 = vadd.f32 0.0, %v686
        %v688 = vpop.f32.mrf.mxu0
        %v689 = vpop.f32.mrf.mxu0
        %v690 = vpop.f32.mrf.mxu0
        %691 = vdwg.mxu0
        %v692 = vmul.f32 %v687, 0.35355338
        %v693 = vadd.f32 %v692, %v578
        %v694 = vsel %vm373, %v693, -inf
        %695 = vmax.xlane.f32.xlu0 %v694
        %v696 = vpop.xlane.xlu0 %695
        %v697 = vsub.f32 %v693, %v696
        %v698 = vmul.f32 %v697, 1.442695
        %v699 = vpow.pop %v698
        %v700 = vsel %vm373, %v699, 0.0
        %701 = vadd.xlane.f32.xlu0 %v700
        %v702 = vpop.xlane.xlu0 %701
        %v703 = vrcp.pop %v702
        %v704 = vmul.f32 %v699, %v703
        %v705 = vpack.c.bf16 %v704, %v704
        %706 = vrot.lane.b32.xlu0 %v519, 56
        %v707 = vpop.permute.xlu0 %706
        %v709 = vsel %vm373, %v705, 0
        %v712 = vsel %vm377, %v707, 0
        %714 = vmatprep.subr.bf16.mxu0 0
        %715 = vmatpush1.bf16.msra.mxu0 0
        %716 = vmatprep.subr.bf16.mxu0 0
        %717 = vmatpush1.bf16.msra.mxu0 0
        %718 = vmatprep.subr.bf16.mxu0 0
        %719 = vmatpush1.bf16.msra.mxu0 0
        %720 = vmatprep.subr.bf16.mxu0 0
        %721 = vmatpush1.bf16.msra.mxu0 0
        %722 = vmatprep.subr.bf16.mxu0 0
        %723 = vmatpush1.bf16.msra.mxu0 0
        %724 = vmatprep.subr.bf16.mxu0 0
        %725 = vmatpush1.bf16.msra.mxu0 0
        %726 = vmatprep.subr.bf16.mxu0 0
        %727 = vmatpush1.bf16.msra.mxu0 0
        %728 = vmatprep.subr.bf16.mxu0 0
        %729 = vmatpush1.bf16.msra.mxu0 %v712
        %730 = vmatprep.subr.bf16.mxu0 0
        %731 = vmatpush2.bf16.msra.mxu0 0
        %732 = vmatprep.subr.bf16.mxu0 0
        %733 = vmatpush2.bf16.msra.mxu0 0
        %734 = vmatprep.subr.bf16.mxu0 0
        %735 = vmatpush2.bf16.msra.mxu0 0
        %736 = vmatprep.subr.bf16.mxu0 0
        %737 = vmatpush2.bf16.msra.mxu0 0
        %738 = vmatprep.subr.bf16.mxu0 0
        %739 = vmatpush2.bf16.msra.mxu0 0
        %740 = vmatprep.subr.bf16.mxu0 0
        %741 = vmatpush2.bf16.msra.mxu0 0
        %742 = vmatprep.subr.bf16.mxu0 0
        %743 = vmatpush2.bf16.msra.mxu0 0
        %744 = vmatprep.subr.bf16.mxu0 0
        %745 = vmatpush2.bf16.msra.mxu0 0
        %746 = vmatprep.mubr.bf16.mxu0 0
        %747 = vmatmul.mubr.bf16.gmra.mxu0 %v709
        %v748 = vpop.f32.mrf.mxu0
        %v749 = vadd.f32 0.0, %v748
        %v750 = vpop.f32.mrf.mxu0
        %v751 = vpop.f32.mrf.mxu0
        %v752 = vpop.f32.mrf.mxu0
        %753 = vdwg.mxu0
        %v754 = vpack.c.bf16 %v749, %v749
        %v756 = vsel %vm373, %v754, 0
        %v759 = vsel %vm377, %v521, 0
        %761 = vmatprep.subr.bf16.mxu0 0
        %762 = vmatpush1.bf16.msra.mxu0 0
        %763 = vmatprep.subr.bf16.mxu0 0
        %764 = vmatpush1.bf16.msra.mxu0 0
        %765 = vmatprep.subr.bf16.mxu0 0
        %766 = vmatpush1.bf16.msra.mxu0 0
        %767 = vmatprep.subr.bf16.mxu0 0
        %768 = vmatpush1.bf16.msra.mxu0 0
        %769 = vmatprep.subr.bf16.mxu0 0
        %770 = vmatpush1.bf16.msra.mxu0 0
        %771 = vmatprep.subr.bf16.mxu0 0
        %772 = vmatpush1.bf16.msra.mxu0 0
        %773 = vmatprep.subr.bf16.mxu0 0
        %774 = vmatpush1.bf16.msra.mxu0 0
        %775 = vmatprep.subr.bf16.mxu0 0
        %776 = vmatpush1.bf16.msra.mxu0 %v759
        %777 = vmatprep.subr.bf16.mxu0 0
        %778 = vmatpush2.bf16.msra.mxu0 0
        %779 = vmatprep.subr.bf16.mxu0 0
        %780 = vmatpush2.bf16.msra.mxu0 0
        %781 = vmatprep.subr.bf16.mxu0 0
        %782 = vmatpush2.bf16.msra.mxu0 0
        %783 = vmatprep.subr.bf16.mxu0 0
        %784 = vmatpush2.bf16.msra.mxu0 0
        %785 = vmatprep.subr.bf16.mxu0 0
        %786 = vmatpush2.bf16.msra.mxu0 0
        %787 = vmatprep.subr.bf16.mxu0 0
        %788 = vmatpush2.bf16.msra.mxu0 0
        %789 = vmatprep.subr.bf16.mxu0 0
        %790 = vmatpush2.bf16.msra.mxu0 0
        %791 = vmatprep.subr.bf16.mxu0 0
        %792 = vmatpush2.bf16.msra.mxu0 0
        %793 = vmatprep.mubr.bf16.mxu0 0
        %794 = vmatmul.mubr.bf16.gmra.mxu0 %v756
        %v795 = vpop.f32.mrf.mxu0
        %v796 = vadd.f32 0.0, %v795
        %v797 = vpop.f32.mrf.mxu0
        %v798 = vpop.f32.mrf.mxu0
        %v799 = vpop.f32.mrf.mxu0
        %800 = vdwg.mxu0
        %v802 = vsel %vm373, %v641, 0
        %v805 = vsel %vm377, %v520, 0
        %807 = vmatprep.subr.bf16.mxu0 0
        %808 = vmatpush1.bf16.msra.mxu0 0
        %809 = vmatprep.subr.bf16.mxu0 0
        %810 = vmatpush1.bf16.msra.mxu0 0
        %811 = vmatprep.subr.bf16.mxu0 0
        %812 = vmatpush1.bf16.msra.mxu0 0
        %813 = vmatprep.subr.bf16.mxu0 0
        %814 = vmatpush1.bf16.msra.mxu0 0
        %815 = vmatprep.subr.bf16.mxu0 0
        %816 = vmatpush1.bf16.msra.mxu0 0
        %817 = vmatprep.subr.bf16.mxu0 0
        %818 = vmatpush1.bf16.msra.mxu0 0
        %819 = vmatprep.subr.bf16.mxu0 0
        %820 = vmatpush1.bf16.msra.mxu0 0
        %821 = vmatprep.subr.bf16.mxu0 0
        %822 = vmatpush1.bf16.msra.mxu0 %v805
        %823 = vmatprep.subr.bf16.mxu0 0
        %824 = vmatpush2.bf16.msra.mxu0 0
        %825 = vmatprep.subr.bf16.mxu0 0
        %826 = vmatpush2.bf16.msra.mxu0 0
        %827 = vmatprep.subr.bf16.mxu0 0
        %828 = vmatpush2.bf16.msra.mxu0 0
        %829 = vmatprep.subr.bf16.mxu0 0
        %830 = vmatpush2.bf16.msra.mxu0 0
        %831 = vmatprep.subr.bf16.mxu0 0
        %832 = vmatpush2.bf16.msra.mxu0 0
        %833 = vmatprep.subr.bf16.mxu0 0
        %834 = vmatpush2.bf16.msra.mxu0 0
        %835 = vmatprep.subr.bf16.mxu0 0
        %836 = vmatpush2.bf16.msra.mxu0 0
        %837 = vmatprep.subr.bf16.mxu0 0
        %838 = vmatpush2.bf16.msra.mxu0 0
        %839 = vmatprep.mubr.bf16.mxu0 0
        %840 = vmatmul.mubr.bf16.gmra.mxu0 %v802
        %v841 = vpop.f32.mrf.mxu0
        %v842 = vadd.f32 %v796, %v841
        %v843 = vpop.f32.mrf.mxu0
        %v844 = vpop.f32.mrf.mxu0
        %v845 = vpop.f32.mrf.mxu0
        %846 = vdwg.mxu0
        %847 = vrot.lane.b32.xlu0 %v519, 112
        %v848 = vpop.permute.xlu0 %847
        %849 = vrot.lane.b32.xlu0 %v519, 80
        %v850 = vpop.permute.xlu0 %849
        %v852 = vsel %vm373, %v848, 0
        %v855 = vsel %vm373, %v850, 0
        %857 = vmatprep.subr.bf16.mxu0 0
        %858 = vmatpush1.bf16.xpose.msra.mxu0 0
        %859 = vmatprep.subr.bf16.mxu0 0
        %860 = vmatpush1.bf16.xpose.msra.mxu0 0
        %861 = vmatprep.subr.bf16.mxu0 0
        %862 = vmatpush1.bf16.xpose.msra.mxu0 0
        %863 = vmatprep.subr.bf16.mxu0 0
        %864 = vmatpush1.bf16.xpose.msra.mxu0 0
        %865 = vmatprep.subr.bf16.mxu0 0
        %866 = vmatpush1.bf16.xpose.msra.mxu0 0
        %867 = vmatprep.subr.bf16.mxu0 0
        %868 = vmatpush1.bf16.xpose.msra.mxu0 0
        %869 = vmatprep.subr.bf16.mxu0 0
        %870 = vmatpush1.bf16.xpose.msra.mxu0 0
        %871 = vmatprep.subr.bf16.mxu0 0
        %872 = vmatpush1.bf16.xpose.msra.mxu0 %v855
        %873 = vmatprep.subr.bf16.mxu0 0
        %874 = vmatpush2.bf16.xpose.msra.mxu0 0
        %875 = vmatprep.subr.bf16.mxu0 0
        %876 = vmatpush2.bf16.xpose.msra.mxu0 0
        %877 = vmatprep.subr.bf16.mxu0 0
        %878 = vmatpush2.bf16.xpose.msra.mxu0 0
        %879 = vmatprep.subr.bf16.mxu0 0
        %880 = vmatpush2.bf16.xpose.msra.mxu0 0
        %881 = vmatprep.subr.bf16.mxu0 0
        %882 = vmatpush2.bf16.xpose.msra.mxu0 0
        %883 = vmatprep.subr.bf16.mxu0 0
        %884 = vmatpush2.bf16.xpose.msra.mxu0 0
        %885 = vmatprep.subr.bf16.mxu0 0
        %886 = vmatpush2.bf16.xpose.msra.mxu0 0
        %887 = vmatprep.subr.bf16.mxu0 0
        %888 = vmatpush2.bf16.xpose.msra.mxu0 0
        %889 = vmatprep.mubr.bf16.mxu0 0
        %890 = vmatmul.mubr.bf16.gmra.mxu0 %v852
        %v891 = vpop.f32.mrf.mxu0
        %v892 = vadd.f32 0.0, %v891
        %v893 = vpop.f32.mrf.mxu0
        %v894 = vpop.f32.mrf.mxu0
        %v895 = vpop.f32.mrf.mxu0
        %896 = vdwg.mxu0
        %v897 = vmul.f32 %v892, 0.35355338
        %v898 = vadd.f32 %v897, %v578
        %v899 = vsel %vm373, %v898, -inf
        %900 = vmax.xlane.f32.xlu0 %v899
        %v901 = vpop.xlane.xlu0 %900
        %v902 = vsub.f32 %v898, %v901
        %v903 = vmul.f32 %v902, 1.442695
        %v904 = vpow.pop %v903
        %v905 = vsel %vm373, %v904, 0.0
        %906 = vadd.xlane.f32.xlu0 %v905
        %v907 = vpop.xlane.xlu0 %906
        %v908 = vrcp.pop %v907
        %v909 = vmul.f32 %v904, %v908
        %v910 = vpack.c.bf16 %v909, %v909
        %911 = vrot.lane.b32.xlu0 %v519, 48
        %v912 = vpop.permute.xlu0 %911
        %v914 = vsel %vm373, %v910, 0
        %v917 = vsel %vm377, %v912, 0
        %919 = vmatprep.subr.bf16.mxu0 0
        %920 = vmatpush1.bf16.msra.mxu0 0
        %921 = vmatprep.subr.bf16.mxu0 0
        %922 = vmatpush1.bf16.msra.mxu0 0
        %923 = vmatprep.subr.bf16.mxu0 0
        %924 = vmatpush1.bf16.msra.mxu0 0
        %925 = vmatprep.subr.bf16.mxu0 0
        %926 = vmatpush1.bf16.msra.mxu0 0
        %927 = vmatprep.subr.bf16.mxu0 0
        %928 = vmatpush1.bf16.msra.mxu0 0
        %929 = vmatprep.subr.bf16.mxu0 0
        %930 = vmatpush1.bf16.msra.mxu0 0
        %931 = vmatprep.subr.bf16.mxu0 0
        %932 = vmatpush1.bf16.msra.mxu0 0
        %933 = vmatprep.subr.bf16.mxu0 0
        %934 = vmatpush1.bf16.msra.mxu0 %v917
        %935 = vmatprep.subr.bf16.mxu0 0
        %936 = vmatpush2.bf16.msra.mxu0 0
        %937 = vmatprep.subr.bf16.mxu0 0
        %938 = vmatpush2.bf16.msra.mxu0 0
        %939 = vmatprep.subr.bf16.mxu0 0
        %940 = vmatpush2.bf16.msra.mxu0 0
        %941 = vmatprep.subr.bf16.mxu0 0
        %942 = vmatpush2.bf16.msra.mxu0 0
        %943 = vmatprep.subr.bf16.mxu0 0
        %944 = vmatpush2.bf16.msra.mxu0 0
        %945 = vmatprep.subr.bf16.mxu0 0
        %946 = vmatpush2.bf16.msra.mxu0 0
        %947 = vmatprep.subr.bf16.mxu0 0
        %948 = vmatpush2.bf16.msra.mxu0 0
        %949 = vmatprep.subr.bf16.mxu0 0
        %950 = vmatpush2.bf16.msra.mxu0 0
        %951 = vmatprep.mubr.bf16.mxu0 0
        %952 = vmatmul.mubr.bf16.gmra.mxu0 %v914
        %v953 = vpop.f32.mrf.mxu0
        %v954 = vadd.f32 0.0, %v953
        %v955 = vpop.f32.mrf.mxu0
        %v956 = vpop.f32.mrf.mxu0
        %v957 = vpop.f32.mrf.mxu0
        %958 = vdwg.mxu0
        %v959 = vpack.c.bf16 %v954, %v954
        %v961 = vsel %vm373, %v959, 0
        %v964 = vsel %vm377, %v522, 0
        %966 = vmatprep.subr.bf16.mxu0 0
        %967 = vmatpush1.bf16.msra.mxu0 0
        %968 = vmatprep.subr.bf16.mxu0 0
        %969 = vmatpush1.bf16.msra.mxu0 0
        %970 = vmatprep.subr.bf16.mxu0 0
        %971 = vmatpush1.bf16.msra.mxu0 0
        %972 = vmatprep.subr.bf16.mxu0 0
        %973 = vmatpush1.bf16.msra.mxu0 0
        %974 = vmatprep.subr.bf16.mxu0 0
        %975 = vmatpush1.bf16.msra.mxu0 0
        %976 = vmatprep.subr.bf16.mxu0 0
        %977 = vmatpush1.bf16.msra.mxu0 0
        %978 = vmatprep.subr.bf16.mxu0 0
        %979 = vmatpush1.bf16.msra.mxu0 0
        %980 = vmatprep.subr.bf16.mxu0 0
        %981 = vmatpush1.bf16.msra.mxu0 %v964
        %982 = vmatprep.subr.bf16.mxu0 0
        %983 = vmatpush2.bf16.msra.mxu0 0
        %984 = vmatprep.subr.bf16.mxu0 0
        %985 = vmatpush2.bf16.msra.mxu0 0
        %986 = vmatprep.subr.bf16.mxu0 0
        %987 = vmatpush2.bf16.msra.mxu0 0
        %988 = vmatprep.subr.bf16.mxu0 0
        %989 = vmatpush2.bf16.msra.mxu0 0
        %990 = vmatprep.subr.bf16.mxu0 0
        %991 = vmatpush2.bf16.msra.mxu0 0
        %992 = vmatprep.subr.bf16.mxu0 0
        %993 = vmatpush2.bf16.msra.mxu0 0
        %994 = vmatprep.subr.bf16.mxu0 0
        %995 = vmatpush2.bf16.msra.mxu0 0
        %996 = vmatprep.subr.bf16.mxu0 0
        %997 = vmatpush2.bf16.msra.mxu0 0
        %998 = vmatprep.mubr.bf16.mxu0 0
        %999 = vmatmul.mubr.bf16.gmra.mxu0 %v961
        %v1000 = vpop.f32.mrf.mxu0
        %v1001 = vadd.f32 0.0, %v1000
        %v1002 = vpop.f32.mrf.mxu0
        %v1003 = vpop.f32.mrf.mxu0
        %v1004 = vpop.f32.mrf.mxu0
        %1005 = vdwg.mxu0
        %v1006 = vadd.f32 %v842, %v1001
        %1007 = vrot.lane.b32.xlu0 %v519, 104
        %v1008 = vpop.permute.xlu0 %1007
        %1009 = vrot.lane.b32.xlu0 %v519, 72
        %v1010 = vpop.permute.xlu0 %1009
        %v1012 = vsel %vm373, %v1008, 0
        %v1015 = vsel %vm373, %v1010, 0
        %1017 = vmatprep.subr.bf16.mxu0 0
        %1018 = vmatpush1.bf16.xpose.msra.mxu0 0
        %1019 = vmatprep.subr.bf16.mxu0 0
        %1020 = vmatpush1.bf16.xpose.msra.mxu0 0
        %1021 = vmatprep.subr.bf16.mxu0 0
        %1022 = vmatpush1.bf16.xpose.msra.mxu0 0
        %1023 = vmatprep.subr.bf16.mxu0 0
        %1024 = vmatpush1.bf16.xpose.msra.mxu0 0
        %1025 = vmatprep.subr.bf16.mxu0 0
        %1026 = vmatpush1.bf16.xpose.msra.mxu0 0
        %1027 = vmatprep.subr.bf16.mxu0 0
        %1028 = vmatpush1.bf16.xpose.msra.mxu0 0
        %1029 = vmatprep.subr.bf16.mxu0 0
        %1030 = vmatpush1.bf16.xpose.msra.mxu0 0
        %1031 = vmatprep.subr.bf16.mxu0 0
        %1032 = vmatpush1.bf16.xpose.msra.mxu0 %v1015
        %1033 = vmatprep.subr.bf16.mxu0 0
        %1034 = vmatpush2.bf16.xpose.msra.mxu0 0
        %1035 = vmatprep.subr.bf16.mxu0 0
        %1036 = vmatpush2.bf16.xpose.msra.mxu0 0
        %1037 = vmatprep.subr.bf16.mxu0 0
        %1038 = vmatpush2.bf16.xpose.msra.mxu0 0
        %1039 = vmatprep.subr.bf16.mxu0 0
        %1040 = vmatpush2.bf16.xpose.msra.mxu0 0
        %1041 = vmatprep.subr.bf16.mxu0 0
        %1042 = vmatpush2.bf16.xpose.msra.mxu0 0
        %1043 = vmatprep.subr.bf16.mxu0 0
        %1044 = vmatpush2.bf16.xpose.msra.mxu0 0
        %1045 = vmatprep.subr.bf16.mxu0 0
        %1046 = vmatpush2.bf16.xpose.msra.mxu0 0
        %1047 = vmatprep.subr.bf16.mxu0 0
        %1048 = vmatpush2.bf16.xpose.msra.mxu0 0
        %1049 = vmatprep.mubr.bf16.mxu0 0
        %1050 = vmatmul.mubr.bf16.gmra.mxu0 %v1012
        %v1051 = vpop.f32.mrf.mxu0
        %v1052 = vadd.f32 0.0, %v1051
        %v1053 = vpop.f32.mrf.mxu0
        %v1054 = vpop.f32.mrf.mxu0
        %v1055 = vpop.f32.mrf.mxu0
        %1056 = vdwg.mxu0
        %v1057 = vmul.f32 %v1052, 0.35355338
        %v1058 = vadd.f32 %v1057, %v578
        %v1059 = vsel %vm373, %v1058, -inf
        %1060 = vmax.xlane.f32.xlu0 %v1059
        %v1061 = vpop.xlane.xlu0 %1060
        %v1062 = vsub.f32 %v1058, %v1061
        %v1063 = vmul.f32 %v1062, 1.442695
        %v1064 = vpow.pop %v1063
        %v1065 = vsel %vm373, %v1064, 0.0
        %1066 = vadd.xlane.f32.xlu0 %v1065
        %v1067 = vpop.xlane.xlu0 %1066
        %v1068 = vrcp.pop %v1067
        %v1069 = vmul.f32 %v1064, %v1068
        %v1070 = vpack.c.bf16 %v1069, %v1069
        %1071 = vrot.lane.b32.xlu0 %v519, 40
        %v1072 = vpop.permute.xlu0 %1071
        %v1074 = vsel %vm373, %v1070, 0
        %v1077 = vsel %vm377, %v1072, 0
        %1079 = vmatprep.subr.bf16.mxu0 0
        %1080 = vmatpush1.bf16.msra.mxu0 0
        %1081 = vmatprep.subr.bf16.mxu0 0
        %1082 = vmatpush1.bf16.msra.mxu0 0
        %1083 = vmatprep.subr.bf16.mxu0 0
        %1084 = vmatpush1.bf16.msra.mxu0 0
        %1085 = vmatprep.subr.bf16.mxu0 0
        %1086 = vmatpush1.bf16.msra.mxu0 0
        %1087 = vmatprep.subr.bf16.mxu0 0
        %1088 = vmatpush1.bf16.msra.mxu0 0
        %1089 = vmatprep.subr.bf16.mxu0 0
        %1090 = vmatpush1.bf16.msra.mxu0 0
        %1091 = vmatprep.subr.bf16.mxu0 0
        %1092 = vmatpush1.bf16.msra.mxu0 0
        %1093 = vmatprep.subr.bf16.mxu0 0
        %1094 = vmatpush1.bf16.msra.mxu0 %v1077
        %1095 = vmatprep.subr.bf16.mxu0 0
        %1096 = vmatpush2.bf16.msra.mxu0 0
        %1097 = vmatprep.subr.bf16.mxu0 0
        %1098 = vmatpush2.bf16.msra.mxu0 0
        %1099 = vmatprep.subr.bf16.mxu0 0
        %1100 = vmatpush2.bf16.msra.mxu0 0
        %1101 = vmatprep.subr.bf16.mxu0 0
        %1102 = vmatpush2.bf16.msra.mxu0 0
        %1103 = vmatprep.subr.bf16.mxu0 0
        %1104 = vmatpush2.bf16.msra.mxu0 0
        %1105 = vmatprep.subr.bf16.mxu0 0
        %1106 = vmatpush2.bf16.msra.mxu0 0
        %1107 = vmatprep.subr.bf16.mxu0 0
        %1108 = vmatpush2.bf16.msra.mxu0 0
        %1109 = vmatprep.subr.bf16.mxu0 0
        %1110 = vmatpush2.bf16.msra.mxu0 0
        %1111 = vmatprep.mubr.bf16.mxu0 0
        %1112 = vmatmul.mubr.bf16.gmra.mxu0 %v1074
        %v1113 = vpop.f32.mrf.mxu0
        %v1114 = vadd.f32 0.0, %v1113
        %v1115 = vpop.f32.mrf.mxu0
        %v1116 = vpop.f32.mrf.mxu0
        %v1117 = vpop.f32.mrf.mxu0
        %1118 = vdwg.mxu0
        %v1119 = vpack.c.bf16 %v1114, %v1114
        %v1121 = vsel %vm373, %v1119, 0
        %v1124 = vsel %vm377, %v523, 0
        %1126 = vmatprep.subr.bf16.mxu0 0
        %1127 = vmatpush1.bf16.msra.mxu0 0
        %1128 = vmatprep.subr.bf16.mxu0 0
        %1129 = vmatpush1.bf16.msra.mxu0 0
        %1130 = vmatprep.subr.bf16.mxu0 0
        %1131 = vmatpush1.bf16.msra.mxu0 0
        %1132 = vmatprep.subr.bf16.mxu0 0
        %1133 = vmatpush1.bf16.msra.mxu0 0
        %1134 = vmatprep.subr.bf16.mxu0 0
        %1135 = vmatpush1.bf16.msra.mxu0 0
        %1136 = vmatprep.subr.bf16.mxu0 0
        %1137 = vmatpush1.bf16.msra.mxu0 0
        %1138 = vmatprep.subr.bf16.mxu0 0
        %1139 = vmatpush1.bf16.msra.mxu0 0
        %1140 = vmatprep.subr.bf16.mxu0 0
        %1141 = vmatpush1.bf16.msra.mxu0 %v1124
        %1142 = vmatprep.subr.bf16.mxu0 0
        %1143 = vmatpush2.bf16.msra.mxu0 0
        %1144 = vmatprep.subr.bf16.mxu0 0
        %1145 = vmatpush2.bf16.msra.mxu0 0
        %1146 = vmatprep.subr.bf16.mxu0 0
        %1147 = vmatpush2.bf16.msra.mxu0 0
        %1148 = vmatprep.subr.bf16.mxu0 0
        %1149 = vmatpush2.bf16.msra.mxu0 0
        %1150 = vmatprep.subr.bf16.mxu0 0
        %1151 = vmatpush2.bf16.msra.mxu0 0
        %1152 = vmatprep.subr.bf16.mxu0 0
        %1153 = vmatpush2.bf16.msra.mxu0 0
        %1154 = vmatprep.subr.bf16.mxu0 0
        %1155 = vmatpush2.bf16.msra.mxu0 0
        %1156 = vmatprep.subr.bf16.mxu0 0
        %1157 = vmatpush2.bf16.msra.mxu0 0
        %1158 = vmatprep.mubr.bf16.mxu0 0
        %1159 = vmatmul.mubr.bf16.gmra.mxu0 %v1121
        %v1160 = vpop.f32.mrf.mxu0
        %v1161 = vadd.f32 0.0, %v1160
        %v1162 = vpop.f32.mrf.mxu0
        %v1163 = vpop.f32.mrf.mxu0
        %v1164 = vpop.f32.mrf.mxu0
        %1165 = vdwg.mxu0
        %v1166 = vadd.f32 %v1006, %v1161
        %v1167 = vadd.f32 %v443, %v1166
        %v1168 = vpack.c.bf16 %v1167, %v1167
        %v1169 = vld [vmem:[%s9] sm:$0x1]
        %v1170 = vunpack.c.l.bf16 %v1168
        %v1171 = vmul.f32 %v1170, %v1170
        %v1172 = vsel %vm425, %v1171, 0.0
        %1173 = vadd.xlane.f32.xlu0 %v1172
        %v1174 = vpop.xlane.xlu0 %1173
        %v1175 = vmul.f32 %v1174, %v429
        %v1176 = vadd.f32 %v1175, 1e-06
        %v1177 = vrsqrt.pop %v1176
        %v1178 = vmul.f32 %v1170, %v1177
        %v1180 = vlaneseq
        %v1181 = vshrl.u32 %v1180, 7
        %v1182 = vsub.s32 0, %v1181
        %v1183 = vrot.slane %v1169, %v1182
        %v1185 = vmul.f32 %v1178, %v1183
        %v1186 = vpack.c.bf16 %v1185, %v1185
        %v1187 = vld [vmem:[%s6] sm:$0xff]
        %v1188 = vld [vmem:[%s6 + $0x8] sm:$0xff]
        %v1189 = vld [vmem:[%s6 + $0x10] sm:$0xff]
        %v1190 = vld [vmem:[%s6 + $0x18] sm:$0xff]
        %v1195 = vunpack.c.l.b16 %v1187
        %v1196 = vunpack.c.h.b16 %v1187
        %v1197 = vunpack.c.l.b16 %v1188
        %v1198 = vunpack.c.h.b16 %v1188
        %v1199 = vunpack.c.l.b16 %v1189
        %v1200 = vunpack.c.h.b16 %v1189
        %v1201 = vunpack.c.l.b16 %v1190
        %v1202 = vunpack.c.h.b16 %v1190
        %v1203 = vpack.c.b16 %v1197, %v1195
        %v1204 = vpack.c.b16 %v1198, %v1196
        %v1205 = vpack.c.b16 %v1201, %v1199
        %v1206 = vpack.c.b16 %v1202, %v1200
        %v1212 = vsel %vm425, %v1186, 0
        %1214 = vmatprep.subr.bf16.mxu0 0
        %1215 = vmatpush1.bf16.msra.mxu0 0
        %1216 = vmatprep.subr.bf16.mxu0 0
        %1217 = vmatpush1.bf16.msra.mxu0 0
        %1218 = vmatprep.subr.bf16.mxu0 0
        %1219 = vmatpush1.bf16.msra.mxu0 0
        %1220 = vmatprep.subr.bf16.mxu0 0
        %1221 = vmatpush1.bf16.msra.mxu0 0
        %1222 = vmatprep.subr.bf16.mxu0 0
        %1223 = vmatpush1.bf16.msra.mxu0 0
        %1224 = vmatprep.subr.bf16.mxu0 0
        %1225 = vmatpush1.bf16.msra.mxu0 0
        %1226 = vmatprep.subr.bf16.mxu0 %v1206
        %1227 = vmatpush1.bf16.msra.mxu0 %v1205
        %1228 = vmatprep.subr.bf16.mxu0 %v1204
        %1229 = vmatpush1.bf16.msra.mxu0 %v1203
        %1230 = vmatprep.subr.bf16.mxu0 0
        %1231 = vmatpush2.bf16.msra.mxu0 0
        %1232 = vmatprep.subr.bf16.mxu0 0
        %1233 = vmatpush2.bf16.msra.mxu0 0
        %1234 = vmatprep.subr.bf16.mxu0 0
        %1235 = vmatpush2.bf16.msra.mxu0 0
        %1236 = vmatprep.subr.bf16.mxu0 0
        %1237 = vmatpush2.bf16.msra.mxu0 0
        %1238 = vmatprep.subr.bf16.mxu0 0
        %1239 = vmatpush2.bf16.msra.mxu0 0
        %1240 = vmatprep.subr.bf16.mxu0 0
        %1241 = vmatpush2.bf16.msra.mxu0 0
        %1242 = vmatprep.subr.bf16.mxu0 0
        %1243 = vmatpush2.bf16.msra.mxu0 0
        %1244 = vmatprep.subr.bf16.mxu0 0
        %1245 = vmatpush2.bf16.msra.mxu0 0
        %1246 = vmatprep.mubr.bf16.mxu0 0
        %1247 = vmatmul.mubr.bf16.gmra.mxu0 %v1212
        %v1248 = vpop.f32.mrf.mxu0
        %v1249 = vadd.f32 0.0, %v1248
        %v1250 = vpop.f32.mrf.mxu0
        %v1251 = vadd.f32 0.0, %v1250
        %v1252 = vpop.f32.mrf.mxu0
        %v1253 = vpop.f32.mrf.mxu0
        %1254 = vdwg.mxu0
        %v1255 = vpack.c.bf16 %v1249, %v1249
        %v1256 = vpack.c.bf16 %v1251, %v1251
        %v1257 = vunpack.c.l.bf16 %v1255
        %v1258 = vunpack.c.l.bf16 %v1256
        %v1259 = vxor.u32 %v1258, 2147483648
        %v1260 = vmul.f32 %v1259, 1.442695
        %v1261 = vpow.pop %v1260
        %v1262 = vadd.f32 %v1261, 1.0
        %v1263 = vrcp.pop %v1262
        %v1264 = vmul.f32 1.0, %v1263
        %v1265 = vmul.f32 %v1258, %v1264
        %v1266 = vmul.f32 %v1257, %v1265
        %v1267 = vpack.c.bf16 %v1266, %v1266
        %v1268 = vld [vmem:[%s7] sm:$0xf]
        %v1269 = vld [vmem:[%s7 + $0x4] sm:$0xf]
        %v1270 = vld [vmem:[%s7 + $0x8] sm:$0xf]
        %v1271 = vld [vmem:[%s7 + $0xc] sm:$0xf]
        %v1272 = vld [vmem:[%s7 + $0x10] sm:$0xf]
        %v1273 = vld [vmem:[%s7 + $0x14] sm:$0xf]
        %v1274 = vld [vmem:[%s7 + $0x18] sm:$0xf]
        %v1275 = vld [vmem:[%s7 + $0x1c] sm:$0xf]
        %v1276 = vld [vmem:[%s7 + $0x20] sm:$0xf]
        %v1277 = vld [vmem:[%s7 + $0x24] sm:$0xf]
        %v1278 = vld [vmem:[%s7 + $0x28] sm:$0xf]
        %v1279 = vld [vmem:[%s7 + $0x2c] sm:$0xf]
        %v1280 = vld [vmem:[%s7 + $0x30] sm:$0xf]
        %v1281 = vld [vmem:[%s7 + $0x34] sm:$0xf]
        %v1282 = vld [vmem:[%s7 + $0x38] sm:$0xf]
        %v1283 = vld [vmem:[%s7 + $0x3c] sm:$0xf]
        %v1300 = vunpack.c.l.b16 %v1268
        %v1301 = vunpack.c.l.b16 %v1269
        %v1302 = vunpack.c.l.b16 %v1270
        %v1303 = vunpack.c.l.b16 %v1271
        %v1304 = vunpack.c.l.b16 %v1272
        %v1305 = vunpack.c.l.b16 %v1273
        %v1306 = vunpack.c.l.b16 %v1274
        %v1307 = vunpack.c.l.b16 %v1275
        %v1308 = vunpack.c.l.b16 %v1276
        %v1309 = vunpack.c.l.b16 %v1277
        %v1310 = vunpack.c.l.b16 %v1278
        %v1311 = vunpack.c.l.b16 %v1279
        %v1312 = vunpack.c.l.b16 %v1280
        %v1313 = vunpack.c.l.b16 %v1281
        %v1314 = vunpack.c.l.b16 %v1282
        %v1315 = vunpack.c.l.b16 %v1283
        %v1316 = vpack.c.b16 %v1301, %v1300
        %v1317 = vpack.c.b16 %v1303, %v1302
        %v1318 = vpack.c.b16 %v1305, %v1304
        %v1319 = vpack.c.b16 %v1307, %v1306
        %v1320 = vpack.c.b16 %v1309, %v1308
        %v1321 = vpack.c.b16 %v1311, %v1310
        %v1322 = vpack.c.b16 %v1313, %v1312
        %v1323 = vpack.c.b16 %v1315, %v1314
        %1332 = vmatprep.subr.bf16.mxu0 0
        %1333 = vmatpush1.bf16.msra.mxu0 %v1323
        %1334 = vmatprep.subr.bf16.mxu0 0
        %1335 = vmatpush1.bf16.msra.mxu0 %v1322
        %1336 = vmatprep.subr.bf16.mxu0 0
        %1337 = vmatpush1.bf16.msra.mxu0 %v1321
        %1338 = vmatprep.subr.bf16.mxu0 0
        %1339 = vmatpush1.bf16.msra.mxu0 %v1320
        %1340 = vmatprep.subr.bf16.mxu0 0
        %1341 = vmatpush1.bf16.msra.mxu0 %v1319
        %1342 = vmatprep.subr.bf16.mxu0 0
        %1343 = vmatpush1.bf16.msra.mxu0 %v1318
        %1344 = vmatprep.subr.bf16.mxu0 0
        %1345 = vmatpush1.bf16.msra.mxu0 %v1317
        %1346 = vmatprep.subr.bf16.mxu0 0
        %1347 = vmatpush1.bf16.msra.mxu0 %v1316
        %1348 = vmatprep.subr.bf16.mxu0 0
        %1349 = vmatpush2.bf16.msra.mxu0 0
        %1350 = vmatprep.subr.bf16.mxu0 0
        %1351 = vmatpush2.bf16.msra.mxu0 0
        %1352 = vmatprep.subr.bf16.mxu0 0
        %1353 = vmatpush2.bf16.msra.mxu0 0
        %1354 = vmatprep.subr.bf16.mxu0 0
        %1355 = vmatpush2.bf16.msra.mxu0 0
        %1356 = vmatprep.subr.bf16.mxu0 0
        %1357 = vmatpush2.bf16.msra.mxu0 0
        %1358 = vmatprep.subr.bf16.mxu0 0
        %1359 = vmatpush2.bf16.msra.mxu0 0
        %1360 = vmatprep.subr.bf16.mxu0 0
        %1361 = vmatpush2.bf16.msra.mxu0 0
        %1362 = vmatprep.subr.bf16.mxu0 0
        %1363 = vmatpush2.bf16.msra.mxu0 0
        %1364 = vmatprep.mubr.bf16.mxu0 0
        %1365 = vmatmul.mubr.bf16.gmra.mxu0 %v1267
        %v1366 = vpop.f32.mrf.mxu0
        %v1367 = vadd.f32 0.0, %v1366
        %v1368 = vpop.f32.mrf.mxu0
        %v1369 = vpop.f32.mrf.mxu0
        %v1370 = vpop.f32.mrf.mxu0
        %1371 = vdwg.mxu0
        %v1372 = vadd.f32 %v1170, %v1367
        %v1373 = vpack.c.bf16 %v1372, %v1372
        %s1374 = scalar_lea.vmem %s8, 1
        %v1375 = vld [vmem:[%s1374] sm:$0x1]
        %v1376 = vunpack.c.l.bf16 %v1373
        %v1377 = vmul.f32 %v1376, %v1376
        %v1378 = vsel %vm425, %v1377, 0.0
        %1379 = vadd.xlane.f32.xlu0 %v1378
        %v1380 = vpop.xlane.xlu0 %1379
        %v1381 = vmul.f32 %v1380, %v429
        %v1382 = vadd.f32 %v1381, 1e-06
        %v1383 = vrsqrt.pop %v1382
        %v1384 = vmul.f32 %v1376, %v1383
        %v1386 = vlaneseq
        %v1387 = vshrl.u32 %v1386, 7
        %v1388 = vsub.s32 0, %v1387
        %v1389 = vrot.slane %v1375, %v1388
        %v1391 = vmul.f32 %v1384, %v1389
        %v1392 = vpack.c.bf16 %v1391, %v1391
        %s1393 = scalar_lea.vmem %s4, 16
        %v1394 = vld [vmem:[%s1393] sm:$0xf]
        %v1395 = vld [vmem:[%s1393 + $0x4] sm:$0xf]
        %v1396 = vld [vmem:[%s1393 + $0x8] sm:$0xf]
        %v1397 = vld [vmem:[%s1393 + $0xc] sm:$0xf]
        %v1402 = vunpack.c.l.b16 %v1394
        %v1403 = vunpack.c.l.b16 %v1395
        %v1404 = vunpack.c.l.b16 %v1396
        %v1405 = vunpack.c.l.b16 %v1397
        %v1406 = vpack.c.b16 %v1403, %v1402
        %v1407 = vpack.c.b16 %v1405, %v1404
        %v1411 = vsel %vm425, %v1392, 0
        %1413 = vmatprep.subr.bf16.mxu0 0
        %1414 = vmatpush1.bf16.msra.mxu0 0
        %1415 = vmatprep.subr.bf16.mxu0 0
        %1416 = vmatpush1.bf16.msra.mxu0 0
        %1417 = vmatprep.subr.bf16.mxu0 0
        %1418 = vmatpush1.bf16.msra.mxu0 0
        %1419 = vmatprep.subr.bf16.mxu0 0
        %1420 = vmatpush1.bf16.msra.mxu0 0
        %1421 = vmatprep.subr.bf16.mxu0 0
        %1422 = vmatpush1.bf16.msra.mxu0 0
        %1423 = vmatprep.subr.bf16.mxu0 0
        %1424 = vmatpush1.bf16.msra.mxu0 0
        %1425 = vmatprep.subr.bf16.mxu0 0
        %1426 = vmatpush1.bf16.msra.mxu0 %v1407
        %1427 = vmatprep.subr.bf16.mxu0 0
        %1428 = vmatpush1.bf16.msra.mxu0 %v1406
        %1429 = vmatprep.subr.bf16.mxu0 0
        %1430 = vmatpush2.bf16.msra.mxu0 0
        %1431 = vmatprep.subr.bf16.mxu0 0
        %1432 = vmatpush2.bf16.msra.mxu0 0
        %1433 = vmatprep.subr.bf16.mxu0 0
        %1434 = vmatpush2.bf16.msra.mxu0 0
        %1435 = vmatprep.subr.bf16.mxu0 0
        %1436 = vmatpush2.bf16.msra.mxu0 0
        %1437 = vmatprep.subr.bf16.mxu0 0
        %1438 = vmatpush2.bf16.msra.mxu0 0
        %1439 = vmatprep.subr.bf16.mxu0 0
        %1440 = vmatpush2.bf16.msra.mxu0 0
        %1441 = vmatprep.subr.bf16.mxu0 0
        %1442 = vmatpush2.bf16.msra.mxu0 0
        %1443 = vmatprep.subr.bf16.mxu0 0
        %1444 = vmatpush2.bf16.msra.mxu0 0
        %1445 = vmatprep.mubr.bf16.mxu0 0
        %1446 = vmatmul.mubr.bf16.gmra.mxu0 %v1411
        %v1447 = vpop.f32.mrf.mxu0
        %v1448 = vadd.f32 0.0, %v1447
        %v1449 = vpop.f32.mrf.mxu0
        %v1450 = vpop.f32.mrf.mxu0
        %v1451 = vpop.f32.mrf.mxu0
        %1452 = vdwg.mxu0
        %v1453 = vpack.c.bf16 %v1448, %v1448
        %s1454 = scalar_lea.vmem %s5, 16
        %v1455 = vld [vmem:[%s1454] sm:$0xf]
        %v1456 = vld [vmem:[%s1454 + $0x4] sm:$0xf]
        %v1457 = vld [vmem:[%s1454 + $0x8] sm:$0xf]
        %v1458 = vld [vmem:[%s1454 + $0xc] sm:$0xf]
        %1460 = vrot.lane.b32.xlu0 %v1453, 96
        %v1461 = vpop.permute.xlu0 %1460
        %v1463 = vsel %vm373, %v1453, 0
        %v1466 = vsel %vm373, %v1461, 0
        %1468 = vmatprep.subr.bf16.mxu0 0
        %1469 = vmatpush1.bf16.xpose.msra.mxu0 0
        %1470 = vmatprep.subr.bf16.mxu0 0
        %1471 = vmatpush1.bf16.xpose.msra.mxu0 0
        %1472 = vmatprep.subr.bf16.mxu0 0
        %1473 = vmatpush1.bf16.xpose.msra.mxu0 0
        %1474 = vmatprep.subr.bf16.mxu0 0
        %1475 = vmatpush1.bf16.xpose.msra.mxu0 0
        %1476 = vmatprep.subr.bf16.mxu0 0
        %1477 = vmatpush1.bf16.xpose.msra.mxu0 0
        %1478 = vmatprep.subr.bf16.mxu0 0
        %1479 = vmatpush1.bf16.xpose.msra.mxu0 0
        %1480 = vmatprep.subr.bf16.mxu0 0
        %1481 = vmatpush1.bf16.xpose.msra.mxu0 0
        %1482 = vmatprep.subr.bf16.mxu0 0
        %1483 = vmatpush1.bf16.xpose.msra.mxu0 %v1466
        %1484 = vmatprep.subr.bf16.mxu0 0
        %1485 = vmatpush2.bf16.xpose.msra.mxu0 0
        %1486 = vmatprep.subr.bf16.mxu0 0
        %1487 = vmatpush2.bf16.xpose.msra.mxu0 0
        %1488 = vmatprep.subr.bf16.mxu0 0
        %1489 = vmatpush2.bf16.xpose.msra.mxu0 0
        %1490 = vmatprep.subr.bf16.mxu0 0
        %1491 = vmatpush2.bf16.xpose.msra.mxu0 0
        %1492 = vmatprep.subr.bf16.mxu0 0
        %1493 = vmatpush2.bf16.xpose.msra.mxu0 0
        %1494 = vmatprep.subr.bf16.mxu0 0
        %1495 = vmatpush2.bf16.xpose.msra.mxu0 0
        %1496 = vmatprep.subr.bf16.mxu0 0
        %1497 = vmatpush2.bf16.xpose.msra.mxu0 0
        %1498 = vmatprep.subr.bf16.mxu0 0
        %1499 = vmatpush2.bf16.xpose.msra.mxu0 0
        %1500 = vmatprep.mubr.bf16.mxu0 0
        %1501 = vmatmul.mubr.bf16.gmra.mxu0 %v1463
        %v1502 = vpop.f32.mrf.mxu0
        %v1503 = vadd.f32 0.0, %v1502
        %v1504 = vpop.f32.mrf.mxu0
        %v1505 = vpop.f32.mrf.mxu0
        %v1506 = vpop.f32.mrf.mxu0
        %1507 = vdwg.mxu0
        %v1508 = vmul.f32 %v1503, 0.35355338
        %v1509 = vadd.f32 %v1508, %v578
        %v1510 = vsel %vm373, %v1509, -inf
        %1511 = vmax.xlane.f32.xlu0 %v1510
        %v1512 = vpop.xlane.xlu0 %1511
        %v1513 = vsub.f32 %v1509, %v1512
        %v1514 = vmul.f32 %v1513, 1.442695
        %v1515 = vpow.pop %v1514
        %v1516 = vsel %vm373, %v1515, 0.0
        %1517 = vadd.xlane.f32.xlu0 %v1516
        %v1518 = vpop.xlane.xlu0 %1517
        %v1519 = vrcp.pop %v1518
        %v1520 = vmul.f32 %v1515, %v1519
        %v1521 = vpack.c.bf16 %v1520, %v1520
        %1522 = vrot.lane.b32.xlu0 %v1453, 64
        %v1523 = vpop.permute.xlu0 %1522
        %v1525 = vsel %vm373, %v1521, 0
        %v1528 = vsel %vm377, %v1523, 0
        %1530 = vmatprep.subr.bf16.mxu0 0
        %1531 = vmatpush1.bf16.msra.mxu0 0
        %1532 = vmatprep.subr.bf16.mxu0 0
        %1533 = vmatpush1.bf16.msra.mxu0 0
        %1534 = vmatprep.subr.bf16.mxu0 0
        %1535 = vmatpush1.bf16.msra.mxu0 0
        %1536 = vmatprep.subr.bf16.mxu0 0
        %1537 = vmatpush1.bf16.msra.mxu0 0
        %1538 = vmatprep.subr.bf16.mxu0 0
        %1539 = vmatpush1.bf16.msra.mxu0 0
        %1540 = vmatprep.subr.bf16.mxu0 0
        %1541 = vmatpush1.bf16.msra.mxu0 0
        %1542 = vmatprep.subr.bf16.mxu0 0
        %1543 = vmatpush1.bf16.msra.mxu0 0
        %1544 = vmatprep.subr.bf16.mxu0 0
        %1545 = vmatpush1.bf16.msra.mxu0 %v1528
        %1546 = vmatprep.subr.bf16.mxu0 0
        %1547 = vmatpush2.bf16.msra.mxu0 0
        %1548 = vmatprep.subr.bf16.mxu0 0
        %1549 = vmatpush2.bf16.msra.mxu0 0
        %1550 = vmatprep.subr.bf16.mxu0 0
        %1551 = vmatpush2.bf16.msra.mxu0 0
        %1552 = vmatprep.subr.bf16.mxu0 0
        %1553 = vmatpush2.bf16.msra.mxu0 0
        %1554 = vmatprep.subr.bf16.mxu0 0
        %1555 = vmatpush2.bf16.msra.mxu0 0
        %1556 = vmatprep.subr.bf16.mxu0 0
        %1557 = vmatpush2.bf16.msra.mxu0 0
        %1558 = vmatprep.subr.bf16.mxu0 0
        %1559 = vmatpush2.bf16.msra.mxu0 0
        %1560 = vmatprep.subr.bf16.mxu0 0
        %1561 = vmatpush2.bf16.msra.mxu0 0
        %1562 = vmatprep.mubr.bf16.mxu0 0
        %1563 = vmatmul.mubr.bf16.gmra.mxu0 %v1525
        %v1564 = vpop.f32.mrf.mxu0
        %v1565 = vadd.f32 0.0, %v1564
        %v1566 = vpop.f32.mrf.mxu0
        %v1567 = vpop.f32.mrf.mxu0
        %v1568 = vpop.f32.mrf.mxu0
        %1569 = vdwg.mxu0
        %v1570 = vpack.c.bf16 %v1565, %v1565
        %1571 = vrot.lane.b32.xlu0 %v1453, 120
        %v1572 = vpop.permute.xlu0 %1571
        %1573 = vrot.lane.b32.xlu0 %v1453, 88
        %v1574 = vpop.permute.xlu0 %1573
        %v1576 = vsel %vm373, %v1572, 0
        %v1579 = vsel %vm373, %v1574, 0
        %1581 = vmatprep.subr.bf16.mxu0 0
        %1582 = vmatpush1.bf16.xpose.msra.mxu0 0
        %1583 = vmatprep.subr.bf16.mxu0 0
        %1584 = vmatpush1.bf16.xpose.msra.mxu0 0
        %1585 = vmatprep.subr.bf16.mxu0 0
        %1586 = vmatpush1.bf16.xpose.msra.mxu0 0
        %1587 = vmatprep.subr.bf16.mxu0 0
        %1588 = vmatpush1.bf16.xpose.msra.mxu0 0
        %1589 = vmatprep.subr.bf16.mxu0 0
        %1590 = vmatpush1.bf16.xpose.msra.mxu0 0
        %1591 = vmatprep.subr.bf16.mxu0 0
        %1592 = vmatpush1.bf16.xpose.msra.mxu0 0
        %1593 = vmatprep.subr.bf16.mxu0 0
        %1594 = vmatpush1.bf16.xpose.msra.mxu0 0
        %1595 = vmatprep.subr.bf16.mxu0 0
        %1596 = vmatpush1.bf16.xpose.msra.mxu0 %v1579
        %1597 = vmatprep.subr.bf16.mxu0 0
        %1598 = vmatpush2.bf16.xpose.msra.mxu0 0
        %1599 = vmatprep.subr.bf16.mxu0 0
        %1600 = vmatpush2.bf16.xpose.msra.mxu0 0
        %1601 = vmatprep.subr.bf16.mxu0 0
        %1602 = vmatpush2.bf16.xpose.msra.mxu0 0
        %1603 = vmatprep.subr.bf16.mxu0 0
        %1604 = vmatpush2.bf16.xpose.msra.mxu0 0
        %1605 = vmatprep.subr.bf16.mxu0 0
        %1606 = vmatpush2.bf16.xpose.msra.mxu0 0
        %1607 = vmatprep.subr.bf16.mxu0 0
        %1608 = vmatpush2.bf16.xpose.msra.mxu0 0
        %1609 = vmatprep.subr.bf16.mxu0 0
        %1610 = vmatpush2.bf16.xpose.msra.mxu0 0
        %1611 = vmatprep.subr.bf16.mxu0 0
        %1612 = vmatpush2.bf16.xpose.msra.mxu0 0
        %1613 = vmatprep.mubr.bf16.mxu0 0
        %1614 = vmatmul.mubr.bf16.gmra.mxu0 %v1576
        %v1615 = vpop.f32.mrf.mxu0
        %v1616 = vadd.f32 0.0, %v1615
        %v1617 = vpop.f32.mrf.mxu0
        %v1618 = vpop.f32.mrf.mxu0
        %v1619 = vpop.f32.mrf.mxu0
        %1620 = vdwg.mxu0
        %v1621 = vmul.f32 %v1616, 0.35355338
        %v1622 = vadd.f32 %v1621, %v578
        %v1623 = vsel %vm373, %v1622, -inf
        %1624 = vmax.xlane.f32.xlu0 %v1623
        %v1625 = vpop.xlane.xlu0 %1624
        %v1626 = vsub.f32 %v1622, %v1625
        %v1627 = vmul.f32 %v1626, 1.442695
        %v1628 = vpow.pop %v1627
        %v1629 = vsel %vm373, %v1628, 0.0
        %1630 = vadd.xlane.f32.xlu0 %v1629
        %v1631 = vpop.xlane.xlu0 %1630
        %v1632 = vrcp.pop %v1631
        %v1633 = vmul.f32 %v1628, %v1632
        %v1634 = vpack.c.bf16 %v1633, %v1633
        %1635 = vrot.lane.b32.xlu0 %v1453, 56
        %v1636 = vpop.permute.xlu0 %1635
        %v1638 = vsel %vm373, %v1634, 0
        %v1641 = vsel %vm377, %v1636, 0
        %1643 = vmatprep.subr.bf16.mxu0 0
        %1644 = vmatpush1.bf16.msra.mxu0 0
        %1645 = vmatprep.subr.bf16.mxu0 0
        %1646 = vmatpush1.bf16.msra.mxu0 0
        %1647 = vmatprep.subr.bf16.mxu0 0
        %1648 = vmatpush1.bf16.msra.mxu0 0
        %1649 = vmatprep.subr.bf16.mxu0 0
        %1650 = vmatpush1.bf16.msra.mxu0 0
        %1651 = vmatprep.subr.bf16.mxu0 0
        %1652 = vmatpush1.bf16.msra.mxu0 0
        %1653 = vmatprep.subr.bf16.mxu0 0
        %1654 = vmatpush1.bf16.msra.mxu0 0
        %1655 = vmatprep.subr.bf16.mxu0 0
        %1656 = vmatpush1.bf16.msra.mxu0 0
        %1657 = vmatprep.subr.bf16.mxu0 0
        %1658 = vmatpush1.bf16.msra.mxu0 %v1641
        %1659 = vmatprep.subr.bf16.mxu0 0
        %1660 = vmatpush2.bf16.msra.mxu0 0
        %1661 = vmatprep.subr.bf16.mxu0 0
        %1662 = vmatpush2.bf16.msra.mxu0 0
        %1663 = vmatprep.subr.bf16.mxu0 0
        %1664 = vmatpush2.bf16.msra.mxu0 0
        %1665 = vmatprep.subr.bf16.mxu0 0
        %1666 = vmatpush2.bf16.msra.mxu0 0
        %1667 = vmatprep.subr.bf16.mxu0 0
        %1668 = vmatpush2.bf16.msra.mxu0 0
        %1669 = vmatprep.subr.bf16.mxu0 0
        %1670 = vmatpush2.bf16.msra.mxu0 0
        %1671 = vmatprep.subr.bf16.mxu0 0
        %1672 = vmatpush2.bf16.msra.mxu0 0
        %1673 = vmatprep.subr.bf16.mxu0 0
        %1674 = vmatpush2.bf16.msra.mxu0 0
        %1675 = vmatprep.mubr.bf16.mxu0 0
        %1676 = vmatmul.mubr.bf16.gmra.mxu0 %v1638
        %v1677 = vpop.f32.mrf.mxu0
        %v1678 = vadd.f32 0.0, %v1677
        %v1679 = vpop.f32.mrf.mxu0
        %v1680 = vpop.f32.mrf.mxu0
        %v1681 = vpop.f32.mrf.mxu0
        %1682 = vdwg.mxu0
        %v1683 = vpack.c.bf16 %v1678, %v1678
        %v1685 = vsel %vm373, %v1683, 0
        %v1688 = vsel %vm377, %v1456, 0
        %1690 = vmatprep.subr.bf16.mxu0 0
        %1691 = vmatpush1.bf16.msra.mxu0 0
        %1692 = vmatprep.subr.bf16.mxu0 0
        %1693 = vmatpush1.bf16.msra.mxu0 0
        %1694 = vmatprep.subr.bf16.mxu0 0
        %1695 = vmatpush1.bf16.msra.mxu0 0
        %1696 = vmatprep.subr.bf16.mxu0 0
        %1697 = vmatpush1.bf16.msra.mxu0 0
        %1698 = vmatprep.subr.bf16.mxu0 0
        %1699 = vmatpush1.bf16.msra.mxu0 0
        %1700 = vmatprep.subr.bf16.mxu0 0
        %1701 = vmatpush1.bf16.msra.mxu0 0
        %1702 = vmatprep.subr.bf16.mxu0 0
        %1703 = vmatpush1.bf16.msra.mxu0 0
        %1704 = vmatprep.subr.bf16.mxu0 0
        %1705 = vmatpush1.bf16.msra.mxu0 %v1688
        %1706 = vmatprep.subr.bf16.mxu0 0
        %1707 = vmatpush2.bf16.msra.mxu0 0
        %1708 = vmatprep.subr.bf16.mxu0 0
        %1709 = vmatpush2.bf16.msra.mxu0 0
        %1710 = vmatprep.subr.bf16.mxu0 0
        %1711 = vmatpush2.bf16.msra.mxu0 0
        %1712 = vmatprep.subr.bf16.mxu0 0
        %1713 = vmatpush2.bf16.msra.mxu0 0
        %1714 = vmatprep.subr.bf16.mxu0 0
        %1715 = vmatpush2.bf16.msra.mxu0 0
        %1716 = vmatprep.subr.bf16.mxu0 0
        %1717 = vmatpush2.bf16.msra.mxu0 0
        %1718 = vmatprep.subr.bf16.mxu0 0
        %1719 = vmatpush2.bf16.msra.mxu0 0
        %1720 = vmatprep.subr.bf16.mxu0 0
        %1721 = vmatpush2.bf16.msra.mxu0 0
        %1722 = vmatprep.mubr.bf16.mxu0 0
        %1723 = vmatmul.mubr.bf16.gmra.mxu0 %v1685
        %v1724 = vpop.f32.mrf.mxu0
        %v1725 = vadd.f32 0.0, %v1724
        %v1726 = vpop.f32.mrf.mxu0
        %v1727 = vpop.f32.mrf.mxu0
        %v1728 = vpop.f32.mrf.mxu0
        %1729 = vdwg.mxu0
        %v1731 = vsel %vm373, %v1570, 0
        %v1734 = vsel %vm377, %v1455, 0
        %1736 = vmatprep.subr.bf16.mxu0 0
        %1737 = vmatpush1.bf16.msra.mxu0 0
        %1738 = vmatprep.subr.bf16.mxu0 0
        %1739 = vmatpush1.bf16.msra.mxu0 0
        %1740 = vmatprep.subr.bf16.mxu0 0
        %1741 = vmatpush1.bf16.msra.mxu0 0
        %1742 = vmatprep.subr.bf16.mxu0 0
        %1743 = vmatpush1.bf16.msra.mxu0 0
        %1744 = vmatprep.subr.bf16.mxu0 0
        %1745 = vmatpush1.bf16.msra.mxu0 0
        %1746 = vmatprep.subr.bf16.mxu0 0
        %1747 = vmatpush1.bf16.msra.mxu0 0
        %1748 = vmatprep.subr.bf16.mxu0 0
        %1749 = vmatpush1.bf16.msra.mxu0 0
        %1750 = vmatprep.subr.bf16.mxu0 0
        %1751 = vmatpush1.bf16.msra.mxu0 %v1734
        %1752 = vmatprep.subr.bf16.mxu0 0
        %1753 = vmatpush2.bf16.msra.mxu0 0
        %1754 = vmatprep.subr.bf16.mxu0 0
        %1755 = vmatpush2.bf16.msra.mxu0 0
        %1756 = vmatprep.subr.bf16.mxu0 0
        %1757 = vmatpush2.bf16.msra.mxu0 0
        %1758 = vmatprep.subr.bf16.mxu0 0
        %1759 = vmatpush2.bf16.msra.mxu0 0
        %1760 = vmatprep.subr.bf16.mxu0 0
        %1761 = vmatpush2.bf16.msra.mxu0 0
        %1762 = vmatprep.subr.bf16.mxu0 0
        %1763 = vmatpush2.bf16.msra.mxu0 0
        %1764 = vmatprep.subr.bf16.mxu0 0
        %1765 = vmatpush2.bf16.msra.mxu0 0
        %1766 = vmatprep.subr.bf16.mxu0 0
        %1767 = vmatpush2.bf16.msra.mxu0 0
        %1768 = vmatprep.mubr.bf16.mxu0 0
        %1769 = vmatmul.mubr.bf16.gmra.mxu0 %v1731
        %v1770 = vpop.f32.mrf.mxu0
        %v1771 = vadd.f32 %v1725, %v1770
        %v1772 = vpop.f32.mrf.mxu0
        %v1773 = vpop.f32.mrf.mxu0
        %v1774 = vpop.f32.mrf.mxu0
        %1775 = vdwg.mxu0
        %1776 = vrot.lane.b32.xlu0 %v1453, 112
        %v1777 = vpop.permute.xlu0 %1776
        %1778 = vrot.lane.b32.xlu0 %v1453, 80
        %v1779 = vpop.permute.xlu0 %1778
        %v1781 = vsel %vm373, %v1777, 0
        %v1784 = vsel %vm373, %v1779, 0
        %1786 = vmatprep.subr.bf16.mxu0 0
        %1787 = vmatpush1.bf16.xpose.msra.mxu0 0
        %1788 = vmatprep.subr.bf16.mxu0 0
        %1789 = vmatpush1.bf16.xpose.msra.mxu0 0
        %1790 = vmatprep.subr.bf16.mxu0 0
        %1791 = vmatpush1.bf16.xpose.msra.mxu0 0
        %1792 = vmatprep.subr.bf16.mxu0 0
        %1793 = vmatpush1.bf16.xpose.msra.mxu0 0
        %1794 = vmatprep.subr.bf16.mxu0 0
        %1795 = vmatpush1.bf16.xpose.msra.mxu0 0
        %1796 = vmatprep.subr.bf16.mxu0 0
        %1797 = vmatpush1.bf16.xpose.msra.mxu0 0
        %1798 = vmatprep.subr.bf16.mxu0 0
        %1799 = vmatpush1.bf16.xpose.msra.mxu0 0
        %1800 = vmatprep.subr.bf16.mxu0 0
        %1801 = vmatpush1.bf16.xpose.msra.mxu0 %v1784
        %1802 = vmatprep.subr.bf16.mxu0 0
        %1803 = vmatpush2.bf16.xpose.msra.mxu0 0
        %1804 = vmatprep.subr.bf16.mxu0 0
        %1805 = vmatpush2.bf16.xpose.msra.mxu0 0
        %1806 = vmatprep.subr.bf16.mxu0 0
        %1807 = vmatpush2.bf16.xpose.msra.mxu0 0
        %1808 = vmatprep.subr.bf16.mxu0 0
        %1809 = vmatpush2.bf16.xpose.msra.mxu0 0
        %1810 = vmatprep.subr.bf16.mxu0 0
        %1811 = vmatpush2.bf16.xpose.msra.mxu0 0
        %1812 = vmatprep.subr.bf16.mxu0 0
        %1813 = vmatpush2.bf16.xpose.msra.mxu0 0
        %1814 = vmatprep.subr.bf16.mxu0 0
        %1815 = vmatpush2.bf16.xpose.msra.mxu0 0
        %1816 = vmatprep.subr.bf16.mxu0 0
        %1817 = vmatpush2.bf16.xpose.msra.mxu0 0
        %1818 = vmatprep.mubr.bf16.mxu0 0
        %1819 = vmatmul.mubr.bf16.gmra.mxu0 %v1781
        %v1820 = vpop.f32.mrf.mxu0
        %v1821 = vadd.f32 0.0, %v1820
        %v1822 = vpop.f32.mrf.mxu0
        %v1823 = vpop.f32.mrf.mxu0
        %v1824 = vpop.f32.mrf.mxu0
        %1825 = vdwg.mxu0
        %v1826 = vmul.f32 %v1821, 0.35355338
        %v1827 = vadd.f32 %v1826, %v578
        %v1828 = vsel %vm373, %v1827, -inf
        %1829 = vmax.xlane.f32.xlu0 %v1828
        %v1830 = vpop.xlane.xlu0 %1829
        %v1831 = vsub.f32 %v1827, %v1830
        %v1832 = vmul.f32 %v1831, 1.442695
        %v1833 = vpow.pop %v1832
        %v1834 = vsel %vm373, %v1833, 0.0
        %1835 = vadd.xlane.f32.xlu0 %v1834
        %v1836 = vpop.xlane.xlu0 %1835
        %v1837 = vrcp.pop %v1836
        %v1838 = vmul.f32 %v1833, %v1837
        %v1839 = vpack.c.bf16 %v1838, %v1838
        %1840 = vrot.lane.b32.xlu0 %v1453, 48
        %v1841 = vpop.permute.xlu0 %1840
        %v1843 = vsel %vm373, %v1839, 0
        %v1846 = vsel %vm377, %v1841, 0
        %1848 = vmatprep.subr.bf16.mxu0 0
        %1849 = vmatpush1.bf16.msra.mxu0 0
        %1850 = vmatprep.subr.bf16.mxu0 0
        %1851 = vmatpush1.bf16.msra.mxu0 0
        %1852 = vmatprep.subr.bf16.mxu0 0
        %1853 = vmatpush1.bf16.msra.mxu0 0
        %1854 = vmatprep.subr.bf16.mxu0 0
        %1855 = vmatpush1.bf16.msra.mxu0 0
        %1856 = vmatprep.subr.bf16.mxu0 0
        %1857 = vmatpush1.bf16.msra.mxu0 0
        %1858 = vmatprep.subr.bf16.mxu0 0
        %1859 = vmatpush1.bf16.msra.mxu0 0
        %1860 = vmatprep.subr.bf16.mxu0 0
        %1861 = vmatpush1.bf16.msra.mxu0 0
        %1862 = vmatprep.subr.bf16.mxu0 0
        %1863 = vmatpush1.bf16.msra.mxu0 %v1846
        %1864 = vmatprep.subr.bf16.mxu0 0
        %1865 = vmatpush2.bf16.msra.mxu0 0
        %1866 = vmatprep.subr.bf16.mxu0 0
        %1867 = vmatpush2.bf16.msra.mxu0 0
        %1868 = vmatprep.subr.bf16.mxu0 0
        %1869 = vmatpush2.bf16.msra.mxu0 0
        %1870 = vmatprep.subr.bf16.mxu0 0
        %1871 = vmatpush2.bf16.msra.mxu0 0
        %1872 = vmatprep.subr.bf16.mxu0 0
        %1873 = vmatpush2.bf16.msra.mxu0 0
        %1874 = vmatprep.subr.bf16.mxu0 0
        %1875 = vmatpush2.bf16.msra.mxu0 0
        %1876 = vmatprep.subr.bf16.mxu0 0
        %1877 = vmatpush2.bf16.msra.mxu0 0
        %1878 = vmatprep.subr.bf16.mxu0 0
        %1879 = vmatpush2.bf16.msra.mxu0 0
        %1880 = vmatprep.mubr.bf16.mxu0 0
        %1881 = vmatmul.mubr.bf16.gmra.mxu0 %v1843
        %v1882 = vpop.f32.mrf.mxu0
        %v1883 = vadd.f32 0.0, %v1882
        %v1884 = vpop.f32.mrf.mxu0
        %v1885 = vpop.f32.mrf.mxu0
        %v1886 = vpop.f32.mrf.mxu0
        %1887 = vdwg.mxu0
        %v1888 = vpack.c.bf16 %v1883, %v1883
        %v1890 = vsel %vm373, %v1888, 0
        %v1893 = vsel %vm377, %v1457, 0
        %1895 = vmatprep.subr.bf16.mxu0 0
        %1896 = vmatpush1.bf16.msra.mxu0 0
        %1897 = vmatprep.subr.bf16.mxu0 0
        %1898 = vmatpush1.bf16.msra.mxu0 0
        %1899 = vmatprep.subr.bf16.mxu0 0
        %1900 = vmatpush1.bf16.msra.mxu0 0
        %1901 = vmatprep.subr.bf16.mxu0 0
        %1902 = vmatpush1.bf16.msra.mxu0 0
        %1903 = vmatprep.subr.bf16.mxu0 0
        %1904 = vmatpush1.bf16.msra.mxu0 0
        %1905 = vmatprep.subr.bf16.mxu0 0
        %1906 = vmatpush1.bf16.msra.mxu0 0
        %1907 = vmatprep.subr.bf16.mxu0 0
        %1908 = vmatpush1.bf16.msra.mxu0 0
        %1909 = vmatprep.subr.bf16.mxu0 0
        %1910 = vmatpush1.bf16.msra.mxu0 %v1893
        %1911 = vmatprep.subr.bf16.mxu0 0
        %1912 = vmatpush2.bf16.msra.mxu0 0
        %1913 = vmatprep.subr.bf16.mxu0 0
        %1914 = vmatpush2.bf16.msra.mxu0 0
        %1915 = vmatprep.subr.bf16.mxu0 0
        %1916 = vmatpush2.bf16.msra.mxu0 0
        %1917 = vmatprep.subr.bf16.mxu0 0
        %1918 = vmatpush2.bf16.msra.mxu0 0
        %1919 = vmatprep.subr.bf16.mxu0 0
        %1920 = vmatpush2.bf16.msra.mxu0 0
        %1921 = vmatprep.subr.bf16.mxu0 0
        %1922 = vmatpush2.bf16.msra.mxu0 0
        %1923 = vmatprep.subr.bf16.mxu0 0
        %1924 = vmatpush2.bf16.msra.mxu0 0
        %1925 = vmatprep.subr.bf16.mxu0 0
        %1926 = vmatpush2.bf16.msra.mxu0 0
        %1927 = vmatprep.mubr.bf16.mxu0 0
        %1928 = vmatmul.mubr.bf16.gmra.mxu0 %v1890
        %v1929 = vpop.f32.mrf.mxu0
        %v1930 = vadd.f32 0.0, %v1929
        %v1931 = vpop.f32.mrf.mxu0
        %v1932 = vpop.f32.mrf.mxu0
        %v1933 = vpop.f32.mrf.mxu0
        %1934 = vdwg.mxu0
        %v1935 = vadd.f32 %v1771, %v1930
        %1936 = vrot.lane.b32.xlu0 %v1453, 104
        %v1937 = vpop.permute.xlu0 %1936
        %1938 = vrot.lane.b32.xlu0 %v1453, 72
        %v1939 = vpop.permute.xlu0 %1938
        %v1941 = vsel %vm373, %v1937, 0
        %v1944 = vsel %vm373, %v1939, 0
        %1946 = vmatprep.subr.bf16.mxu0 0
        %1947 = vmatpush1.bf16.xpose.msra.mxu0 0
        %1948 = vmatprep.subr.bf16.mxu0 0
        %1949 = vmatpush1.bf16.xpose.msra.mxu0 0
        %1950 = vmatprep.subr.bf16.mxu0 0
        %1951 = vmatpush1.bf16.xpose.msra.mxu0 0
        %1952 = vmatprep.subr.bf16.mxu0 0
        %1953 = vmatpush1.bf16.xpose.msra.mxu0 0
        %1954 = vmatprep.subr.bf16.mxu0 0
        %1955 = vmatpush1.bf16.xpose.msra.mxu0 0
        %1956 = vmatprep.subr.bf16.mxu0 0
        %1957 = vmatpush1.bf16.xpose.msra.mxu0 0
        %1958 = vmatprep.subr.bf16.mxu0 0
        %1959 = vmatpush1.bf16.xpose.msra.mxu0 0
        %1960 = vmatprep.subr.bf16.mxu0 0
        %1961 = vmatpush1.bf16.xpose.msra.mxu0 %v1944
        %1962 = vmatprep.subr.bf16.mxu0 0
        %1963 = vmatpush2.bf16.xpose.msra.mxu0 0
        %1964 = vmatprep.subr.bf16.mxu0 0
        %1965 = vmatpush2.bf16.xpose.msra.mxu0 0
        %1966 = vmatprep.subr.bf16.mxu0 0
        %1967 = vmatpush2.bf16.xpose.msra.mxu0 0
        %1968 = vmatprep.subr.bf16.mxu0 0
        %1969 = vmatpush2.bf16.xpose.msra.mxu0 0
        %1970 = vmatprep.subr.bf16.mxu0 0
        %1971 = vmatpush2.bf16.xpose.msra.mxu0 0
        %1972 = vmatprep.subr.bf16.mxu0 0
        %1973 = vmatpush2.bf16.xpose.msra.mxu0 0
        %1974 = vmatprep.subr.bf16.mxu0 0
        %1975 = vmatpush2.bf16.xpose.msra.mxu0 0
        %1976 = vmatprep.subr.bf16.mxu0 0
        %1977 = vmatpush2.bf16.xpose.msra.mxu0 0
        %1978 = vmatprep.mubr.bf16.mxu0 0
        %1979 = vmatmul.mubr.bf16.gmra.mxu0 %v1941
        %v1980 = vpop.f32.mrf.mxu0
        %v1981 = vadd.f32 0.0, %v1980
        %v1982 = vpop.f32.mrf.mxu0
        %v1983 = vpop.f32.mrf.mxu0
        %v1984 = vpop.f32.mrf.mxu0
        %1985 = vdwg.mxu0
        %v1986 = vmul.f32 %v1981, 0.35355338
        %v1987 = vadd.f32 %v1986, %v578
        %v1988 = vsel %vm373, %v1987, -inf
        %1989 = vmax.xlane.f32.xlu0 %v1988
        %v1990 = vpop.xlane.xlu0 %1989
        %v1991 = vsub.f32 %v1987, %v1990
        %v1992 = vmul.f32 %v1991, 1.442695
        %v1993 = vpow.pop %v1992
        %v1994 = vsel %vm373, %v1993, 0.0
        %1995 = vadd.xlane.f32.xlu0 %v1994
        %v1996 = vpop.xlane.xlu0 %1995
        %v1997 = vrcp.pop %v1996
        %v1998 = vmul.f32 %v1993, %v1997
        %v1999 = vpack.c.bf16 %v1998, %v1998
        %2000 = vrot.lane.b32.xlu0 %v1453, 40
        %v2001 = vpop.permute.xlu0 %2000
        %v2003 = vsel %vm373, %v1999, 0
        %v2006 = vsel %vm377, %v2001, 0
        %2008 = vmatprep.subr.bf16.mxu0 0
        %2009 = vmatpush1.bf16.msra.mxu0 0
        %2010 = vmatprep.subr.bf16.mxu0 0
        %2011 = vmatpush1.bf16.msra.mxu0 0
        %2012 = vmatprep.subr.bf16.mxu0 0
        %2013 = vmatpush1.bf16.msra.mxu0 0
        %2014 = vmatprep.subr.bf16.mxu0 0
        %2015 = vmatpush1.bf16.msra.mxu0 0
        %2016 = vmatprep.subr.bf16.mxu0 0
        %2017 = vmatpush1.bf16.msra.mxu0 0
        %2018 = vmatprep.subr.bf16.mxu0 0
        %2019 = vmatpush1.bf16.msra.mxu0 0
        %2020 = vmatprep.subr.bf16.mxu0 0
        %2021 = vmatpush1.bf16.msra.mxu0 0
        %2022 = vmatprep.subr.bf16.mxu0 0
        %2023 = vmatpush1.bf16.msra.mxu0 %v2006
        %2024 = vmatprep.subr.bf16.mxu0 0
        %2025 = vmatpush2.bf16.msra.mxu0 0
        %2026 = vmatprep.subr.bf16.mxu0 0
        %2027 = vmatpush2.bf16.msra.mxu0 0
        %2028 = vmatprep.subr.bf16.mxu0 0
        %2029 = vmatpush2.bf16.msra.mxu0 0
        %2030 = vmatprep.subr.bf16.mxu0 0
        %2031 = vmatpush2.bf16.msra.mxu0 0
        %2032 = vmatprep.subr.bf16.mxu0 0
        %2033 = vmatpush2.bf16.msra.mxu0 0
        %2034 = vmatprep.subr.bf16.mxu0 0
        %2035 = vmatpush2.bf16.msra.mxu0 0
        %2036 = vmatprep.subr.bf16.mxu0 0
        %2037 = vmatpush2.bf16.msra.mxu0 0
        %2038 = vmatprep.subr.bf16.mxu0 0
        %2039 = vmatpush2.bf16.msra.mxu0 0
        %2040 = vmatprep.mubr.bf16.mxu0 0
        %2041 = vmatmul.mubr.bf16.gmra.mxu0 %v2003
        %v2042 = vpop.f32.mrf.mxu0
        %v2043 = vadd.f32 0.0, %v2042
        %v2044 = vpop.f32.mrf.mxu0
        %v2045 = vpop.f32.mrf.mxu0
        %v2046 = vpop.f32.mrf.mxu0
        %2047 = vdwg.mxu0
        %v2048 = vpack.c.bf16 %v2043, %v2043
        %v2050 = vsel %vm373, %v2048, 0
        %v2053 = vsel %vm377, %v1458, 0
        %2055 = vmatprep.subr.bf16.mxu0 0
        %2056 = vmatpush1.bf16.msra.mxu0 0
        %2057 = vmatprep.subr.bf16.mxu0 0
        %2058 = vmatpush1.bf16.msra.mxu0 0
        %2059 = vmatprep.subr.bf16.mxu0 0
        %2060 = vmatpush1.bf16.msra.mxu0 0
        %2061 = vmatprep.subr.bf16.mxu0 0
        %2062 = vmatpush1.bf16.msra.mxu0 0
        %2063 = vmatprep.subr.bf16.mxu0 0
        %2064 = vmatpush1.bf16.msra.mxu0 0
        %2065 = vmatprep.subr.bf16.mxu0 0
        %2066 = vmatpush1.bf16.msra.mxu0 0
        %2067 = vmatprep.subr.bf16.mxu0 0
        %2068 = vmatpush1.bf16.msra.mxu0 0
        %2069 = vmatprep.subr.bf16.mxu0 0
        %2070 = vmatpush1.bf16.msra.mxu0 %v2053
        %2071 = vmatprep.subr.bf16.mxu0 0
        %2072 = vmatpush2.bf16.msra.mxu0 0
        %2073 = vmatprep.subr.bf16.mxu0 0
        %2074 = vmatpush2.bf16.msra.mxu0 0
        %2075 = vmatprep.subr.bf16.mxu0 0
        %2076 = vmatpush2.bf16.msra.mxu0 0
        %2077 = vmatprep.subr.bf16.mxu0 0
        %2078 = vmatpush2.bf16.msra.mxu0 0
        %2079 = vmatprep.subr.bf16.mxu0 0
        %2080 = vmatpush2.bf16.msra.mxu0 0
        %2081 = vmatprep.subr.bf16.mxu0 0
        %2082 = vmatpush2.bf16.msra.mxu0 0
        %2083 = vmatprep.subr.bf16.mxu0 0
        %2084 = vmatpush2.bf16.msra.mxu0 0
        %2085 = vmatprep.subr.bf16.mxu0 0
        %2086 = vmatpush2.bf16.msra.mxu0 0
        %2087 = vmatprep.mubr.bf16.mxu0 0
        %2088 = vmatmul.mubr.bf16.gmra.mxu0 %v2050
        %v2089 = vpop.f32.mrf.mxu0
        %v2090 = vadd.f32 0.0, %v2089
        %v2091 = vpop.f32.mrf.mxu0
        %v2092 = vpop.f32.mrf.mxu0
        %v2093 = vpop.f32.mrf.mxu0
        %2094 = vdwg.mxu0
        %v2095 = vadd.f32 %v1935, %v2090
        %v2096 = vadd.f32 %v1376, %v2095
        %v2097 = vpack.c.bf16 %v2096, %v2096
        %s2098 = scalar_lea.vmem %s9, 1
        %v2099 = vld [vmem:[%s2098] sm:$0x1]
        %v2100 = vunpack.c.l.bf16 %v2097
        %v2101 = vmul.f32 %v2100, %v2100
        %v2102 = vsel %vm425, %v2101, 0.0
        %2103 = vadd.xlane.f32.xlu0 %v2102
        %v2104 = vpop.xlane.xlu0 %2103
        %v2105 = vmul.f32 %v2104, %v429
        %v2106 = vadd.f32 %v2105, 1e-06
        %v2107 = vrsqrt.pop %v2106
        %v2108 = vmul.f32 %v2100, %v2107
        %v2110 = vlaneseq
        %v2111 = vshrl.u32 %v2110, 7
        %v2112 = vsub.s32 0, %v2111
        %v2113 = vrot.slane %v2099, %v2112
        %v2115 = vmul.f32 %v2108, %v2113
        %v2116 = vpack.c.bf16 %v2115, %v2115
        %s2117 = scalar_lea.vmem %s6, 32
        %v2118 = vld [vmem:[%s2117] sm:$0xff]
        %v2119 = vld [vmem:[%s2117 + $0x8] sm:$0xff]
        %v2120 = vld [vmem:[%s2117 + $0x10] sm:$0xff]
        %v2121 = vld [vmem:[%s2117 + $0x18] sm:$0xff]
        %v2126 = vunpack.c.l.b16 %v2118
        %v2127 = vunpack.c.h.b16 %v2118
        %v2128 = vunpack.c.l.b16 %v2119
        %v2129 = vunpack.c.h.b16 %v2119
        %v2130 = vunpack.c.l.b16 %v2120
        %v2131 = vunpack.c.h.b16 %v2120
        %v2132 = vunpack.c.l.b16 %v2121
        %v2133 = vunpack.c.h.b16 %v2121
        %v2134 = vpack.c.b16 %v2128, %v2126
        %v2135 = vpack.c.b16 %v2129, %v2127
        %v2136 = vpack.c.b16 %v2132, %v2130
        %v2137 = vpack.c.b16 %v2133, %v2131
        %v2143 = vsel %vm425, %v2116, 0
        %2145 = vmatprep.subr.bf16.mxu0 0
        %2146 = vmatpush1.bf16.msra.mxu0 0
        %2147 = vmatprep.subr.bf16.mxu0 0
        %2148 = vmatpush1.bf16.msra.mxu0 0
        %2149 = vmatprep.subr.bf16.mxu0 0
        %2150 = vmatpush1.bf16.msra.mxu0 0
        %2151 = vmatprep.subr.bf16.mxu0 0
        %2152 = vmatpush1.bf16.msra.mxu0 0
        %2153 = vmatprep.subr.bf16.mxu0 0
        %2154 = vmatpush1.bf16.msra.mxu0 0
        %2155 = vmatprep.subr.bf16.mxu0 0
        %2156 = vmatpush1.bf16.msra.mxu0 0
        %2157 = vmatprep.subr.bf16.mxu0 %v2137
        %2158 = vmatpush1.bf16.msra.mxu0 %v2136
        %2159 = vmatprep.subr.bf16.mxu0 %v2135
        %2160 = vmatpush1.bf16.msra.mxu0 %v2134
        %2161 = vmatprep.subr.bf16.mxu0 0
        %2162 = vmatpush2.bf16.msra.mxu0 0
        %2163 = vmatprep.subr.bf16.mxu0 0
        %2164 = vmatpush2.bf16.msra.mxu0 0
        %2165 = vmatprep.subr.bf16.mxu0 0
        %2166 = vmatpush2.bf16.msra.mxu0 0
        %2167 = vmatprep.subr.bf16.mxu0 0
        %2168 = vmatpush2.bf16.msra.mxu0 0
        %2169 = vmatprep.subr.bf16.mxu0 0
        %2170 = vmatpush2.bf16.msra.mxu0 0
        %2171 = vmatprep.subr.bf16.mxu0 0
        %2172 = vmatpush2.bf16.msra.mxu0 0
        %2173 = vmatprep.subr.bf16.mxu0 0
        %2174 = vmatpush2.bf16.msra.mxu0 0
        %2175 = vmatprep.subr.bf16.mxu0 0
        %2176 = vmatpush2.bf16.msra.mxu0 0
        %2177 = vmatprep.mubr.bf16.mxu0 0
        %2178 = vmatmul.mubr.bf16.gmra.mxu0 %v2143
        %v2179 = vpop.f32.mrf.mxu0
        %v2180 = vadd.f32 0.0, %v2179
        %v2181 = vpop.f32.mrf.mxu0
        %v2182 = vadd.f32 0.0, %v2181
        %v2183 = vpop.f32.mrf.mxu0
        %v2184 = vpop.f32.mrf.mxu0
        %2185 = vdwg.mxu0
        %v2186 = vpack.c.bf16 %v2180, %v2180
        %v2187 = vpack.c.bf16 %v2182, %v2182
        %v2188 = vunpack.c.l.bf16 %v2186
        %v2189 = vunpack.c.l.bf16 %v2187
        %v2190 = vxor.u32 %v2189, 2147483648
        %v2191 = vmul.f32 %v2190, 1.442695
        %v2192 = vpow.pop %v2191
        %v2193 = vadd.f32 %v2192, 1.0
        %v2194 = vrcp.pop %v2193
        %v2195 = vmul.f32 1.0, %v2194
        %v2196 = vmul.f32 %v2189, %v2195
        %v2197 = vmul.f32 %v2188, %v2196
        %v2198 = vpack.c.bf16 %v2197, %v2197
        %s2199 = scalar_lea.vmem %s7, 64
        %v2200 = vld [vmem:[%s2199] sm:$0xf]
        %v2201 = vld [vmem:[%s2199 + $0x4] sm:$0xf]
        %v2202 = vld [vmem:[%s2199 + $0x8] sm:$0xf]
        %v2203 = vld [vmem:[%s2199 + $0xc] sm:$0xf]
        %v2204 = vld [vmem:[%s2199 + $0x10] sm:$0xf]
        %v2205 = vld [vmem:[%s2199 + $0x14] sm:$0xf]
        %v2206 = vld [vmem:[%s2199 + $0x18] sm:$0xf]
        %v2207 = vld [vmem:[%s2199 + $0x1c] sm:$0xf]
        %v2208 = vld [vmem:[%s2199 + $0x20] sm:$0xf]
        %v2209 = vld [vmem:[%s2199 + $0x24] sm:$0xf]
        %v2210 = vld [vmem:[%s2199 + $0x28] sm:$0xf]
        %v2211 = vld [vmem:[%s2199 + $0x2c] sm:$0xf]
        %v2212 = vld [vmem:[%s2199 + $0x30] sm:$0xf]
        %v2213 = vld [vmem:[%s2199 + $0x34] sm:$0xf]
        %v2214 = vld [vmem:[%s2199 + $0x38] sm:$0xf]
        %v2215 = vld [vmem:[%s2199 + $0x3c] sm:$0xf]
        %v2232 = vunpack.c.l.b16 %v2200
        %v2233 = vunpack.c.l.b16 %v2201
        %v2234 = vunpack.c.l.b16 %v2202
        %v2235 = vunpack.c.l.b16 %v2203
        %v2236 = vunpack.c.l.b16 %v2204
        %v2237 = vunpack.c.l.b16 %v2205
        %v2238 = vunpack.c.l.b16 %v2206
        %v2239 = vunpack.c.l.b16 %v2207
        %v2240 = vunpack.c.l.b16 %v2208
        %v2241 = vunpack.c.l.b16 %v2209
        %v2242 = vunpack.c.l.b16 %v2210
        %v2243 = vunpack.c.l.b16 %v2211
        %v2244 = vunpack.c.l.b16 %v2212
        %v2245 = vunpack.c.l.b16 %v2213
        %v2246 = vunpack.c.l.b16 %v2214
        %v2247 = vunpack.c.l.b16 %v2215
        %v2248 = vpack.c.b16 %v2233, %v2232
        %v2249 = vpack.c.b16 %v2235, %v2234
        %v2250 = vpack.c.b16 %v2237, %v2236
        %v2251 = vpack.c.b16 %v2239, %v2238
        %v2252 = vpack.c.b16 %v2241, %v2240
        %v2253 = vpack.c.b16 %v2243, %v2242
        %v2254 = vpack.c.b16 %v2245, %v2244
        %v2255 = vpack.c.b16 %v2247, %v2246
        %2264 = vmatprep.subr.bf16.mxu0 0
        %2265 = vmatpush1.bf16.msra.mxu0 %v2255
        %2266 = vmatprep.subr.bf16.mxu0 0
        %2267 = vmatpush1.bf16.msra.mxu0 %v2254
        %2268 = vmatprep.subr.bf16.mxu0 0
        %2269 = vmatpush1.bf16.msra.mxu0 %v2253
        %2270 = vmatprep.subr.bf16.mxu0 0
        %2271 = vmatpush1.bf16.msra.mxu0 %v2252
        %2272 = vmatprep.subr.bf16.mxu0 0
        %2273 = vmatpush1.bf16.msra.mxu0 %v2251
        %2274 = vmatprep.subr.bf16.mxu0 0
        %2275 = vmatpush1.bf16.msra.mxu0 %v2250
        %2276 = vmatprep.subr.bf16.mxu0 0
        %2277 = vmatpush1.bf16.msra.mxu0 %v2249
        %2278 = vmatprep.subr.bf16.mxu0 0
        %2279 = vmatpush1.bf16.msra.mxu0 %v2248
        %2280 = vmatprep.subr.bf16.mxu0 0
        %2281 = vmatpush2.bf16.msra.mxu0 0
        %2282 = vmatprep.subr.bf16.mxu0 0
        %2283 = vmatpush2.bf16.msra.mxu0 0
        %2284 = vmatprep.subr.bf16.mxu0 0
        %2285 = vmatpush2.bf16.msra.mxu0 0
        %2286 = vmatprep.subr.bf16.mxu0 0
        %2287 = vmatpush2.bf16.msra.mxu0 0
        %2288 = vmatprep.subr.bf16.mxu0 0
        %2289 = vmatpush2.bf16.msra.mxu0 0
        %2290 = vmatprep.subr.bf16.mxu0 0
        %2291 = vmatpush2.bf16.msra.mxu0 0
        %2292 = vmatprep.subr.bf16.mxu0 0
        %2293 = vmatpush2.bf16.msra.mxu0 0
        %2294 = vmatprep.subr.bf16.mxu0 0
        %2295 = vmatpush2.bf16.msra.mxu0 0
        %2296 = vmatprep.mubr.bf16.mxu0 0
        %2297 = vmatmul.mubr.bf16.gmra.mxu0 %v2198
        %v2298 = vpop.f32.mrf.mxu0
        %v2299 = vadd.f32 0.0, %v2298
        %v2300 = vpop.f32.mrf.mxu0
        %v2301 = vpop.f32.mrf.mxu0
        %v2302 = vpop.f32.mrf.mxu0
        %2303 = vdwg.mxu0
        %v2304 = vadd.f32 %v2100, %v2299
        %v2305 = vpack.c.bf16 %v2304, %v2304
        %vm2306 = vcmask 257024
        %2307 = vst.msk [vmem:[%s361] sm:$0xf] %vm2306, %v2305
        %s2308 = sand.u32 %s252, 1
        %s2309 = scalar_lea.sflag [#allocation3], %s2308
        %s2310 = sand.u32 %s252, 1
        %s2311 = smul.addr %s2310, 4
        %s2312 = scalar_lea.vmem [#allocation2], %s2311
        // Predicated region
        $region61: #{tpu_custom_call.1} parent=59 // pred_check
          %p2313 = pneg %p262
        $region62: #{tpu_custom_call.1} parent=59 // pred_check_branch
          %2315 = sbr.rel (%p2313) target = $region64
        $region63: #{tpu_custom_call.1} parent=59 // pred_region
          %s2317 = ssub.s32 64, 64
          %2318 = vsyncadd %s2309, %s2317
          %s2319 = smul.addr %s24, 64
          %s2320 = scalar_lea.hbm %s10, %s2319
          %s2322 = sshll.u32 %s2312, 4
          %s2323 = int_to_ptr.vmem [resolvable:$true] %s2322
          %2325 = dma.vmem_to_hbm [thread:$0]  %s2323, 64, %s2320, %s2309
        $region64: #{tpu_custom_call.1} parent=59 // pred_fallthru
          _
      $region60: #{tpu_custom_call.1} parent=5 // pred_fallthru
        _
      %p2326 = scmp.le.s32.totalorder 2, %s19
      // Predicated region
      $region65: #{tpu_custom_call.1} parent=5 // pred_check
        %p2327 = pneg %p2326
      $region66: #{tpu_custom_call.1} parent=5 // pred_check_branch
        %2329 = sbr.rel (%p2327) target = $region68
      $region67: #{tpu_custom_call.1} parent=5 // pred_region
        %s2330 = ssub.s32 %s19, 2
        // Predicated region
        $region69: #{tpu_custom_call.1} parent=67 // pred_check
          %p2331 = pneg %p268
        $region70: #{tpu_custom_call.1} parent=67 // pred_check_branch
          %2333 = sbr.rel (%p2331) target = $region72
        $region71: #{tpu_custom_call.1} parent=67 // pred_region
          %s2334 = sand.u32 %s253, 1
          %s2335 = scalar_lea.sflag [#allocation3], %s2334
          %s2336 = sand.u32 %s253, 1
          %s2337 = smul.addr %s2336, 4
          %s2338 = scalar_lea.vmem [#allocation2], %s2337
          %2339 = dma.done %s2335, 64
        $region72: #{tpu_custom_call.1} parent=67 // pred_fallthru
          _
      $region68: #{tpu_custom_call.1} parent=5 // pred_fallthru
        _
    $region6: #{tpu_custom_call.1} parent=1 // loop_footer
      %s23 = sadd.s32 1, %s19
    $region7: #{tpu_custom_call.1} parent=1 // loop_footer_branch
      %18 = sbr.rel target = $region3
    $region8: #{tpu_custom_call.1} parent=1 // loop_exit
      _
    %2340 = vsyncpa [#allocation3], 1
    %s2341 = scalar_lea.sflag [#allocation3], 1
    %2342 = vsyncpa %s2341, 1

</llo_original>
